<compile_context>
chip_gen: v7x
topology: tpu7x:2x2x1
jax: 0.10.0
libtpu: 0.0.40
codegen_flags: <defaults>
</compile_context>

<pallas_src>
import functools

import jax
import jax.numpy as jnp
from jax.experimental import pallas as pl
from jax.experimental.pallas import tpu as pltpu


# ---------------------------------------------------------------------------
# Kernel
# ---------------------------------------------------------------------------
def _normalize(x, eps=1e-5):
    # Weight-free part of torch.nn.LayerNorm (biased variance, eps=1e-5).
    # The per-layer affine (gamma/beta) is folded into the projection weights
    # host-side, so the kernel never applies it explicitly.
    mean = jnp.mean(x, axis=-1, keepdims=True)
    var = jnp.mean((x - mean) ** 2, axis=-1, keepdims=True)
    return (x - mean) * jax.lax.rsqrt(var + eps)


def _transformer_kernel(num_layers,
                        feat1_ref, feat2_ref, wslab_ref, bslab_ref, gmat_ref,
                        raw_ref):
    F, TB, C = feat2_ref.shape

    f1 = feat1_ref[...]                                   # (TB, C)
    # Merge the bin and row axes: row-major collapse, layout-free reshape.
    f2_flat = feat2_ref[...].reshape(F * TB, C)           # (F*TB, C)
    gmat = gmat_ref[...]                                  # (C, C) head-block 1s

    # feat2 never changes across layers and LayerNorm statistics don't depend
    # on the per-layer affine -> normalise ONCE, reuse for every layer.
    f2_hat = _normalize(f2_flat)                          # (F*TB, C)

    raw = None
    for layer in range(num_layers):                       # static, unrolled
        w = wslab_ref[layer]                              # (C, 5C)
        b = bslab_ref[layer]                              # (5, C)
        w_s = w[:, 0:C]                                   # norm+Wv^T+Wo^T fused
        w_q = w[:, C:2 * C]                               # norm+scale folded
        w_kv = w[:, 2 * C:4 * C]                          # norm folded [Wk|Wv]
        w_o = w[:, 4 * C:5 * C]
        b_s, b_q, b_k, b_v, b_o = b[0:1], b[1:2], b[2:3], b[3:4], b[4:5]

        # --- TransformerSelfAttnLayer --------------------------------------
        # Sequence length is 1, so softmax over a single logit is exactly 1
        # and the attention output is out_proj(value_proj(norm(x))); norm
        # affine + both projections are algebraically folded into one matmul.
        f1 = f1 + jnp.dot(_normalize(f1), w_s,
                          preferred_element_type=jnp.float32) + b_s

        # --- TransformerCrossAttnLayer -------------------------------------
        q = jnp.dot(_normalize(f1), w_q,
                    preferred_element_type=jnp.float32) + b_q      # (TB, C)
        kv = jnp.dot(f2_hat, w_kv,
                     preferred_element_type=jnp.float32)           # (F*TB, 2C)
        k_all = kv[:, 0:C] + b_k                                   # (F*TB, C)
        v_all = kv[:, C:2 * C] + b_v                               # (F*TB, C)

        # Per-head logits for all bins in ONE matmul: broadcast each head's
        # logit across its lanes via the head-block-ones matrix (MXU), so the
        # softmax / weighted-value math is all full-(TB,C)-width VPU/EUP work.
        q_rep = jnp.tile(q, (F, 1))                                # (F*TB, C)
        prod = q_rep * k_all                                       # (F*TB, C)
        lb = jnp.dot(prod, gmat, preferred_element_type=jnp.float32)

        m = lb[0:TB]
        for f in range(1, F):
            m = jnp.maximum(m, lb[f * TB:(f + 1) * TB])            # head max
        num = jnp.zeros((TB, C), jnp.float32)
        den = jnp.zeros((TB, C), jnp.float32)
        for f in range(F):
            e = jnp.exp(lb[f * TB:(f + 1) * TB] - m)               # head probs
            den = den + e
            num = num + e * v_all[f * TB:(f + 1) * TB]
        attn_out = num * pl.reciprocal(den, approx=True)           # softmax*V
        f1 = f1 + jnp.dot(attn_out, w_o,
                          preferred_element_type=jnp.float32) + b_o

        if layer == num_layers - 1:
            # raw_attn = sum over heads of the pre-softmax (scaled) logits
            # == full-lane sum of q*k_f (reference: .sum(dim=1)).  Only the
            # last layer's raw attention survives the reference loop.
            raw = jnp.concatenate(
                [jnp.sum(prod[f * TB:(f + 1) * TB], axis=-1, keepdims=True)
                 for f in range(F)], axis=-1)                      # (TB, F)

    raw_ref[...] = raw


# ---------------------------------------------------------------------------
# Wrappers (glue in plain JAX)
# ---------------------------------------------------------------------------
def _choose_tile_b(B, F, C, max_tile_b=512, vmem_budget_bytes=10 * 1024 * 1024):
    """Largest multiple-of-8 divisor of B under a VMEM byte budget, preferring
    grid >= 2 so both v7x TensorCores get work (v5e/v6e: single TC, grid=1 ok).
    Budget: ~10 live f32 arrays of shape (F*tile_b, C) (double-buffered feat2
    block + normalised feat2 + kv/prod/logit intermediates)."""
    per_row = F * C * 4 * 10
    cap = max(8, min(max_tile_b, (vmem_budget_bytes // per_row) // 8 * 8))
    cands = [t for t in range(8, min(B, cap) + 1, 8) if B % t == 0]
    if not cands:
        return min(B, cap)
    multi = [t for t in cands if B // t >= 2]
    return max(multi) if multi else max(cands)


def transformer_attn_pallas(feat1, feat2, wslab, bslab, gmat, tile_b=None):
    B, C = feat1.shape
    F = feat2.shape[0]
    L = wslab.shape[0]
    assert L >= 1

    # Pad the row axis to a multiple of 8 (garbage rows are sliced off below;
    # zero-padded rows cannot produce NaN/Inf on this math path).
    B_pad = -(-B // 8) * 8
    if B_pad != B:
        feat1 = jnp.pad(feat1, ((0, B_pad - B), (0, 0)))
        feat2 = jnp.pad(feat2, ((0, 0), (0, B_pad - B), (0, 0)))
    if tile_b is None:
        tile_b = _choose_tile_b(B_pad, F, C)
    assert B_pad % tile_b == 0

    kernel = functools.partial(_transformer_kernel, L)
    wshape, bshape, gshape = wslab.shape, bslab.shape, gmat.shape
    raw = pl.pallas_call(
        kernel,
        grid=(B_pad // tile_b,),
        in_specs=[
            pl.BlockSpec((tile_b, C), lambda i: (i, 0)),
            pl.BlockSpec((F, tile_b, C), lambda i: (0, i, 0)),
            pl.BlockSpec(wshape, lambda i: (0, 0, 0)),
            pl.BlockSpec(bshape, lambda i: (0, 0, 0)),
            pl.BlockSpec(gshape, lambda i: (0, 0)),
        ],
        out_specs=pl.BlockSpec((tile_b, F), lambda i: (i, 0)),
        out_shape=jax.ShapeDtypeStruct((B_pad, F), jnp.float32),
        compiler_params=pltpu.CompilerParams(
            dimension_semantics=("parallel",)),
    )(feat1, feat2, wslab, bslab, gmat)
    return raw[:B] if B_pad != B else raw


def prepare_b(x):
    """JAX version of prepareB: (d, c, h, w) -> (d, h*w, c)."""
    d, c, h, w = x.shape
    return jnp.transpose(x, (0, 2, 3, 1)).reshape(d, h * w, c)


def head_group_matrix(C, num_heads):
    hd = C // num_heads
    ids = jnp.arange(C) // hd
    return (ids[:, None] == ids[None, :]).astype(jnp.float32)


def pack_params(layers, C, num_heads):
    """Fold (seq-1 self-attn, q-scaling, LayerNorm affines) host-side and pack
    per-layer weights into one matmul slab (L, C, 5C) and one bias slab
    (L, 5, C).  All folds are exact algebra:
        ln(x) @ M + c == norm(x) @ (diag(gamma) M) + (beta @ M + c)."""
    scale = float(C // num_heads) ** -0.5
    hi = jax.lax.Precision.HIGHEST
    wrows, brows = [], []
    for p in layers:
        # Self-attn (seq len 1): out = out_proj(value_proj(ln(x))).
        s_wv, s_bv = p["s_in_w"][2 * C:], p["s_in_b"][2 * C:]
        s_wvo = jnp.matmul(s_wv.T, p["s_out_w"].T, precision=hi)       # (C, C)
        s_bvo = jnp.matmul(s_bv, p["s_out_w"].T, precision=hi) + p["s_out_b"]
        w_s = p["s_norm_w"][:, None] * s_wvo
        b_s = jnp.matmul(p["s_norm_b"], s_wvo, precision=hi) + s_bvo

        # Cross-attn: q (scaled), k, v projections with norm1 affine folded in.
        c_wq, c_bq = p["c_in_w"][:C], p["c_in_b"][:C]
        c_wk, c_bk = p["c_in_w"][C:2 * C], p["c_in_b"][C:2 * C]
        c_wv, c_bv = p["c_in_w"][2 * C:], p["c_in_b"][2 * C:]
        w_q = p["c_norm_w"][:, None] * c_wq.T * scale
        b_q = (jnp.matmul(p["c_norm_b"], c_wq.T, precision=hi) + c_bq) * scale
        wkvt = jnp.concatenate([c_wk.T, c_wv.T], axis=1)               # (C, 2C)
        w_kv = p["c_norm_w"][:, None] * wkvt
        bkv = (jnp.matmul(p["c_norm_b"], wkvt, precision=hi)
               + jnp.concatenate([c_bk, c_bv]))
        b_k, b_v = bkv[:C], bkv[C:]

        wrows.append(jnp.concatenate([w_s, w_q, w_kv, p["c_out_w"].T], axis=1))
        brows.append(jnp.stack([b_s, b_q, b_k, b_v, p["c_out_b"]], axis=0))
    return jnp.stack(wrows), jnp.stack(brows)


def transformer_forward(feat1_nchw, warped_nchw, layers, num_bins, num_heads,
                        tile_b=None):
    bs, C, hn, w = feat1_nchw.shape
    B = bs * hn * w

    # feat1: prepareB + rearrange '(x b) n c -> x (b n) c' (x=1), seq squeezed.
    f1 = prepare_b(feat1_nchw).reshape(B, C)
    # feat2 (warped): prepareB + rearrange '(b f) n c -> f (b n) c'.
    f2 = prepare_b(warped_nchw).reshape(bs, num_bins, hn * w, C)
    f2 = jnp.transpose(f2, (1, 0, 2, 3)).reshape(num_bins, B, C)

    wslab, bslab = pack_params(layers, C, num_heads)
    gmat = head_group_matrix(C, num_heads)
    raw = transformer_attn_pallas(f1, f2, wslab, bslab, gmat, tile_b)

    # Only the last layer's raw attention survives (matches the reference).
    attn_weight = raw.reshape(bs, hn, w, num_bins)
    return {"attn_weight": attn_weight}


def init_params(key, C, num_layers):
    """Deterministic synthetic parameters matching the torch module shapes."""
    def rnd(k, shape, scale=0.1):
        return scale * jax.random.normal(k, shape, jnp.float32)

    layers = []
    for _ in range(num_layers):
        key, *ks = jax.random.split(key, 13)
        layers.append(dict(
            s_norm_w=1.0 + rnd(ks[0], (C,)), s_norm_b=rnd(ks[1], (C,)),
            s_in_w=rnd(ks[2], (3 * C, C)), s_in_b=rnd(ks[3], (3 * C,)),
            s_out_w=rnd(ks[4], (C, C)), s_out_b=rnd(ks[5], (C,)),
            c_norm_w=1.0 + rnd(ks[6], (C,)), c_norm_b=rnd(ks[7], (C,)),
            c_in_w=rnd(ks[8], (3 * C, C)), c_in_b=rnd(ks[9], (3 * C,)),
            c_out_w=rnd(ks[10], (C, C)), c_out_b=rnd(ks[11], (C,)),
        ))
    return layers


# ---------------------------------------------------------------------------
# Pure-JAX reference (mirrors the torch math) for a sanity check
# ---------------------------------------------------------------------------
def reference_raw_attn(f1, f2, layers, num_heads):
    C = f1.shape[1]
    hd = C // num_heads
    scale = float(hd) ** -0.5

    def ln(x, w, b):
        mean = x.mean(-1, keepdims=True)
        var = ((x - mean) ** 2).mean(-1, keepdims=True)
        return (x - mean) * jax.lax.rsqrt(var + 1e-5) * w + b

    raw = None
    for p in layers:
        # self-attention (seq len 1 -> softmax == 1)
        x = ln(f1, p["s_norm_w"], p["s_norm_b"])
        v = x @ p["s_in_w"][2 * C:].T + p["s_in_b"][2 * C:]
        f1 = f1 + v @ p["s_out_w"].T + p["s_out_b"]
        # cross-attention
        q = ln(f1, p["c_norm_w"], p["c_norm_b"]) @ p["c_in_w"][:C].T + p["c_in_b"][:C]
        q = q * scale
        f2n = ln(f2, p["c_norm_w"], p["c_norm_b"])
        k = f2n @ p["c_in_w"][C:2 * C].T + p["c_in_b"][C:2 * C]      # (F, B, C)
        vv = f2n @ p["c_in_w"][2 * C:].T + p["c_in_b"][2 * C:]
        qh = q.reshape(-1, num_heads, hd)
        kh = k.reshape(k.shape[0], -1, num_heads, hd)
        vh = vv.reshape(vv.shape[0], -1, num_heads, hd)
        logits = jnp.einsum('bhd,fbhd->bhf', qh, kh)
        raw = logits.sum(axis=1)                                      # (B, F)
        pattn = jax.nn.softmax(logits, axis=-1)
        oh = jnp.einsum('bhf,fbhd->bhd', pattn, vh).reshape(-1, C)
        f1 = f1 + oh @ p["c_out_w"].T + p["c_out_b"]
    return raw


if __name__ == "__main__":
    bs, C, hn, w = 1, 32, 8, 16          # cfg.channel_dim = 32
    num_bins, num_heads, num_layers = 8, 4, 2

    key = jax.random.PRNGKey(0)
    k1, k2, kp = jax.random.split(key, 3)
    feat1 = jax.random.normal(k1, (bs, C, hn, w), jnp.float32)
    # Synthetic stand-in for the warped cost volume (num_bins*bs, C, h, w).
    warped = jax.random.normal(k2, (bs * num_bins, C, hn, w), jnp.float32)

    layers = init_params(kp, C, num_layers)
    out = transformer_forward(feat1, warped, layers, num_bins, num_heads)
    jax.block_until_ready(out["attn_weight"])
    assert out["attn_weight"].shape == (bs, hn, w, num_bins)

    # Sanity check against a pure-JAX reference of the torch math.
    B = bs * hn * w
    f1_2d = prepare_b(feat1).reshape(B, C)
    f2_3d = jnp.transpose(
        prepare_b(warped).reshape(bs, num_bins, hn * w, C),
        (1, 0, 2, 3)).reshape(num_bins, B, C)
    raw_ref = reference_raw_attn(f1_2d, f2_3d, layers, num_heads)
    raw_ker = out["attn_weight"].reshape(B, num_bins)
    assert jnp.allclose(raw_ker, raw_ref, atol=5e-2, rtol=5e-2), (
        float(jnp.max(jnp.abs(raw_ker - raw_ref))))

    print("KERNEL_OK")
</pallas_src>

<mosaic_0001>
module attributes {stable_mosaic.version = 11 : i64} {
  func.func @_transformer_kernel(%arg0: i32, %arg1: memref<64x32xf32, #tpu.memory_space<vmem>>, %arg2: memref<8x64x32xf32, #tpu.memory_space<vmem>>, %arg3: memref<2x32x160xf32, #tpu.memory_space<vmem>>, %arg4: memref<2x5x32xf32, #tpu.memory_space<vmem>>, %arg5: memref<32x32xf32, #tpu.memory_space<vmem>>, %arg6: memref<64x8xf32, #tpu.memory_space<vmem>>) attributes {dimension_semantics = [#tpu.dimension_semantics<parallel>], iteration_bounds = array<i64: 2>, scalar_prefetch = 0 : i64, scratch_operands = 0 : i64, tpu.core_type = #tpu.core_type<tc>, window_params = [{transform_indices = @transform_0, window_bounds = array<i64: 64, 32>}, {transform_indices = @transform_1, window_bounds = array<i64: 8, 64, 32>}, {pipeline_mode = #tpu.pipeline_mode<synchronous>, transform_indices = @transform_2, window_bounds = array<i64: 2, 32, 160>}, {pipeline_mode = #tpu.pipeline_mode<synchronous>, transform_indices = @transform_3, window_bounds = array<i64: 2, 5, 32>}, {pipeline_mode = #tpu.pipeline_mode<synchronous>, transform_indices = @transform_4, window_bounds = array<i64: 32, 32>}, {transform_indices = @transform_5, window_bounds = array<i64: 64, 8>}]} {
    %c0 = arith.constant 0 : index
    %c0_0 = arith.constant 0 : index
    %0 = vector.load %arg1[%c0, %c0_0] : memref<64x32xf32, #tpu.memory_space<vmem>>, vector<64x32xf32>
    %c0_1 = arith.constant 0 : index
    %c0_2 = arith.constant 0 : index
    %c0_3 = arith.constant 0 : index
    %1 = vector.load %arg2[%c0_1, %c0_2, %c0_3] : memref<8x64x32xf32, #tpu.memory_space<vmem>>, vector<8x64x32xf32>
    %2 = vector.shape_cast %1 : vector<8x64x32xf32> to vector<512x32xf32>
    %c0_4 = arith.constant 0 : index
    %c0_5 = arith.constant 0 : index
    %3 = vector.load %arg5[%c0_4, %c0_5] : memref<32x32xf32, #tpu.memory_space<vmem>>, vector<32x32xf32>
    %cst = arith.constant dense<0.000000e+00> : vector<512xf32>
    %4 = vector.multi_reduction <add>, %2, %cst [1] : vector<512x32xf32> to vector<512xf32>
    %5 = vector.shape_cast %4 : vector<512xf32> to vector<512x1xf32>
    %cst_6 = arith.constant 3.200000e+01 : f32
    %6 = vector.broadcast %cst_6 : f32 to vector<512x1xf32>
    %7 = arith.divf %5, %6 : vector<512x1xf32>
    %8 = vector.broadcast %7 : vector<512x1xf32> to vector<512x32xf32>
    %9 = arith.subf %2, %8 : vector<512x32xf32>
    %10 = arith.mulf %9, %9 : vector<512x32xf32>
    %cst_7 = arith.constant dense<0.000000e+00> : vector<512xf32>
    %11 = vector.multi_reduction <add>, %10, %cst_7 [1] : vector<512x32xf32> to vector<512xf32>
    %12 = vector.shape_cast %11 : vector<512xf32> to vector<512x1xf32>
    %cst_8 = arith.constant 3.200000e+01 : f32
    %13 = vector.broadcast %cst_8 : f32 to vector<512x1xf32>
    %14 = arith.divf %12, %13 : vector<512x1xf32>
    %15 = vector.broadcast %7 : vector<512x1xf32> to vector<512x32xf32>
    %16 = arith.subf %2, %15 : vector<512x32xf32>
    %cst_9 = arith.constant 9.99999974E-6 : f32
    %17 = vector.broadcast %cst_9 : f32 to vector<512x1xf32>
    %18 = arith.addf %14, %17 : vector<512x1xf32>
    %19 = math.rsqrt %18 : vector<512x1xf32>
    %20 = vector.broadcast %19 : vector<512x1xf32> to vector<512x32xf32>
    %21 = arith.mulf %16, %20 : vector<512x32xf32>
    %c0_10 = arith.constant 0 : index
    %c0_11 = arith.constant 0 : index
    %c0_12 = arith.constant 0 : index
    %22 = vector.load %arg3[%c0_10, %c0_11, %c0_12] : memref<2x32x160xf32, #tpu.memory_space<vmem>>, vector<1x32x160xf32>
    %23 = vector.shape_cast %22 : vector<1x32x160xf32> to vector<32x160xf32>
    %c0_13 = arith.constant 0 : index
    %c0_14 = arith.constant 0 : index
    %c0_15 = arith.constant 0 : index
    %24 = vector.load %arg4[%c0_13, %c0_14, %c0_15] : memref<2x5x32xf32, #tpu.memory_space<vmem>>, vector<1x5x32xf32>
    %25 = vector.shape_cast %24 : vector<1x5x32xf32> to vector<5x32xf32>
    %26 = vector.extract_strided_slice %23 {offsets = [0, 0], sizes = [32, 32], strides = [1, 1]} : vector<32x160xf32> to vector<32x32xf32>
    %27 = vector.extract_strided_slice %23 {offsets = [0, 32], sizes = [32, 32], strides = [1, 1]} : vector<32x160xf32> to vector<32x32xf32>
    %28 = vector.extract_strided_slice %23 {offsets = [0, 64], sizes = [32, 64], strides = [1, 1]} : vector<32x160xf32> to vector<32x64xf32>
    %29 = vector.extract_strided_slice %23 {offsets = [0, 128], sizes = [32, 32], strides = [1, 1]} : vector<32x160xf32> to vector<32x32xf32>
    %30 = vector.extract_strided_slice %25 {offsets = [0, 0], sizes = [1, 32], strides = [1, 1]} : vector<5x32xf32> to vector<1x32xf32>
    %31 = vector.extract_strided_slice %25 {offsets = [1, 0], sizes = [1, 32], strides = [1, 1]} : vector<5x32xf32> to vector<1x32xf32>
    %32 = vector.extract_strided_slice %25 {offsets = [2, 0], sizes = [1, 32], strides = [1, 1]} : vector<5x32xf32> to vector<1x32xf32>
    %33 = vector.extract_strided_slice %25 {offsets = [3, 0], sizes = [1, 32], strides = [1, 1]} : vector<5x32xf32> to vector<1x32xf32>
    %34 = vector.extract_strided_slice %25 {offsets = [4, 0], sizes = [1, 32], strides = [1, 1]} : vector<5x32xf32> to vector<1x32xf32>
    %cst_16 = arith.constant dense<0.000000e+00> : vector<64xf32>
    %35 = vector.multi_reduction <add>, %0, %cst_16 [1] : vector<64x32xf32> to vector<64xf32>
    %36 = vector.shape_cast %35 : vector<64xf32> to vector<64x1xf32>
    %cst_17 = arith.constant 3.200000e+01 : f32
    %37 = vector.broadcast %cst_17 : f32 to vector<64x1xf32>
    %38 = arith.divf %36, %37 : vector<64x1xf32>
    %39 = vector.broadcast %38 : vector<64x1xf32> to vector<64x32xf32>
    %40 = arith.subf %0, %39 : vector<64x32xf32>
    %41 = arith.mulf %40, %40 : vector<64x32xf32>
    %cst_18 = arith.constant dense<0.000000e+00> : vector<64xf32>
    %42 = vector.multi_reduction <add>, %41, %cst_18 [1] : vector<64x32xf32> to vector<64xf32>
    %43 = vector.shape_cast %42 : vector<64xf32> to vector<64x1xf32>
    %cst_19 = arith.constant 3.200000e+01 : f32
    %44 = vector.broadcast %cst_19 : f32 to vector<64x1xf32>
    %45 = arith.divf %43, %44 : vector<64x1xf32>
    %46 = vector.broadcast %38 : vector<64x1xf32> to vector<64x32xf32>
    %47 = arith.subf %0, %46 : vector<64x32xf32>
    %cst_20 = arith.constant 9.99999974E-6 : f32
    %48 = vector.broadcast %cst_20 : f32 to vector<64x1xf32>
    %49 = arith.addf %45, %48 : vector<64x1xf32>
    %50 = math.rsqrt %49 : vector<64x1xf32>
    %51 = vector.broadcast %50 : vector<64x1xf32> to vector<64x32xf32>
    %52 = arith.mulf %47, %51 : vector<64x32xf32>
    %cst_21 = arith.constant dense<0.000000e+00> : vector<64x32xf32>
    %53 = tpu.matmul %52, %26, %cst_21 {dimension_numbers = #tpu.dot_dimension_numbers<[1], [0], [0], [1], [0, 0, 1, 1], [], []>} : vector<64x32xf32>, vector<32x32xf32>, vector<64x32xf32> -> vector<64x32xf32>
    %54 = arith.addf %0, %53 : vector<64x32xf32>
    %55 = vector.broadcast %30 : vector<1x32xf32> to vector<64x32xf32>
    %56 = arith.addf %54, %55 : vector<64x32xf32>
    %cst_22 = arith.constant dense<0.000000e+00> : vector<64xf32>
    %57 = vector.multi_reduction <add>, %56, %cst_22 [1] : vector<64x32xf32> to vector<64xf32>
    %58 = vector.shape_cast %57 : vector<64xf32> to vector<64x1xf32>
    %cst_23 = arith.constant 3.200000e+01 : f32
    %59 = vector.broadcast %cst_23 : f32 to vector<64x1xf32>
    %60 = arith.divf %58, %59 : vector<64x1xf32>
    %61 = vector.broadcast %60 : vector<64x1xf32> to vector<64x32xf32>
    %62 = arith.subf %56, %61 : vector<64x32xf32>
    %63 = arith.mulf %62, %62 : vector<64x32xf32>
    %cst_24 = arith.constant dense<0.000000e+00> : vector<64xf32>
    %64 = vector.multi_reduction <add>, %63, %cst_24 [1] : vector<64x32xf32> to vector<64xf32>
    %65 = vector.shape_cast %64 : vector<64xf32> to vector<64x1xf32>
    %cst_25 = arith.constant 3.200000e+01 : f32
    %66 = vector.broadcast %cst_25 : f32 to vector<64x1xf32>
    %67 = arith.divf %65, %66 : vector<64x1xf32>
    %68 = vector.broadcast %60 : vector<64x1xf32> to vector<64x32xf32>
    %69 = arith.subf %56, %68 : vector<64x32xf32>
    %cst_26 = arith.constant 9.99999974E-6 : f32
    %70 = vector.broadcast %cst_26 : f32 to vector<64x1xf32>
    %71 = arith.addf %67, %70 : vector<64x1xf32>
    %72 = math.rsqrt %71 : vector<64x1xf32>
    %73 = vector.broadcast %72 : vector<64x1xf32> to vector<64x32xf32>
    %74 = arith.mulf %69, %73 : vector<64x32xf32>
    %cst_27 = arith.constant dense<0.000000e+00> : vector<64x32xf32>
    %75 = tpu.matmul %74, %27, %cst_27 {dimension_numbers = #tpu.dot_dimension_numbers<[1], [0], [0], [1], [0, 0, 1, 1], [], []>} : vector<64x32xf32>, vector<32x32xf32>, vector<64x32xf32> -> vector<64x32xf32>
    %76 = vector.broadcast %31 : vector<1x32xf32> to vector<64x32xf32>
    %77 = arith.addf %75, %76 : vector<64x32xf32>
    %cst_28 = arith.constant dense<0.000000e+00> : vector<512x64xf32>
    %78 = tpu.matmul %21, %28, %cst_28 {dimension_numbers = #tpu.dot_dimension_numbers<[1], [0], [0], [1], [0, 0, 1, 1], [], []>} : vector<512x32xf32>, vector<32x64xf32>, vector<512x64xf32> -> vector<512x64xf32>
    %79 = vector.extract_strided_slice %78 {offsets = [0, 0], sizes = [512, 32], strides = [1, 1]} : vector<512x64xf32> to vector<512x32xf32>
    %80 = vector.broadcast %32 : vector<1x32xf32> to vector<512x32xf32>
    %81 = arith.addf %79, %80 : vector<512x32xf32>
    %82 = vector.extract_strided_slice %78 {offsets = [0, 32], sizes = [512, 32], strides = [1, 1]} : vector<512x64xf32> to vector<512x32xf32>
    %83 = vector.broadcast %33 : vector<1x32xf32> to vector<512x32xf32>
    %84 = arith.addf %82, %83 : vector<512x32xf32>
    %85 = tpu.concatenate %77, %77, %77, %77, %77, %77, %77, %77 in 0 : vector<64x32xf32>, vector<64x32xf32>, vector<64x32xf32>, vector<64x32xf32>, vector<64x32xf32>, vector<64x32xf32>, vector<64x32xf32>, vector<64x32xf32> -> vector<512x32xf32>
    %86 = arith.mulf %85, %81 : vector<512x32xf32>
    %cst_29 = arith.constant dense<0.000000e+00> : vector<512x32xf32>
    %87 = tpu.matmul %86, %3, %cst_29 {dimension_numbers = #tpu.dot_dimension_numbers<[1], [0], [0], [1], [0, 0, 1, 1], [], []>} : vector<512x32xf32>, vector<32x32xf32>, vector<512x32xf32> -> vector<512x32xf32>
    %88 = vector.extract_strided_slice %87 {offsets = [0, 0], sizes = [64, 32], strides = [1, 1]} : vector<512x32xf32> to vector<64x32xf32>
    %89 = vector.extract_strided_slice %87 {offsets = [64, 0], sizes = [64, 32], strides = [1, 1]} : vector<512x32xf32> to vector<64x32xf32>
    %90 = arith.maximumf %88, %89 : vector<64x32xf32>
    %91 = vector.extract_strided_slice %87 {offsets = [128, 0], sizes = [64, 32], strides = [1, 1]} : vector<512x32xf32> to vector<64x32xf32>
    %92 = arith.maximumf %90, %91 : vector<64x32xf32>
    %93 = vector.extract_strided_slice %87 {offsets = [192, 0], sizes = [64, 32], strides = [1, 1]} : vector<512x32xf32> to vector<64x32xf32>
    %94 = arith.maximumf %92, %93 : vector<64x32xf32>
    %95 = vector.extract_strided_slice %87 {offsets = [256, 0], sizes = [64, 32], strides = [1, 1]} : vector<512x32xf32> to vector<64x32xf32>
    %96 = arith.maximumf %94, %95 : vector<64x32xf32>
    %97 = vector.extract_strided_slice %87 {offsets = [320, 0], sizes = [64, 32], strides = [1, 1]} : vector<512x32xf32> to vector<64x32xf32>
    %98 = arith.maximumf %96, %97 : vector<64x32xf32>
    %99 = vector.extract_strided_slice %87 {offsets = [384, 0], sizes = [64, 32], strides = [1, 1]} : vector<512x32xf32> to vector<64x32xf32>
    %100 = arith.maximumf %98, %99 : vector<64x32xf32>
    %101 = vector.extract_strided_slice %87 {offsets = [448, 0], sizes = [64, 32], strides = [1, 1]} : vector<512x32xf32> to vector<64x32xf32>
    %102 = arith.maximumf %100, %101 : vector<64x32xf32>
    %cst_30 = arith.constant 0.000000e+00 : f32
    %103 = vector.broadcast %cst_30 : f32 to vector<64x32xf32>
    %cst_31 = arith.constant 0.000000e+00 : f32
    %104 = vector.broadcast %cst_31 : f32 to vector<64x32xf32>
    %105 = vector.extract_strided_slice %87 {offsets = [0, 0], sizes = [64, 32], strides = [1, 1]} : vector<512x32xf32> to vector<64x32xf32>
    %106 = arith.subf %105, %102 : vector<64x32xf32>
    %107 = math.exp %106 : vector<64x32xf32>
    %108 = arith.addf %104, %107 : vector<64x32xf32>
    %109 = vector.extract_strided_slice %84 {offsets = [0, 0], sizes = [64, 32], strides = [1, 1]} : vector<512x32xf32> to vector<64x32xf32>
    %110 = arith.mulf %107, %109 : vector<64x32xf32>
    %111 = arith.addf %103, %110 : vector<64x32xf32>
    %112 = vector.extract_strided_slice %87 {offsets = [64, 0], sizes = [64, 32], strides = [1, 1]} : vector<512x32xf32> to vector<64x32xf32>
    %113 = arith.subf %112, %102 : vector<64x32xf32>
    %114 = math.exp %113 : vector<64x32xf32>
    %115 = arith.addf %108, %114 : vector<64x32xf32>
    %116 = vector.extract_strided_slice %84 {offsets = [64, 0], sizes = [64, 32], strides = [1, 1]} : vector<512x32xf32> to vector<64x32xf32>
    %117 = arith.mulf %114, %116 : vector<64x32xf32>
    %118 = arith.addf %111, %117 : vector<64x32xf32>
    %119 = vector.extract_strided_slice %87 {offsets = [128, 0], sizes = [64, 32], strides = [1, 1]} : vector<512x32xf32> to vector<64x32xf32>
    %120 = arith.subf %119, %102 : vector<64x32xf32>
    %121 = math.exp %120 : vector<64x32xf32>
    %122 = arith.addf %115, %121 : vector<64x32xf32>
    %123 = vector.extract_strided_slice %84 {offsets = [128, 0], sizes = [64, 32], strides = [1, 1]} : vector<512x32xf32> to vector<64x32xf32>
    %124 = arith.mulf %121, %123 : vector<64x32xf32>
    %125 = arith.addf %118, %124 : vector<64x32xf32>
    %126 = vector.extract_strided_slice %87 {offsets = [192, 0], sizes = [64, 32], strides = [1, 1]} : vector<512x32xf32> to vector<64x32xf32>
    %127 = arith.subf %126, %102 : vector<64x32xf32>
    %128 = math.exp %127 : vector<64x32xf32>
    %129 = arith.addf %122, %128 : vector<64x32xf32>
    %130 = vector.extract_strided_slice %84 {offsets = [192, 0], sizes = [64, 32], strides = [1, 1]} : vector<512x32xf32> to vector<64x32xf32>
    %131 = arith.mulf %128, %130 : vector<64x32xf32>
    %132 = arith.addf %125, %131 : vector<64x32xf32>
    %133 = vector.extract_strided_slice %87 {offsets = [256, 0], sizes = [64, 32], strides = [1, 1]} : vector<512x32xf32> to vector<64x32xf32>
    %134 = arith.subf %133, %102 : vector<64x32xf32>
    %135 = math.exp %134 : vector<64x32xf32>
    %136 = arith.addf %129, %135 : vector<64x32xf32>
    %137 = vector.extract_strided_slice %84 {offsets = [256, 0], sizes = [64, 32], strides = [1, 1]} : vector<512x32xf32> to vector<64x32xf32>
    %138 = arith.mulf %135, %137 : vector<64x32xf32>
    %139 = arith.addf %132, %138 : vector<64x32xf32>
    %140 = vector.extract_strided_slice %87 {offsets = [320, 0], sizes = [64, 32], strides = [1, 1]} : vector<512x32xf32> to vector<64x32xf32>
    %141 = arith.subf %140, %102 : vector<64x32xf32>
    %142 = math.exp %141 : vector<64x32xf32>
    %143 = arith.addf %136, %142 : vector<64x32xf32>
    %144 = vector.extract_strided_slice %84 {offsets = [320, 0], sizes = [64, 32], strides = [1, 1]} : vector<512x32xf32> to vector<64x32xf32>
    %145 = arith.mulf %142, %144 : vector<64x32xf32>
    %146 = arith.addf %139, %145 : vector<64x32xf32>
    %147 = vector.extract_strided_slice %87 {offsets = [384, 0], sizes = [64, 32], strides = [1, 1]} : vector<512x32xf32> to vector<64x32xf32>
    %148 = arith.subf %147, %102 : vector<64x32xf32>
    %149 = math.exp %148 : vector<64x32xf32>
    %150 = arith.addf %143, %149 : vector<64x32xf32>
    %151 = vector.extract_strided_slice %84 {offsets = [384, 0], sizes = [64, 32], strides = [1, 1]} : vector<512x32xf32> to vector<64x32xf32>
    %152 = arith.mulf %149, %151 : vector<64x32xf32>
    %153 = arith.addf %146, %152 : vector<64x32xf32>
    %154 = vector.extract_strided_slice %87 {offsets = [448, 0], sizes = [64, 32], strides = [1, 1]} : vector<512x32xf32> to vector<64x32xf32>
    %155 = arith.subf %154, %102 : vector<64x32xf32>
    %156 = math.exp %155 : vector<64x32xf32>
    %157 = arith.addf %150, %156 : vector<64x32xf32>
    %158 = vector.extract_strided_slice %84 {offsets = [448, 0], sizes = [64, 32], strides = [1, 1]} : vector<512x32xf32> to vector<64x32xf32>
    %159 = arith.mulf %156, %158 : vector<64x32xf32>
    %160 = arith.addf %153, %159 : vector<64x32xf32>
    %161 = tpu.reciprocal %157 {approx = true} : vector<64x32xf32> -> vector<64x32xf32>
    %162 = arith.mulf %160, %161 : vector<64x32xf32>
    %cst_32 = arith.constant dense<0.000000e+00> : vector<64x32xf32>
    %163 = tpu.matmul %162, %29, %cst_32 {dimension_numbers = #tpu.dot_dimension_numbers<[1], [0], [0], [1], [0, 0, 1, 1], [], []>} : vector<64x32xf32>, vector<32x32xf32>, vector<64x32xf32> -> vector<64x32xf32>
    %164 = arith.addf %56, %163 : vector<64x32xf32>
    %165 = vector.broadcast %34 : vector<1x32xf32> to vector<64x32xf32>
    %166 = arith.addf %164, %165 : vector<64x32xf32>
    %c1 = arith.constant 1 : index
    %c0_33 = arith.constant 0 : index
    %c0_34 = arith.constant 0 : index
    %167 = vector.load %arg3[%c1, %c0_33, %c0_34] : memref<2x32x160xf32, #tpu.memory_space<vmem>>, vector<1x32x160xf32>
    %168 = vector.shape_cast %167 : vector<1x32x160xf32> to vector<32x160xf32>
    %c1_35 = arith.constant 1 : index
    %c0_36 = arith.constant 0 : index
    %c0_37 = arith.constant 0 : index
    %169 = vector.load %arg4[%c1_35, %c0_36, %c0_37] : memref<2x5x32xf32, #tpu.memory_space<vmem>>, vector<1x5x32xf32>
    %170 = vector.shape_cast %169 : vector<1x5x32xf32> to vector<5x32xf32>
    %171 = vector.extract_strided_slice %168 {offsets = [0, 0], sizes = [32, 32], strides = [1, 1]} : vector<32x160xf32> to vector<32x32xf32>
    %172 = vector.extract_strided_slice %168 {offsets = [0, 32], sizes = [32, 32], strides = [1, 1]} : vector<32x160xf32> to vector<32x32xf32>
    %173 = vector.extract_strided_slice %168 {offsets = [0, 64], sizes = [32, 64], strides = [1, 1]} : vector<32x160xf32> to vector<32x64xf32>
    %174 = vector.extract_strided_slice %170 {offsets = [0, 0], sizes = [1, 32], strides = [1, 1]} : vector<5x32xf32> to vector<1x32xf32>
    %175 = vector.extract_strided_slice %170 {offsets = [1, 0], sizes = [1, 32], strides = [1, 1]} : vector<5x32xf32> to vector<1x32xf32>
    %176 = vector.extract_strided_slice %170 {offsets = [2, 0], sizes = [1, 32], strides = [1, 1]} : vector<5x32xf32> to vector<1x32xf32>
    %cst_38 = arith.constant dense<0.000000e+00> : vector<64xf32>
    %177 = vector.multi_reduction <add>, %166, %cst_38 [1] : vector<64x32xf32> to vector<64xf32>
    %178 = vector.shape_cast %177 : vector<64xf32> to vector<64x1xf32>
    %cst_39 = arith.constant 3.200000e+01 : f32
    %179 = vector.broadcast %cst_39 : f32 to vector<64x1xf32>
    %180 = arith.divf %178, %179 : vector<64x1xf32>
    %181 = vector.broadcast %180 : vector<64x1xf32> to vector<64x32xf32>
    %182 = arith.subf %166, %181 : vector<64x32xf32>
    %183 = arith.mulf %182, %182 : vector<64x32xf32>
    %cst_40 = arith.constant dense<0.000000e+00> : vector<64xf32>
    %184 = vector.multi_reduction <add>, %183, %cst_40 [1] : vector<64x32xf32> to vector<64xf32>
    %185 = vector.shape_cast %184 : vector<64xf32> to vector<64x1xf32>
    %cst_41 = arith.constant 3.200000e+01 : f32
    %186 = vector.broadcast %cst_41 : f32 to vector<64x1xf32>
    %187 = arith.divf %185, %186 : vector<64x1xf32>
    %188 = vector.broadcast %180 : vector<64x1xf32> to vector<64x32xf32>
    %189 = arith.subf %166, %188 : vector<64x32xf32>
    %cst_42 = arith.constant 9.99999974E-6 : f32
    %190 = vector.broadcast %cst_42 : f32 to vector<64x1xf32>
    %191 = arith.addf %187, %190 : vector<64x1xf32>
    %192 = math.rsqrt %191 : vector<64x1xf32>
    %193 = vector.broadcast %192 : vector<64x1xf32> to vector<64x32xf32>
    %194 = arith.mulf %189, %193 : vector<64x32xf32>
    %cst_43 = arith.constant dense<0.000000e+00> : vector<64x32xf32>
    %195 = tpu.matmul %194, %171, %cst_43 {dimension_numbers = #tpu.dot_dimension_numbers<[1], [0], [0], [1], [0, 0, 1, 1], [], []>} : vector<64x32xf32>, vector<32x32xf32>, vector<64x32xf32> -> vector<64x32xf32>
    %196 = arith.addf %166, %195 : vector<64x32xf32>
    %197 = vector.broadcast %174 : vector<1x32xf32> to vector<64x32xf32>
    %198 = arith.addf %196, %197 : vector<64x32xf32>
    %cst_44 = arith.constant dense<0.000000e+00> : vector<64xf32>
    %199 = vector.multi_reduction <add>, %198, %cst_44 [1] : vector<64x32xf32> to vector<64xf32>
    %200 = vector.shape_cast %199 : vector<64xf32> to vector<64x1xf32>
    %cst_45 = arith.constant 3.200000e+01 : f32
    %201 = vector.broadcast %cst_45 : f32 to vector<64x1xf32>
    %202 = arith.divf %200, %201 : vector<64x1xf32>
    %203 = vector.broadcast %202 : vector<64x1xf32> to vector<64x32xf32>
    %204 = arith.subf %198, %203 : vector<64x32xf32>
    %205 = arith.mulf %204, %204 : vector<64x32xf32>
    %cst_46 = arith.constant dense<0.000000e+00> : vector<64xf32>
    %206 = vector.multi_reduction <add>, %205, %cst_46 [1] : vector<64x32xf32> to vector<64xf32>
    %207 = vector.shape_cast %206 : vector<64xf32> to vector<64x1xf32>
    %cst_47 = arith.constant 3.200000e+01 : f32
    %208 = vector.broadcast %cst_47 : f32 to vector<64x1xf32>
    %209 = arith.divf %207, %208 : vector<64x1xf32>
    %210 = vector.broadcast %202 : vector<64x1xf32> to vector<64x32xf32>
    %211 = arith.subf %198, %210 : vector<64x32xf32>
    %cst_48 = arith.constant 9.99999974E-6 : f32
    %212 = vector.broadcast %cst_48 : f32 to vector<64x1xf32>
    %213 = arith.addf %209, %212 : vector<64x1xf32>
    %214 = math.rsqrt %213 : vector<64x1xf32>
    %215 = vector.broadcast %214 : vector<64x1xf32> to vector<64x32xf32>
    %216 = arith.mulf %211, %215 : vector<64x32xf32>
    %cst_49 = arith.constant dense<0.000000e+00> : vector<64x32xf32>
    %217 = tpu.matmul %216, %172, %cst_49 {dimension_numbers = #tpu.dot_dimension_numbers<[1], [0], [0], [1], [0, 0, 1, 1], [], []>} : vector<64x32xf32>, vector<32x32xf32>, vector<64x32xf32> -> vector<64x32xf32>
    %218 = vector.broadcast %175 : vector<1x32xf32> to vector<64x32xf32>
    %219 = arith.addf %217, %218 : vector<64x32xf32>
    %cst_50 = arith.constant dense<0.000000e+00> : vector<512x64xf32>
    %220 = tpu.matmul %21, %173, %cst_50 {dimension_numbers = #tpu.dot_dimension_numbers<[1], [0], [0], [1], [0, 0, 1, 1], [], []>} : vector<512x32xf32>, vector<32x64xf32>, vector<512x64xf32> -> vector<512x64xf32>
    %221 = vector.extract_strided_slice %220 {offsets = [0, 0], sizes = [512, 32], strides = [1, 1]} : vector<512x64xf32> to vector<512x32xf32>
    %222 = vector.broadcast %176 : vector<1x32xf32> to vector<512x32xf32>
    %223 = arith.addf %221, %222 : vector<512x32xf32>
    %224 = tpu.concatenate %219, %219, %219, %219, %219, %219, %219, %219 in 0 : vector<64x32xf32>, vector<64x32xf32>, vector<64x32xf32>, vector<64x32xf32>, vector<64x32xf32>, vector<64x32xf32>, vector<64x32xf32>, vector<64x32xf32> -> vector<512x32xf32>
    %225 = arith.mulf %224, %223 : vector<512x32xf32>
    %226 = vector.extract_strided_slice %225 {offsets = [0, 0], sizes = [64, 32], strides = [1, 1]} : vector<512x32xf32> to vector<64x32xf32>
    %cst_51 = arith.constant dense<0.000000e+00> : vector<64xf32>
    %227 = vector.multi_reduction <add>, %226, %cst_51 [1] : vector<64x32xf32> to vector<64xf32>
    %228 = vector.shape_cast %227 : vector<64xf32> to vector<64x1xf32>
    %229 = vector.extract_strided_slice %225 {offsets = [64, 0], sizes = [64, 32], strides = [1, 1]} : vector<512x32xf32> to vector<64x32xf32>
    %cst_52 = arith.constant dense<0.000000e+00> : vector<64xf32>
    %230 = vector.multi_reduction <add>, %229, %cst_52 [1] : vector<64x32xf32> to vector<64xf32>
    %231 = vector.shape_cast %230 : vector<64xf32> to vector<64x1xf32>
    %232 = vector.extract_strided_slice %225 {offsets = [128, 0], sizes = [64, 32], strides = [1, 1]} : vector<512x32xf32> to vector<64x32xf32>
    %cst_53 = arith.constant dense<0.000000e+00> : vector<64xf32>
    %233 = vector.multi_reduction <add>, %232, %cst_53 [1] : vector<64x32xf32> to vector<64xf32>
    %234 = vector.shape_cast %233 : vector<64xf32> to vector<64x1xf32>
    %235 = vector.extract_strided_slice %225 {offsets = [192, 0], sizes = [64, 32], strides = [1, 1]} : vector<512x32xf32> to vector<64x32xf32>
    %cst_54 = arith.constant dense<0.000000e+00> : vector<64xf32>
    %236 = vector.multi_reduction <add>, %235, %cst_54 [1] : vector<64x32xf32> to vector<64xf32>
    %237 = vector.shape_cast %236 : vector<64xf32> to vector<64x1xf32>
    %238 = vector.extract_strided_slice %225 {offsets = [256, 0], sizes = [64, 32], strides = [1, 1]} : vector<512x32xf32> to vector<64x32xf32>
    %cst_55 = arith.constant dense<0.000000e+00> : vector<64xf32>
    %239 = vector.multi_reduction <add>, %238, %cst_55 [1] : vector<64x32xf32> to vector<64xf32>
    %240 = vector.shape_cast %239 : vector<64xf32> to vector<64x1xf32>
    %241 = vector.extract_strided_slice %225 {offsets = [320, 0], sizes = [64, 32], strides = [1, 1]} : vector<512x32xf32> to vector<64x32xf32>
    %cst_56 = arith.constant dense<0.000000e+00> : vector<64xf32>
    %242 = vector.multi_reduction <add>, %241, %cst_56 [1] : vector<64x32xf32> to vector<64xf32>
    %243 = vector.shape_cast %242 : vector<64xf32> to vector<64x1xf32>
    %244 = vector.extract_strided_slice %225 {offsets = [384, 0], sizes = [64, 32], strides = [1, 1]} : vector<512x32xf32> to vector<64x32xf32>
    %cst_57 = arith.constant dense<0.000000e+00> : vector<64xf32>
    %245 = vector.multi_reduction <add>, %244, %cst_57 [1] : vector<64x32xf32> to vector<64xf32>
    %246 = vector.shape_cast %245 : vector<64xf32> to vector<64x1xf32>
    %247 = vector.extract_strided_slice %225 {offsets = [448, 0], sizes = [64, 32], strides = [1, 1]} : vector<512x32xf32> to vector<64x32xf32>
    %cst_58 = arith.constant dense<0.000000e+00> : vector<64xf32>
    %248 = vector.multi_reduction <add>, %247, %cst_58 [1] : vector<64x32xf32> to vector<64xf32>
    %249 = vector.shape_cast %248 : vector<64xf32> to vector<64x1xf32>
    %250 = tpu.concatenate %228, %231, %234, %237, %240, %243, %246, %249 in 1 : vector<64x1xf32>, vector<64x1xf32>, vector<64x1xf32>, vector<64x1xf32>, vector<64x1xf32>, vector<64x1xf32>, vector<64x1xf32>, vector<64x1xf32> -> vector<64x8xf32>
    %c0_59 = arith.constant 0 : index
    %c0_60 = arith.constant 0 : index
    %251 = vector.load %arg6[%c0_59, %c0_60] : memref<64x8xf32, #tpu.memory_space<vmem>>, vector<64x8xf32>
    tpu.vector_store %arg6[%c0_59, %c0_60], %250 {strides = array<i32>} : memref<64x8xf32, #tpu.memory_space<vmem>>, vector<64x8xf32>,
    return
  }
  func.func @transform_0(%arg0: i32) -> (i32, i32) {
    %c0_i32 = arith.constant 0 : i32
    %c0_i32_0 = arith.constant 0 : i32
    return %arg0, %c0_i32 : i32, i32
  }
  func.func @transform_1(%arg0: i32) -> (i32, i32, i32) {
    %c0_i32 = arith.constant 0 : i32
    %c0_i32_0 = arith.constant 0 : i32
    %c0_i32_1 = arith.constant 0 : i32
    return %c0_i32, %arg0, %c0_i32_0 : i32, i32, i32
  }
  func.func @transform_2(%arg0: i32) -> (i32, i32, i32) {
    %c0_i32 = arith.constant 0 : i32
    %c0_i32_0 = arith.constant 0 : i32
    %c0_i32_1 = arith.constant 0 : i32
    %c0_i32_2 = arith.constant 0 : i32
    return %c0_i32, %c0_i32_0, %c0_i32_1 : i32, i32, i32
  }
  func.func @transform_3(%arg0: i32) -> (i32, i32, i32) {
    %c0_i32 = arith.constant 0 : i32
    %c0_i32_0 = arith.constant 0 : i32
    %c0_i32_1 = arith.constant 0 : i32
    %c0_i32_2 = arith.constant 0 : i32
    return %c0_i32, %c0_i32_0, %c0_i32_1 : i32, i32, i32
  }
  func.func @transform_4(%arg0: i32) -> (i32, i32) {
    %c0_i32 = arith.constant 0 : i32
    %c0_i32_0 = arith.constant 0 : i32
    %c0_i32_1 = arith.constant 0 : i32
    return %c0_i32, %c0_i32_0 : i32, i32
  }
  func.func @transform_5(%arg0: i32) -> (i32, i32) {
    %c0_i32 = arith.constant 0 : i32
    %c0_i32_0 = arith.constant 0 : i32
    return %arg0, %c0_i32 : i32, i32
  }
}

</mosaic_0001>

<llo_original>
// kernel: tpu_custom_call.1
$region0: #{tpu_custom_call.1}
  #allocation0 [shape = 'u32[]', space=smem, size = 0x4, offset = 0x4, fixed_abs, tag = 'smem constant byte address 0x4 - core index']
  #allocation1 [shape = 'u32[144,128]{1,0:T(1,128)}', space=vmem, size = 0x12000, scoped, tag = 'internal scratch']
  %s0 = inlined_call_operand.vmem [shape: f32[128,32], index: 0, kind: input, shape index: {}]
  %s1 = inlined_call_operand.vmem [shape: f32[8,128,32], index: 1, kind: input, shape index: {}]
  %s2 = inlined_call_operand.vmem [shape: f32[2,32,160], index: 2, kind: input, shape index: {}]
  %s3 = inlined_call_operand.vmem [shape: f32[2,5,32], index: 3, kind: input, shape index: {}]
  %s4 = inlined_call_operand.vmem [shape: f32[32,32], index: 4, kind: input, shape index: {}]
  %s5 = inlined_call_operand.vmem [shape: f32[128,8], index: 5, kind: output, shape index: {}]
  %s6 = sld [smem:[#allocation0]]
  $region91: #{tpu_custom_call.1} parent=0
    _
  %s8 = ssub.s32 1, %s6
  %s9 = scalar_select 0, %s8, %s6
  $region1: #{tpu_custom_call.1} parent=0
    #allocation2 [shape = 'u8[524288]{0}', space=vmem, size = 0x80000, scoped, tag = 'input window, operand 1']
    loop: start=0, step=1, limit=4
    $region2: #{tpu_custom_call.1} parent=1 // loop_pre_header
      _
    $region3: #{tpu_custom_call.1} parent=1 // loop_header
      %s11 = sphi 0, %s15
      %p12 = scmp.ge.s32.totalorder %s11, 4
      %s21 = sphi 0, %s23
      %s24 = sphi 0, %s21
      %s25 = sphi 0, %s24
      %s41 = sphi 0, %s25
      %s47 = sphi 0, %s49
      %s50 = sphi 0, %s47
      %s51 = sphi 0, %s50
      %s67 = sphi 0, %s51
      %s71 = sphi 0, %s71
      %s73 = sphi 0, %s71
      %s74 = sphi 0, %s73
      %s88 = sphi 0, %s74
      %s92 = sphi 0, %s92
      %s94 = sphi 0, %s92
      %s95 = sphi 0, %s94
      %s109 = sphi 0, %s95
      %s113 = sphi 0, %s113
      %s115 = sphi 0, %s113
      %s116 = sphi 0, %s115
      %s130 = sphi 0, %s116
      %s136 = sphi 0, %s138
      %s139 = sphi 0, %s136
      %s140 = sphi 0, %s139
      %s156 = sphi 0, %s140
    $region4: #{tpu_custom_call.1} parent=1 // loop_header_branch
      %14 = sbr.rel (%p12) target = $region8
    $region5: #{tpu_custom_call.1} parent=1 // loop_body
      %s16 = ssub.s32 %s11, 1
      %s17 = ssub.s32 %s11, 2
      %s18 = sadd.s32 %s11, 1
      %s19 = ssub.s32 %s11, %s18
      %p20 = scmp.eq.s32.totalorder %s19, 0
      %s22 = sadd.s32 %s21, 1
      %s23 = scalar_select %p20, %s21, %s22
      %p26 = pneg %p20
      %p27 = scmp.eq.s32.totalorder %s11, 1
      %p28 = por %p26, %p27
      %p29 = scmp.ne.s32.totalorder %s21, %s24
      %p30 = scmp.eq.s32.totalorder %s11, 0
      %p31 = por %p29, %p30
      %p32 = scmp.ne.s32.totalorder %s21, %s24
      %p33 = scmp.eq.s32.totalorder %s16, 1
      %p34 = por %p32, %p33
      %p35 = scmp.ne.s32.totalorder %s24, %s25
      %p36 = scmp.eq.s32.totalorder %s16, 0
      %p37 = por %p35, %p36
      %p38 = scmp.ne.s32.totalorder %s24, %s25
      %p39 = scmp.eq.s32.totalorder %s17, 1
      %p40 = por %p38, %p39
      %p42 = scmp.ne.s32.totalorder %s25, %s41
      %p43 = scmp.eq.s32.totalorder %s17, 0
      %p44 = por %p42, %p43
      %s45 = ssub.s32 %s11, %s18
      %p46 = scmp.eq.s32.totalorder %s45, 0
      %s48 = sadd.s32 %s47, 1
      %s49 = scalar_select %p46, %s47, %s48
      %p52 = pneg %p46
      %p53 = scmp.eq.s32.totalorder %s11, 1
      %p54 = por %p52, %p53
      %p55 = scmp.ne.s32.totalorder %s47, %s50
      %p56 = scmp.eq.s32.totalorder %s11, 0
      %p57 = por %p55, %p56
      %p58 = scmp.ne.s32.totalorder %s47, %s50
      %p59 = scmp.eq.s32.totalorder %s16, 1
      %p60 = por %p58, %p59
      %p61 = scmp.ne.s32.totalorder %s50, %s51
      %p62 = scmp.eq.s32.totalorder %s16, 0
      %p63 = por %p61, %p62
      %p64 = scmp.ne.s32.totalorder %s50, %s51
      %p65 = scmp.eq.s32.totalorder %s17, 1
      %p66 = por %p64, %p65
      %p68 = scmp.ne.s32.totalorder %s51, %s67
      %p69 = scmp.eq.s32.totalorder %s17, 0
      %p70 = por %p68, %p69
      %s72 = sadd.s32 %s71, 1
      %p75 = scmp.eq.s32.totalorder %s11, 1
      %p76 = scmp.ne.s32.totalorder %s71, %s73
      %p77 = scmp.eq.s32.totalorder %s11, 0
      %p78 = por %p76, %p77
      %p79 = scmp.ne.s32.totalorder %s71, %s73
      %p80 = scmp.eq.s32.totalorder %s16, 1
      %p81 = por %p79, %p80
      %p82 = scmp.ne.s32.totalorder %s73, %s74
      %p83 = scmp.eq.s32.totalorder %s16, 0
      %p84 = por %p82, %p83
      %p85 = scmp.ne.s32.totalorder %s73, %s74
      %p86 = scmp.eq.s32.totalorder %s17, 1
      %p87 = por %p85, %p86
      %p89 = scmp.ne.s32.totalorder %s74, %s88
      %p90 = scmp.eq.s32.totalorder %s17, 0
      %p91 = por %p89, %p90
      %s93 = sadd.s32 %s92, 1
      %p96 = scmp.eq.s32.totalorder %s11, 1
      %p97 = scmp.ne.s32.totalorder %s92, %s94
      %p98 = scmp.eq.s32.totalorder %s11, 0
      %p99 = por %p97, %p98
      %p100 = scmp.ne.s32.totalorder %s92, %s94
      %p101 = scmp.eq.s32.totalorder %s16, 1
      %p102 = por %p100, %p101
      %p103 = scmp.ne.s32.totalorder %s94, %s95
      %p104 = scmp.eq.s32.totalorder %s16, 0
      %p105 = por %p103, %p104
      %p106 = scmp.ne.s32.totalorder %s94, %s95
      %p107 = scmp.eq.s32.totalorder %s17, 1
      %p108 = por %p106, %p107
      %p110 = scmp.ne.s32.totalorder %s95, %s109
      %p111 = scmp.eq.s32.totalorder %s17, 0
      %p112 = por %p110, %p111
      %s114 = sadd.s32 %s113, 1
      %p117 = scmp.eq.s32.totalorder %s11, 1
      %p118 = scmp.ne.s32.totalorder %s113, %s115
      %p119 = scmp.eq.s32.totalorder %s11, 0
      %p120 = por %p118, %p119
      %p121 = scmp.ne.s32.totalorder %s113, %s115
      %p122 = scmp.eq.s32.totalorder %s16, 1
      %p123 = por %p121, %p122
      %p124 = scmp.ne.s32.totalorder %s115, %s116
      %p125 = scmp.eq.s32.totalorder %s16, 0
      %p126 = por %p124, %p125
      %p127 = scmp.ne.s32.totalorder %s115, %s116
      %p128 = scmp.eq.s32.totalorder %s17, 1
      %p129 = por %p127, %p128
      %p131 = scmp.ne.s32.totalorder %s116, %s130
      %p132 = scmp.eq.s32.totalorder %s17, 0
      %p133 = por %p131, %p132
      %s134 = ssub.s32 %s11, %s18
      %p135 = scmp.eq.s32.totalorder %s134, 0
      %s137 = sadd.s32 %s136, 1
      %s138 = scalar_select %p135, %s136, %s137
      %p141 = pneg %p135
      %p142 = scmp.eq.s32.totalorder %s11, 1
      %p143 = por %p141, %p142
      %p144 = scmp.ne.s32.totalorder %s136, %s139
      %p145 = scmp.eq.s32.totalorder %s11, 0
      %p146 = por %p144, %p145
      %p147 = scmp.ne.s32.totalorder %s136, %s139
      %p148 = scmp.eq.s32.totalorder %s16, 1
      %p149 = por %p147, %p148
      %p150 = scmp.ne.s32.totalorder %s139, %s140
      %p151 = scmp.eq.s32.totalorder %s16, 0
      %p152 = por %p150, %p151
      %p153 = scmp.ne.s32.totalorder %s139, %s140
      %p154 = scmp.eq.s32.totalorder %s17, 1
      %p155 = por %p153, %p154
      %p157 = scmp.ne.s32.totalorder %s140, %s156
      %p158 = scmp.eq.s32.totalorder %s17, 0
      %p159 = por %p157, %p158
      %p160 = scmp.le.s32.totalorder 1, %s11
      %p161 = scmp.lt.s32.totalorder %s11, 3
      %p162 = pnand %p160, %p161
      %p163 = pneg %p162
      // Predicated region
      $region9: #{tpu_custom_call.1} parent=5 // pred_check
        _
      $region10: #{tpu_custom_call.1} parent=5 // pred_check_branch
        %165 = sbr.rel (%p162) target = $region12
      $region11: #{tpu_custom_call.1} parent=5 // pred_region
        %s166 = ssub.s32 %s11, 1
        // Predicated region
        $region13: #{tpu_custom_call.1} parent=11 // pred_check
          %p167 = pneg %p84
        $region14: #{tpu_custom_call.1} parent=11 // pred_check_branch
          %169 = sbr.rel (%p167) target = $region16
        $region15: #{tpu_custom_call.1} parent=11 // pred_region
          _
        $region16: #{tpu_custom_call.1} parent=11 // pred_fallthru
          _
        // Predicated region
        $region17: #{tpu_custom_call.1} parent=11 // pred_check
          %p170 = pneg %p105
        $region18: #{tpu_custom_call.1} parent=11 // pred_check_branch
          %172 = sbr.rel (%p170) target = $region20
        $region19: #{tpu_custom_call.1} parent=11 // pred_region
          _
        $region20: #{tpu_custom_call.1} parent=11 // pred_fallthru
          _
        // Predicated region
        $region21: #{tpu_custom_call.1} parent=11 // pred_check
          %p173 = pneg %p126
        $region22: #{tpu_custom_call.1} parent=11 // pred_check_branch
          %175 = sbr.rel (%p173) target = $region24
        $region23: #{tpu_custom_call.1} parent=11 // pred_region
          _
        $region24: #{tpu_custom_call.1} parent=11 // pred_fallthru
          _
      $region12: #{tpu_custom_call.1} parent=5 // pred_fallthru
        _
      %p176 = scmp.lt.s32.totalorder %s11, 2
      // Predicated region
      $region25: #{tpu_custom_call.1} parent=5 // pred_check
        %p177 = pneg %p176
      $region26: #{tpu_custom_call.1} parent=5 // pred_check_branch
        %179 = sbr.rel (%p177) target = $region28
      $region27: #{tpu_custom_call.1} parent=5 // pred_region
        // Predicated region
        $region29: #{tpu_custom_call.1} parent=27 // pred_check
          %p180 = pneg %p31
        $region30: #{tpu_custom_call.1} parent=27 // pred_check_branch
          %182 = sbr.rel (%p180) target = $region32
        $region31: #{tpu_custom_call.1} parent=27 // pred_region
          %s183 = smul.u32 8, %s11
          %p184 = scmp.lt.s32.totalorder %s183, 15
          %s185 = scalar_select %p184, %s183, 15
          %s186 = smul.addr %s185, 8
          %s187 = scalar_lea.vmem %s0, %s186
          %s188 = smul.u32 8, %s11
        $region32: #{tpu_custom_call.1} parent=27 // pred_fallthru
          _
        // Predicated region
        $region33: #{tpu_custom_call.1} parent=27 // pred_check
          %p189 = pneg %p57
        $region34: #{tpu_custom_call.1} parent=27 // pred_check_branch
          %191 = sbr.rel (%p189) target = $region36
        $region35: #{tpu_custom_call.1} parent=27 // pred_region
          %s192 = sand.u32 %s47, 1
          %s193 = sand.u32 %s47, 1
          %s194 = smul.addr %s193, 512
          %s195 = scalar_lea.vmem [#allocation2], %s194
          %s196 = smul.u32 8, %s11
          %s197 = smul.addr %s196, 8
          %s198 = scalar_lea.vmem %s1, %s197
          // Predicated region
          $region37: #{tpu_custom_call.1} parent=35 // pred_check
            _
          $region38: #{tpu_custom_call.1} parent=35 // pred_check_branch
            %200 = sbr.rel (0) target = $region40
          $region39: #{tpu_custom_call.1} parent=35 // pred_region
            // Predicated region
            $region41: #{tpu_custom_call.1} parent=39 // pred_check
              _
            $region42: #{tpu_custom_call.1} parent=39 // pred_check_branch
              %202 = sbr.rel (0) target = $region44
            $region43: #{tpu_custom_call.1} parent=39 // pred_region
              // Predicated region
              $region56: #{tpu_custom_call.1} parent=43 // pred_check
                _
              $region57: #{tpu_custom_call.1} parent=43 // pred_check_branch
                %343 = sbr.rel (0) target = $region59
              $region58: #{tpu_custom_call.1} parent=43 // pred_region
                loop: start=0, step=1, limit=1
                $region60: #{tpu_custom_call.1} parent=58 // loop_pre_header
                  _
                $region61: #{tpu_custom_call.1} parent=58 // loop_header
                  %s345 = sphi 0, %s349
                  %p346 = scmp.ge.s32.totalorder %s345, 1
                  %s350 = sphi %s198, %s198
                  %s351 = sphi %s195, %s195
                $region62: #{tpu_custom_call.1} parent=58 // loop_header_branch
                  %348 = sbr.rel (%p346) target = $region66
                $region63: #{tpu_custom_call.1} parent=58 // loop_body
                  %v352 = vld [vmem:[%s350] sm:$0xff]
                  %353 = vst [vmem:[%s351] sm:$0xff] %v352
                  %v354 = vld [vmem:[%s350 + $0x8] sm:$0xff]
                  %355 = vst [vmem:[%s351 + $0x8] sm:$0xff] %v354
                  %v356 = vld [vmem:[%s350 + $0x10] sm:$0xff]
                  %357 = vst [vmem:[%s351 + $0x10] sm:$0xff] %v356
                  %v358 = vld [vmem:[%s350 + $0x18] sm:$0xff]
                  %359 = vst [vmem:[%s351 + $0x18] sm:$0xff] %v358
                  %v360 = vld [vmem:[%s350 + $0x20] sm:$0xff]
                  %361 = vst [vmem:[%s351 + $0x20] sm:$0xff] %v360
                  %v362 = vld [vmem:[%s350 + $0x28] sm:$0xff]
                  %363 = vst [vmem:[%s351 + $0x28] sm:$0xff] %v362
                  %v364 = vld [vmem:[%s350 + $0x30] sm:$0xff]
                  %365 = vst [vmem:[%s351 + $0x30] sm:$0xff] %v364
                  %v366 = vld [vmem:[%s350 + $0x38] sm:$0xff]
                  %367 = vst [vmem:[%s351 + $0x38] sm:$0xff] %v366
                  %v368 = vld [vmem:[%s350 + $0x80] sm:$0xff]
                  %369 = vst [vmem:[%s351 + $0x40] sm:$0xff] %v368
                  %v370 = vld [vmem:[%s350 + $0x88] sm:$0xff]
                  %371 = vst [vmem:[%s351 + $0x48] sm:$0xff] %v370
                  %v372 = vld [vmem:[%s350 + $0x90] sm:$0xff]
                  %373 = vst [vmem:[%s351 + $0x50] sm:$0xff] %v372
                  %v374 = vld [vmem:[%s350 + $0x98] sm:$0xff]
                  %375 = vst [vmem:[%s351 + $0x58] sm:$0xff] %v374
                  %v376 = vld [vmem:[%s350 + $0xa0] sm:$0xff]
                  %377 = vst [vmem:[%s351 + $0x60] sm:$0xff] %v376
                  %v378 = vld [vmem:[%s350 + $0xa8] sm:$0xff]
                  %379 = vst [vmem:[%s351 + $0x68] sm:$0xff] %v378
                  %v380 = vld [vmem:[%s350 + $0xb0] sm:$0xff]
                  %381 = vst [vmem:[%s351 + $0x70] sm:$0xff] %v380
                  %v382 = vld [vmem:[%s350 + $0xb8] sm:$0xff]
                  %383 = vst [vmem:[%s351 + $0x78] sm:$0xff] %v382
                  %v384 = vld [vmem:[%s350 + $0x100] sm:$0xff]
                  %385 = vst [vmem:[%s351 + $0x80] sm:$0xff] %v384
                  %v386 = vld [vmem:[%s350 + $0x108] sm:$0xff]
                  %387 = vst [vmem:[%s351 + $0x88] sm:$0xff] %v386
                  %v388 = vld [vmem:[%s350 + $0x110] sm:$0xff]
                  %389 = vst [vmem:[%s351 + $0x90] sm:$0xff] %v388
                  %v390 = vld [vmem:[%s350 + $0x118] sm:$0xff]
                  %391 = vst [vmem:[%s351 + $0x98] sm:$0xff] %v390
                  %v392 = vld [vmem:[%s350 + $0x120] sm:$0xff]
                  %393 = vst [vmem:[%s351 + $0xa0] sm:$0xff] %v392
                  %v394 = vld [vmem:[%s350 + $0x128] sm:$0xff]
                  %395 = vst [vmem:[%s351 + $0xa8] sm:$0xff] %v394
                  %v396 = vld [vmem:[%s350 + $0x130] sm:$0xff]
                  %397 = vst [vmem:[%s351 + $0xb0] sm:$0xff] %v396
                  %v398 = vld [vmem:[%s350 + $0x138] sm:$0xff]
                  %399 = vst [vmem:[%s351 + $0xb8] sm:$0xff] %v398
                  %v400 = vld [vmem:[%s350 + $0x180] sm:$0xff]
                  %401 = vst [vmem:[%s351 + $0xc0] sm:$0xff] %v400
                  %v402 = vld [vmem:[%s350 + $0x188] sm:$0xff]
                  %403 = vst [vmem:[%s351 + $0xc8] sm:$0xff] %v402
                  %v404 = vld [vmem:[%s350 + $0x190] sm:$0xff]
                  %405 = vst [vmem:[%s351 + $0xd0] sm:$0xff] %v404
                  %v406 = vld [vmem:[%s350 + $0x198] sm:$0xff]
                  %407 = vst [vmem:[%s351 + $0xd8] sm:$0xff] %v406
                  %v408 = vld [vmem:[%s350 + $0x1a0] sm:$0xff]
                  %409 = vst [vmem:[%s351 + $0xe0] sm:$0xff] %v408
                  %v410 = vld [vmem:[%s350 + $0x1a8] sm:$0xff]
                  %411 = vst [vmem:[%s351 + $0xe8] sm:$0xff] %v410
                  %v412 = vld [vmem:[%s350 + $0x1b0] sm:$0xff]
                  %413 = vst [vmem:[%s351 + $0xf0] sm:$0xff] %v412
                  %v414 = vld [vmem:[%s350 + $0x1b8] sm:$0xff]
                  %415 = vst [vmem:[%s351 + $0xf8] sm:$0xff] %v414
                  %v416 = vld [vmem:[%s350 + $0x200] sm:$0xff]
                  %417 = vst [vmem:[%s351 + $0x100] sm:$0xff] %v416
                  %v418 = vld [vmem:[%s350 + $0x208] sm:$0xff]
                  %419 = vst [vmem:[%s351 + $0x108] sm:$0xff] %v418
                  %v420 = vld [vmem:[%s350 + $0x210] sm:$0xff]
                  %421 = vst [vmem:[%s351 + $0x110] sm:$0xff] %v420
                  %v422 = vld [vmem:[%s350 + $0x218] sm:$0xff]
                  %423 = vst [vmem:[%s351 + $0x118] sm:$0xff] %v422
                  %v424 = vld [vmem:[%s350 + $0x220] sm:$0xff]
                  %425 = vst [vmem:[%s351 + $0x120] sm:$0xff] %v424
                  %v426 = vld [vmem:[%s350 + $0x228] sm:$0xff]
                  %427 = vst [vmem:[%s351 + $0x128] sm:$0xff] %v426
                  %v428 = vld [vmem:[%s350 + $0x230] sm:$0xff]
                  %429 = vst [vmem:[%s351 + $0x130] sm:$0xff] %v428
                  %v430 = vld [vmem:[%s350 + $0x238] sm:$0xff]
                  %431 = vst [vmem:[%s351 + $0x138] sm:$0xff] %v430
                  %v432 = vld [vmem:[%s350 + $0x280] sm:$0xff]
                  %433 = vst [vmem:[%s351 + $0x140] sm:$0xff] %v432
                  %v434 = vld [vmem:[%s350 + $0x288] sm:$0xff]
                  %435 = vst [vmem:[%s351 + $0x148] sm:$0xff] %v434
                  %v436 = vld [vmem:[%s350 + $0x290] sm:$0xff]
                  %437 = vst [vmem:[%s351 + $0x150] sm:$0xff] %v436
                  %v438 = vld [vmem:[%s350 + $0x298] sm:$0xff]
                  %439 = vst [vmem:[%s351 + $0x158] sm:$0xff] %v438
                  %v440 = vld [vmem:[%s350 + $0x2a0] sm:$0xff]
                  %441 = vst [vmem:[%s351 + $0x160] sm:$0xff] %v440
                  %v442 = vld [vmem:[%s350 + $0x2a8] sm:$0xff]
                  %443 = vst [vmem:[%s351 + $0x168] sm:$0xff] %v442
                  %v444 = vld [vmem:[%s350 + $0x2b0] sm:$0xff]
                  %445 = vst [vmem:[%s351 + $0x170] sm:$0xff] %v444
                  %v446 = vld [vmem:[%s350 + $0x2b8] sm:$0xff]
                  %447 = vst [vmem:[%s351 + $0x178] sm:$0xff] %v446
                  %v448 = vld [vmem:[%s350 + $0x300] sm:$0xff]
                  %449 = vst [vmem:[%s351 + $0x180] sm:$0xff] %v448
                  %v450 = vld [vmem:[%s350 + $0x308] sm:$0xff]
                  %451 = vst [vmem:[%s351 + $0x188] sm:$0xff] %v450
                  %v452 = vld [vmem:[%s350 + $0x310] sm:$0xff]
                  %453 = vst [vmem:[%s351 + $0x190] sm:$0xff] %v452
                  %v454 = vld [vmem:[%s350 + $0x318] sm:$0xff]
                  %455 = vst [vmem:[%s351 + $0x198] sm:$0xff] %v454
                  %v456 = vld [vmem:[%s350 + $0x320] sm:$0xff]
                  %457 = vst [vmem:[%s351 + $0x1a0] sm:$0xff] %v456
                  %v458 = vld [vmem:[%s350 + $0x328] sm:$0xff]
                  %459 = vst [vmem:[%s351 + $0x1a8] sm:$0xff] %v458
                  %v460 = vld [vmem:[%s350 + $0x330] sm:$0xff]
                  %461 = vst [vmem:[%s351 + $0x1b0] sm:$0xff] %v460
                  %v462 = vld [vmem:[%s350 + $0x338] sm:$0xff]
                  %463 = vst [vmem:[%s351 + $0x1b8] sm:$0xff] %v462
                  %v464 = vld [vmem:[%s350 + $0x380] sm:$0xff]
                  %465 = vst [vmem:[%s351 + $0x1c0] sm:$0xff] %v464
                  %v466 = vld [vmem:[%s350 + $0x388] sm:$0xff]
                  %467 = vst [vmem:[%s351 + $0x1c8] sm:$0xff] %v466
                  %v468 = vld [vmem:[%s350 + $0x390] sm:$0xff]
                  %469 = vst [vmem:[%s351 + $0x1d0] sm:$0xff] %v468
                  %v470 = vld [vmem:[%s350 + $0x398] sm:$0xff]
                  %471 = vst [vmem:[%s351 + $0x1d8] sm:$0xff] %v470
                  %v472 = vld [vmem:[%s350 + $0x3a0] sm:$0xff]
                  %473 = vst [vmem:[%s351 + $0x1e0] sm:$0xff] %v472
                  %v474 = vld [vmem:[%s350 + $0x3a8] sm:$0xff]
                  %475 = vst [vmem:[%s351 + $0x1e8] sm:$0xff] %v474
                  %v476 = vld [vmem:[%s350 + $0x3b0] sm:$0xff]
                  %477 = vst [vmem:[%s351 + $0x1f0] sm:$0xff] %v476
                  %v478 = vld [vmem:[%s350 + $0x3b8] sm:$0xff]
                  %479 = vst [vmem:[%s351 + $0x1f8] sm:$0xff] %v478
                $region64: #{tpu_custom_call.1} parent=58 // loop_footer
                  %s349 = sadd.s32 1, %s345
                $region65: #{tpu_custom_call.1} parent=58 // loop_footer_branch
                  %344 = sbr.rel target = $region61
                $region66: #{tpu_custom_call.1} parent=58 // loop_exit
                  _
              $region59: #{tpu_custom_call.1} parent=43 // pred_fallthru
                _
              // Predicated region
              $region67: #{tpu_custom_call.1} parent=43 // pred_check
                _
              $region68: #{tpu_custom_call.1} parent=43 // pred_check_branch
                %481 = sbr.rel target = $region70
              $region69: #{tpu_custom_call.1} parent=43 // pred_region
                _
              $region70: #{tpu_custom_call.1} parent=43 // pred_fallthru
                _
            $region44: #{tpu_custom_call.1} parent=39 // pred_fallthru
              _
            // Predicated region
            $region45: #{tpu_custom_call.1} parent=39 // pred_check
              _
            $region46: #{tpu_custom_call.1} parent=39 // pred_check_branch
              %204 = sbr.rel target = $region48
            $region47: #{tpu_custom_call.1} parent=39 // pred_region
              loop: start=0, step=1, limit=1
              $region49: #{tpu_custom_call.1} parent=47 // loop_pre_header
                _
              $region50: #{tpu_custom_call.1} parent=47 // loop_header
                %s207 = sphi 0, %s211
                %p208 = scmp.ge.s32.totalorder %s207, 1
                %s212 = sphi %s198, %s198
                %s213 = sphi %s195, %s195
              $region51: #{tpu_custom_call.1} parent=47 // loop_header_branch
                %210 = sbr.rel (%p208) target = $region55
              $region52: #{tpu_custom_call.1} parent=47 // loop_body
                %v214 = vld [vmem:[%s212] sm:$0xff]
                %215 = vst [vmem:[%s213] sm:$0xff] %v214
                %v216 = vld [vmem:[%s212 + $0x8] sm:$0xff]
                %217 = vst [vmem:[%s213 + $0x8] sm:$0xff] %v216
                %v218 = vld [vmem:[%s212 + $0x10] sm:$0xff]
                %219 = vst [vmem:[%s213 + $0x10] sm:$0xff] %v218
                %v220 = vld [vmem:[%s212 + $0x18] sm:$0xff]
                %221 = vst [vmem:[%s213 + $0x18] sm:$0xff] %v220
                %v222 = vld [vmem:[%s212 + $0x20] sm:$0xff]
                %223 = vst [vmem:[%s213 + $0x20] sm:$0xff] %v222
                %v224 = vld [vmem:[%s212 + $0x28] sm:$0xff]
                %225 = vst [vmem:[%s213 + $0x28] sm:$0xff] %v224
                %v226 = vld [vmem:[%s212 + $0x30] sm:$0xff]
                %227 = vst [vmem:[%s213 + $0x30] sm:$0xff] %v226
                %v228 = vld [vmem:[%s212 + $0x38] sm:$0xff]
                %229 = vst [vmem:[%s213 + $0x38] sm:$0xff] %v228
                %v230 = vld [vmem:[%s212 + $0x80] sm:$0xff]
                %231 = vst [vmem:[%s213 + $0x40] sm:$0xff] %v230
                %v232 = vld [vmem:[%s212 + $0x88] sm:$0xff]
                %233 = vst [vmem:[%s213 + $0x48] sm:$0xff] %v232
                %v234 = vld [vmem:[%s212 + $0x90] sm:$0xff]
                %235 = vst [vmem:[%s213 + $0x50] sm:$0xff] %v234
                %v236 = vld [vmem:[%s212 + $0x98] sm:$0xff]
                %237 = vst [vmem:[%s213 + $0x58] sm:$0xff] %v236
                %v238 = vld [vmem:[%s212 + $0xa0] sm:$0xff]
                %239 = vst [vmem:[%s213 + $0x60] sm:$0xff] %v238
                %v240 = vld [vmem:[%s212 + $0xa8] sm:$0xff]
                %241 = vst [vmem:[%s213 + $0x68] sm:$0xff] %v240
                %v242 = vld [vmem:[%s212 + $0xb0] sm:$0xff]
                %243 = vst [vmem:[%s213 + $0x70] sm:$0xff] %v242
                %v244 = vld [vmem:[%s212 + $0xb8] sm:$0xff]
                %245 = vst [vmem:[%s213 + $0x78] sm:$0xff] %v244
                %v246 = vld [vmem:[%s212 + $0x100] sm:$0xff]
                %247 = vst [vmem:[%s213 + $0x80] sm:$0xff] %v246
                %v248 = vld [vmem:[%s212 + $0x108] sm:$0xff]
                %249 = vst [vmem:[%s213 + $0x88] sm:$0xff] %v248
                %v250 = vld [vmem:[%s212 + $0x110] sm:$0xff]
                %251 = vst [vmem:[%s213 + $0x90] sm:$0xff] %v250
                %v252 = vld [vmem:[%s212 + $0x118] sm:$0xff]
                %253 = vst [vmem:[%s213 + $0x98] sm:$0xff] %v252
                %v254 = vld [vmem:[%s212 + $0x120] sm:$0xff]
                %255 = vst [vmem:[%s213 + $0xa0] sm:$0xff] %v254
                %v256 = vld [vmem:[%s212 + $0x128] sm:$0xff]
                %257 = vst [vmem:[%s213 + $0xa8] sm:$0xff] %v256
                %v258 = vld [vmem:[%s212 + $0x130] sm:$0xff]
                %259 = vst [vmem:[%s213 + $0xb0] sm:$0xff] %v258
                %v260 = vld [vmem:[%s212 + $0x138] sm:$0xff]
                %261 = vst [vmem:[%s213 + $0xb8] sm:$0xff] %v260
                %v262 = vld [vmem:[%s212 + $0x180] sm:$0xff]
                %263 = vst [vmem:[%s213 + $0xc0] sm:$0xff] %v262
                %v264 = vld [vmem:[%s212 + $0x188] sm:$0xff]
                %265 = vst [vmem:[%s213 + $0xc8] sm:$0xff] %v264
                %v266 = vld [vmem:[%s212 + $0x190] sm:$0xff]
                %267 = vst [vmem:[%s213 + $0xd0] sm:$0xff] %v266
                %v268 = vld [vmem:[%s212 + $0x198] sm:$0xff]
                %269 = vst [vmem:[%s213 + $0xd8] sm:$0xff] %v268
                %v270 = vld [vmem:[%s212 + $0x1a0] sm:$0xff]
                %271 = vst [vmem:[%s213 + $0xe0] sm:$0xff] %v270
                %v272 = vld [vmem:[%s212 + $0x1a8] sm:$0xff]
                %273 = vst [vmem:[%s213 + $0xe8] sm:$0xff] %v272
                %v274 = vld [vmem:[%s212 + $0x1b0] sm:$0xff]
                %275 = vst [vmem:[%s213 + $0xf0] sm:$0xff] %v274
                %v276 = vld [vmem:[%s212 + $0x1b8] sm:$0xff]
                %277 = vst [vmem:[%s213 + $0xf8] sm:$0xff] %v276
                %v278 = vld [vmem:[%s212 + $0x200] sm:$0xff]
                %279 = vst [vmem:[%s213 + $0x100] sm:$0xff] %v278
                %v280 = vld [vmem:[%s212 + $0x208] sm:$0xff]
                %281 = vst [vmem:[%s213 + $0x108] sm:$0xff] %v280
                %v282 = vld [vmem:[%s212 + $0x210] sm:$0xff]
                %283 = vst [vmem:[%s213 + $0x110] sm:$0xff] %v282
                %v284 = vld [vmem:[%s212 + $0x218] sm:$0xff]
                %285 = vst [vmem:[%s213 + $0x118] sm:$0xff] %v284
                %v286 = vld [vmem:[%s212 + $0x220] sm:$0xff]
                %287 = vst [vmem:[%s213 + $0x120] sm:$0xff] %v286
                %v288 = vld [vmem:[%s212 + $0x228] sm:$0xff]
                %289 = vst [vmem:[%s213 + $0x128] sm:$0xff] %v288
                %v290 = vld [vmem:[%s212 + $0x230] sm:$0xff]
                %291 = vst [vmem:[%s213 + $0x130] sm:$0xff] %v290
                %v292 = vld [vmem:[%s212 + $0x238] sm:$0xff]
                %293 = vst [vmem:[%s213 + $0x138] sm:$0xff] %v292
                %v294 = vld [vmem:[%s212 + $0x280] sm:$0xff]
                %295 = vst [vmem:[%s213 + $0x140] sm:$0xff] %v294
                %v296 = vld [vmem:[%s212 + $0x288] sm:$0xff]
                %297 = vst [vmem:[%s213 + $0x148] sm:$0xff] %v296
                %v298 = vld [vmem:[%s212 + $0x290] sm:$0xff]
                %299 = vst [vmem:[%s213 + $0x150] sm:$0xff] %v298
                %v300 = vld [vmem:[%s212 + $0x298] sm:$0xff]
                %301 = vst [vmem:[%s213 + $0x158] sm:$0xff] %v300
                %v302 = vld [vmem:[%s212 + $0x2a0] sm:$0xff]
                %303 = vst [vmem:[%s213 + $0x160] sm:$0xff] %v302
                %v304 = vld [vmem:[%s212 + $0x2a8] sm:$0xff]
                %305 = vst [vmem:[%s213 + $0x168] sm:$0xff] %v304
                %v306 = vld [vmem:[%s212 + $0x2b0] sm:$0xff]
                %307 = vst [vmem:[%s213 + $0x170] sm:$0xff] %v306
                %v308 = vld [vmem:[%s212 + $0x2b8] sm:$0xff]
                %309 = vst [vmem:[%s213 + $0x178] sm:$0xff] %v308
                %v310 = vld [vmem:[%s212 + $0x300] sm:$0xff]
                %311 = vst [vmem:[%s213 + $0x180] sm:$0xff] %v310
                %v312 = vld [vmem:[%s212 + $0x308] sm:$0xff]
                %313 = vst [vmem:[%s213 + $0x188] sm:$0xff] %v312
                %v314 = vld [vmem:[%s212 + $0x310] sm:$0xff]
                %315 = vst [vmem:[%s213 + $0x190] sm:$0xff] %v314
                %v316 = vld [vmem:[%s212 + $0x318] sm:$0xff]
                %317 = vst [vmem:[%s213 + $0x198] sm:$0xff] %v316
                %v318 = vld [vmem:[%s212 + $0x320] sm:$0xff]
                %319 = vst [vmem:[%s213 + $0x1a0] sm:$0xff] %v318
                %v320 = vld [vmem:[%s212 + $0x328] sm:$0xff]
                %321 = vst [vmem:[%s213 + $0x1a8] sm:$0xff] %v320
                %v322 = vld [vmem:[%s212 + $0x330] sm:$0xff]
                %323 = vst [vmem:[%s213 + $0x1b0] sm:$0xff] %v322
                %v324 = vld [vmem:[%s212 + $0x338] sm:$0xff]
                %325 = vst [vmem:[%s213 + $0x1b8] sm:$0xff] %v324
                %v326 = vld [vmem:[%s212 + $0x380] sm:$0xff]
                %327 = vst [vmem:[%s213 + $0x1c0] sm:$0xff] %v326
                %v328 = vld [vmem:[%s212 + $0x388] sm:$0xff]
                %329 = vst [vmem:[%s213 + $0x1c8] sm:$0xff] %v328
                %v330 = vld [vmem:[%s212 + $0x390] sm:$0xff]
                %331 = vst [vmem:[%s213 + $0x1d0] sm:$0xff] %v330
                %v332 = vld [vmem:[%s212 + $0x398] sm:$0xff]
                %333 = vst [vmem:[%s213 + $0x1d8] sm:$0xff] %v332
                %v334 = vld [vmem:[%s212 + $0x3a0] sm:$0xff]
                %335 = vst [vmem:[%s213 + $0x1e0] sm:$0xff] %v334
                %v336 = vld [vmem:[%s212 + $0x3a8] sm:$0xff]
                %337 = vst [vmem:[%s213 + $0x1e8] sm:$0xff] %v336
                %v338 = vld [vmem:[%s212 + $0x3b0] sm:$0xff]
                %339 = vst [vmem:[%s213 + $0x1f0] sm:$0xff] %v338
                %v340 = vld [vmem:[%s212 + $0x3b8] sm:$0xff]
                %341 = vst [vmem:[%s213 + $0x1f8] sm:$0xff] %v340
              $region53: #{tpu_custom_call.1} parent=47 // loop_footer
                %s211 = sadd.s32 1, %s207
              $region54: #{tpu_custom_call.1} parent=47 // loop_footer_branch
                %206 = sbr.rel target = $region50
              $region55: #{tpu_custom_call.1} parent=47 // loop_exit
                _
            $region48: #{tpu_custom_call.1} parent=39 // pred_fallthru
              _
          $region40: #{tpu_custom_call.1} parent=35 // pred_fallthru
            _
          %482 = vnop
        $region36: #{tpu_custom_call.1} parent=27 // pred_fallthru
          _
      $region28: #{tpu_custom_call.1} parent=5 // pred_fallthru
        _
      %p483 = scmp.le.s32.totalorder 1, %s11
      %p484 = scmp.lt.s32.totalorder %s11, 3
      %p485 = pnand %p483, %p484
      %p486 = pneg %p485
      // Predicated region
      $region71: #{tpu_custom_call.1} parent=5 // pred_check
        _
      $region72: #{tpu_custom_call.1} parent=5 // pred_check_branch
        %488 = sbr.rel (%p485) target = $region74
      $region73: #{tpu_custom_call.1} parent=5 // pred_region
        %s489 = ssub.s32 %s11, 1
        %s490 = sand.u32 %s50, 1
        %s491 = sand.u32 %s50, 1
        %s492 = smul.addr %s491, 512
        %s493 = scalar_lea.vmem [#allocation2], %s492
        // Predicated region
        $region75: #{tpu_custom_call.1} parent=73 // pred_check
          %p494 = pneg %p63
        $region76: #{tpu_custom_call.1} parent=73 // pred_check_branch
          %496 = sbr.rel (%p494) target = $region78
        $region77: #{tpu_custom_call.1} parent=73 // pred_region
          _
        $region78: #{tpu_custom_call.1} parent=73 // pred_fallthru
          _
        %s497 = smul.u32 8, %s16
        %p498 = scmp.lt.s32.totalorder %s497, 15
        %s499 = scalar_select %p498, %s497, 15
        %s500 = smul.addr %s499, 8
        %s501 = scalar_lea.vmem %s0, %s500
        %p502 = pneg %p37
        %p503 = pneg %p34
        %s504 = sand.u32 %s50, 1
        %s505 = sand.u32 %s50, 1
        %s506 = smul.addr %s505, 512
        %s507 = scalar_lea.vmem [#allocation2], %s506
        %p508 = pneg %p63
        %p509 = pneg %p60
        %p510 = pneg %p84
        %p511 = pneg %p81
        %p512 = pneg %p105
        %p513 = pneg %p102
        %p514 = pneg %p126
        %p515 = pneg %p123
        %p516 = pneg %p152
        %p517 = pneg %p149
        %s518 = smul.u32 8, %s16
        %p519 = scmp.lt.s32.totalorder %s518, 15
        %s520 = scalar_select %p519, %s518, 15
        %s521 = smul.addr %s520, 8
        %s522 = scalar_lea.vmem %s5, %s521
        %s523 = smul.u32 8, %s16
        %p524 = scmp.lt.s32.totalorder %s523, 15
        %s525 = scalar_select %p524, %s523, 15
        %s526 = smul.addr %s525, 8
        %s527 = scalar_lea.vmem %s0, %s526
        %s528 = smul.u32 8, %s16
        %s529 = smul.u32 8, %s16
        %s530 = smul.u32 8, %s16
        %p531 = scmp.lt.s32.totalorder %s530, 15
        %s532 = scalar_select %p531, %s530, 15
        %s533 = smul.addr %s532, 8
        %s534 = scalar_lea.vmem %s5, %s533
        %s535 = smul.u32 8, %s16
        %v536 = vld [vmem:[%s527] sm:$0xff]
        %v537 = vld [vmem:[%s527 + $0x8] sm:$0xff]
        %v538 = vld [vmem:[%s527 + $0x10] sm:$0xff]
        %v539 = vld [vmem:[%s527 + $0x18] sm:$0xff]
        %v540 = vld [vmem:[%s527 + $0x20] sm:$0xff]
        %v541 = vld [vmem:[%s527 + $0x28] sm:$0xff]
        %v542 = vld [vmem:[%s527 + $0x30] sm:$0xff]
        %v543 = vld [vmem:[%s527 + $0x38] sm:$0xff]
        %v544 = vld [vmem:[%s493] sm:$0xff]
        %v545 = vld [vmem:[%s493 + $0x8] sm:$0xff]
        %v546 = vld [vmem:[%s493 + $0x10] sm:$0xff]
        %v547 = vld [vmem:[%s493 + $0x18] sm:$0xff]
        %v548 = vld [vmem:[%s493 + $0x20] sm:$0xff]
        %v549 = vld [vmem:[%s493 + $0x28] sm:$0xff]
        %v550 = vld [vmem:[%s493 + $0x30] sm:$0xff]
        %v551 = vld [vmem:[%s493 + $0x38] sm:$0xff]
        %v552 = vld [vmem:[%s493 + $0x40] sm:$0xff]
        %v553 = vld [vmem:[%s493 + $0x48] sm:$0xff]
        %v554 = vld [vmem:[%s493 + $0x50] sm:$0xff]
        %v555 = vld [vmem:[%s493 + $0x58] sm:$0xff]
        %v556 = vld [vmem:[%s493 + $0x60] sm:$0xff]
        %v557 = vld [vmem:[%s493 + $0x68] sm:$0xff]
        %v558 = vld [vmem:[%s493 + $0x70] sm:$0xff]
        %v559 = vld [vmem:[%s493 + $0x78] sm:$0xff]
        %v560 = vld [vmem:[%s493 + $0x80] sm:$0xff]
        %v561 = vld [vmem:[%s493 + $0x88] sm:$0xff]
        %v562 = vld [vmem:[%s493 + $0x90] sm:$0xff]
        %v563 = vld [vmem:[%s493 + $0x98] sm:$0xff]
        %v564 = vld [vmem:[%s493 + $0xa0] sm:$0xff]
        %v565 = vld [vmem:[%s493 + $0xa8] sm:$0xff]
        %v566 = vld [vmem:[%s493 + $0xb0] sm:$0xff]
        %v567 = vld [vmem:[%s493 + $0xb8] sm:$0xff]
        %v568 = vld [vmem:[%s493 + $0xc0] sm:$0xff]
        %v569 = vld [vmem:[%s493 + $0xc8] sm:$0xff]
        %v570 = vld [vmem:[%s493 + $0xd0] sm:$0xff]
        %v571 = vld [vmem:[%s493 + $0xd8] sm:$0xff]
        %v572 = vld [vmem:[%s493 + $0xe0] sm:$0xff]
        %v573 = vld [vmem:[%s493 + $0xe8] sm:$0xff]
        %v574 = vld [vmem:[%s493 + $0xf0] sm:$0xff]
        %v575 = vld [vmem:[%s493 + $0xf8] sm:$0xff]
        %v576 = vld [vmem:[%s493 + $0x100] sm:$0xff]
        %v577 = vld [vmem:[%s493 + $0x108] sm:$0xff]
        %v578 = vld [vmem:[%s493 + $0x110] sm:$0xff]
        %v579 = vld [vmem:[%s493 + $0x118] sm:$0xff]
        %v580 = vld [vmem:[%s493 + $0x120] sm:$0xff]
        %v581 = vld [vmem:[%s493 + $0x128] sm:$0xff]
        %v582 = vld [vmem:[%s493 + $0x130] sm:$0xff]
        %v583 = vld [vmem:[%s493 + $0x138] sm:$0xff]
        %v584 = vld [vmem:[%s493 + $0x140] sm:$0xff]
        %v585 = vld [vmem:[%s493 + $0x148] sm:$0xff]
        %v586 = vld [vmem:[%s493 + $0x150] sm:$0xff]
        %v587 = vld [vmem:[%s493 + $0x158] sm:$0xff]
        %v588 = vld [vmem:[%s493 + $0x160] sm:$0xff]
        %v589 = vld [vmem:[%s493 + $0x168] sm:$0xff]
        %v590 = vld [vmem:[%s493 + $0x170] sm:$0xff]
        %v591 = vld [vmem:[%s493 + $0x178] sm:$0xff]
        %v592 = vld [vmem:[%s493 + $0x180] sm:$0xff]
        %v593 = vld [vmem:[%s493 + $0x188] sm:$0xff]
        %v594 = vld [vmem:[%s493 + $0x190] sm:$0xff]
        %v595 = vld [vmem:[%s493 + $0x198] sm:$0xff]
        %v596 = vld [vmem:[%s493 + $0x1a0] sm:$0xff]
        %v597 = vld [vmem:[%s493 + $0x1a8] sm:$0xff]
        %v598 = vld [vmem:[%s493 + $0x1b0] sm:$0xff]
        %v599 = vld [vmem:[%s493 + $0x1b8] sm:$0xff]
        %v600 = vld [vmem:[%s493 + $0x1c0] sm:$0xff]
        %v601 = vld [vmem:[%s493 + $0x1c8] sm:$0xff]
        %v602 = vld [vmem:[%s493 + $0x1d0] sm:$0xff]
        %v603 = vld [vmem:[%s493 + $0x1d8] sm:$0xff]
        %v604 = vld [vmem:[%s493 + $0x1e0] sm:$0xff]
        %v605 = vld [vmem:[%s493 + $0x1e8] sm:$0xff]
        %v606 = vld [vmem:[%s493 + $0x1f0] sm:$0xff]
        %v607 = vld [vmem:[%s493 + $0x1f8] sm:$0xff]
        %v608 = vld [vmem:[%s4] sm:$0xff]
        %v609 = vld [vmem:[%s4 + $0x8] sm:$0xff]
        %v610 = vld [vmem:[%s4 + $0x10] sm:$0xff]
        %v611 = vld [vmem:[%s4 + $0x18] sm:$0xff]
        %vm612 = vcmask 261120
        %v613 = vsel %vm612, %v544, 0.0
        %614 = vadd.xlane.f32.xlu0 %v613
        %v615 = vpop.xlane.xlu0 %614
        %v616 = vsel %vm612, %v545, 0.0
        %617 = vadd.xlane.f32.xlu0 %v616
        %v618 = vpop.xlane.xlu0 %617
        %v619 = vsel %vm612, %v546, 0.0
        %620 = vadd.xlane.f32.xlu0 %v619
        %v621 = vpop.xlane.xlu0 %620
        %v622 = vsel %vm612, %v547, 0.0
        %623 = vadd.xlane.f32.xlu0 %v622
        %v624 = vpop.xlane.xlu0 %623
        %v625 = vsel %vm612, %v548, 0.0
        %626 = vadd.xlane.f32.xlu0 %v625
        %v627 = vpop.xlane.xlu0 %626
        %v628 = vsel %vm612, %v549, 0.0
        %629 = vadd.xlane.f32.xlu0 %v628
        %v630 = vpop.xlane.xlu0 %629
        %v631 = vsel %vm612, %v550, 0.0
        %632 = vadd.xlane.f32.xlu0 %v631
        %v633 = vpop.xlane.xlu0 %632
        %v634 = vsel %vm612, %v551, 0.0
        %635 = vadd.xlane.f32.xlu0 %v634
        %v636 = vpop.xlane.xlu0 %635
        %v637 = vsel %vm612, %v552, 0.0
        %638 = vadd.xlane.f32.xlu0 %v637
        %v639 = vpop.xlane.xlu0 %638
        %v640 = vsel %vm612, %v553, 0.0
        %641 = vadd.xlane.f32.xlu0 %v640
        %v642 = vpop.xlane.xlu0 %641
        %v643 = vsel %vm612, %v554, 0.0
        %644 = vadd.xlane.f32.xlu0 %v643
        %v645 = vpop.xlane.xlu0 %644
        %v646 = vsel %vm612, %v555, 0.0
        %647 = vadd.xlane.f32.xlu0 %v646
        %v648 = vpop.xlane.xlu0 %647
        %v649 = vsel %vm612, %v556, 0.0
        %650 = vadd.xlane.f32.xlu0 %v649
        %v651 = vpop.xlane.xlu0 %650
        %v652 = vsel %vm612, %v557, 0.0
        %653 = vadd.xlane.f32.xlu0 %v652
        %v654 = vpop.xlane.xlu0 %653
        %v655 = vsel %vm612, %v558, 0.0
        %656 = vadd.xlane.f32.xlu0 %v655
        %v657 = vpop.xlane.xlu0 %656
        %v658 = vsel %vm612, %v559, 0.0
        %659 = vadd.xlane.f32.xlu0 %v658
        %v660 = vpop.xlane.xlu0 %659
        %v661 = vsel %vm612, %v560, 0.0
        %662 = vadd.xlane.f32.xlu0 %v661
        %v663 = vpop.xlane.xlu0 %662
        %v664 = vsel %vm612, %v561, 0.0
        %665 = vadd.xlane.f32.xlu0 %v664
        %v666 = vpop.xlane.xlu0 %665
        %v667 = vsel %vm612, %v562, 0.0
        %668 = vadd.xlane.f32.xlu0 %v667
        %v669 = vpop.xlane.xlu0 %668
        %v670 = vsel %vm612, %v563, 0.0
        %671 = vadd.xlane.f32.xlu0 %v670
        %v672 = vpop.xlane.xlu0 %671
        %v673 = vsel %vm612, %v564, 0.0
        %674 = vadd.xlane.f32.xlu0 %v673
        %v675 = vpop.xlane.xlu0 %674
        %v676 = vsel %vm612, %v565, 0.0
        %677 = vadd.xlane.f32.xlu0 %v676
        %v678 = vpop.xlane.xlu0 %677
        %v679 = vsel %vm612, %v566, 0.0
        %680 = vadd.xlane.f32.xlu0 %v679
        %v681 = vpop.xlane.xlu0 %680
        %v682 = vsel %vm612, %v567, 0.0
        %683 = vadd.xlane.f32.xlu0 %v682
        %v684 = vpop.xlane.xlu0 %683
        %v685 = vsel %vm612, %v568, 0.0
        %686 = vadd.xlane.f32.xlu0 %v685
        %v687 = vpop.xlane.xlu0 %686
        %v688 = vsel %vm612, %v569, 0.0
        %689 = vadd.xlane.f32.xlu0 %v688
        %v690 = vpop.xlane.xlu0 %689
        %v691 = vsel %vm612, %v570, 0.0
        %692 = vadd.xlane.f32.xlu0 %v691
        %v693 = vpop.xlane.xlu0 %692
        %v694 = vsel %vm612, %v571, 0.0
        %695 = vadd.xlane.f32.xlu0 %v694
        %v696 = vpop.xlane.xlu0 %695
        %v697 = vsel %vm612, %v572, 0.0
        %698 = vadd.xlane.f32.xlu0 %v697
        %v699 = vpop.xlane.xlu0 %698
        %v700 = vsel %vm612, %v573, 0.0
        %701 = vadd.xlane.f32.xlu0 %v700
        %v702 = vpop.xlane.xlu0 %701
        %v703 = vsel %vm612, %v574, 0.0
        %704 = vadd.xlane.f32.xlu0 %v703
        %v705 = vpop.xlane.xlu0 %704
        %v706 = vsel %vm612, %v575, 0.0
        %707 = vadd.xlane.f32.xlu0 %v706
        %v708 = vpop.xlane.xlu0 %707
        %v709 = vsel %vm612, %v576, 0.0
        %710 = vadd.xlane.f32.xlu0 %v709
        %v711 = vpop.xlane.xlu0 %710
        %v712 = vsel %vm612, %v577, 0.0
        %713 = vadd.xlane.f32.xlu0 %v712
        %v714 = vpop.xlane.xlu0 %713
        %v715 = vsel %vm612, %v578, 0.0
        %716 = vadd.xlane.f32.xlu0 %v715
        %v717 = vpop.xlane.xlu0 %716
        %v718 = vsel %vm612, %v579, 0.0
        %719 = vadd.xlane.f32.xlu0 %v718
        %v720 = vpop.xlane.xlu0 %719
        %v721 = vsel %vm612, %v580, 0.0
        %722 = vadd.xlane.f32.xlu0 %v721
        %v723 = vpop.xlane.xlu0 %722
        %v724 = vsel %vm612, %v581, 0.0
        %725 = vadd.xlane.f32.xlu0 %v724
        %v726 = vpop.xlane.xlu0 %725
        %v727 = vsel %vm612, %v582, 0.0
        %728 = vadd.xlane.f32.xlu0 %v727
        %v729 = vpop.xlane.xlu0 %728
        %v730 = vsel %vm612, %v583, 0.0
        %731 = vadd.xlane.f32.xlu0 %v730
        %v732 = vpop.xlane.xlu0 %731
        %v733 = vsel %vm612, %v584, 0.0
        %734 = vadd.xlane.f32.xlu0 %v733
        %v735 = vpop.xlane.xlu0 %734
        %v736 = vsel %vm612, %v585, 0.0
        %737 = vadd.xlane.f32.xlu0 %v736
        %v738 = vpop.xlane.xlu0 %737
        %v739 = vsel %vm612, %v586, 0.0
        %740 = vadd.xlane.f32.xlu0 %v739
        %v741 = vpop.xlane.xlu0 %740
        %v742 = vsel %vm612, %v587, 0.0
        %743 = vadd.xlane.f32.xlu0 %v742
        %v744 = vpop.xlane.xlu0 %743
        %v745 = vsel %vm612, %v588, 0.0
        %746 = vadd.xlane.f32.xlu0 %v745
        %v747 = vpop.xlane.xlu0 %746
        %v748 = vsel %vm612, %v589, 0.0
        %749 = vadd.xlane.f32.xlu0 %v748
        %v750 = vpop.xlane.xlu0 %749
        %v751 = vsel %vm612, %v590, 0.0
        %752 = vadd.xlane.f32.xlu0 %v751
        %v753 = vpop.xlane.xlu0 %752
        %v754 = vsel %vm612, %v591, 0.0
        %755 = vadd.xlane.f32.xlu0 %v754
        %v756 = vpop.xlane.xlu0 %755
        %v757 = vsel %vm612, %v592, 0.0
        %758 = vadd.xlane.f32.xlu0 %v757
        %v759 = vpop.xlane.xlu0 %758
        %v760 = vsel %vm612, %v593, 0.0
        %761 = vadd.xlane.f32.xlu0 %v760
        %v762 = vpop.xlane.xlu0 %761
        %v763 = vsel %vm612, %v594, 0.0
        %764 = vadd.xlane.f32.xlu0 %v763
        %v765 = vpop.xlane.xlu0 %764
        %v766 = vsel %vm612, %v595, 0.0
        %767 = vadd.xlane.f32.xlu0 %v766
        %v768 = vpop.xlane.xlu0 %767
        %v769 = vsel %vm612, %v596, 0.0
        %770 = vadd.xlane.f32.xlu0 %v769
        %v771 = vpop.xlane.xlu0 %770
        %v772 = vsel %vm612, %v597, 0.0
        %773 = vadd.xlane.f32.xlu0 %v772
        %v774 = vpop.xlane.xlu0 %773
        %v775 = vsel %vm612, %v598, 0.0
        %776 = vadd.xlane.f32.xlu0 %v775
        %v777 = vpop.xlane.xlu0 %776
        %v778 = vsel %vm612, %v599, 0.0
        %779 = vadd.xlane.f32.xlu0 %v778
        %v780 = vpop.xlane.xlu0 %779
        %v781 = vsel %vm612, %v600, 0.0
        %782 = vadd.xlane.f32.xlu0 %v781
        %v783 = vpop.xlane.xlu0 %782
        %v784 = vsel %vm612, %v601, 0.0
        %785 = vadd.xlane.f32.xlu0 %v784
        %v786 = vpop.xlane.xlu0 %785
        %v787 = vsel %vm612, %v602, 0.0
        %788 = vadd.xlane.f32.xlu0 %v787
        %v789 = vpop.xlane.xlu0 %788
        %v790 = vsel %vm612, %v603, 0.0
        %791 = vadd.xlane.f32.xlu0 %v790
        %v792 = vpop.xlane.xlu0 %791
        %v793 = vsel %vm612, %v604, 0.0
        %794 = vadd.xlane.f32.xlu0 %v793
        %v795 = vpop.xlane.xlu0 %794
        %v796 = vsel %vm612, %v605, 0.0
        %797 = vadd.xlane.f32.xlu0 %v796
        %v798 = vpop.xlane.xlu0 %797
        %v799 = vsel %vm612, %v606, 0.0
        %800 = vadd.xlane.f32.xlu0 %v799
        %v801 = vpop.xlane.xlu0 %800
        %v802 = vsel %vm612, %v607, 0.0
        %803 = vadd.xlane.f32.xlu0 %v802
        %v804 = vpop.xlane.xlu0 %803
        %v805 = vrcp.pop 32.0
        %v806 = vmul.f32 %v615, %v805
        %v807 = vmul.f32 %v618, %v805
        %v808 = vmul.f32 %v621, %v805
        %v809 = vmul.f32 %v624, %v805
        %v810 = vmul.f32 %v627, %v805
        %v811 = vmul.f32 %v630, %v805
        %v812 = vmul.f32 %v633, %v805
        %v813 = vmul.f32 %v636, %v805
        %v814 = vmul.f32 %v639, %v805
        %v815 = vmul.f32 %v642, %v805
        %v816 = vmul.f32 %v645, %v805
        %v817 = vmul.f32 %v648, %v805
        %v818 = vmul.f32 %v651, %v805
        %v819 = vmul.f32 %v654, %v805
        %v820 = vmul.f32 %v657, %v805
        %v821 = vmul.f32 %v660, %v805
        %v822 = vmul.f32 %v663, %v805
        %v823 = vmul.f32 %v666, %v805
        %v824 = vmul.f32 %v669, %v805
        %v825 = vmul.f32 %v672, %v805
        %v826 = vmul.f32 %v675, %v805
        %v827 = vmul.f32 %v678, %v805
        %v828 = vmul.f32 %v681, %v805
        %v829 = vmul.f32 %v684, %v805
        %v830 = vmul.f32 %v687, %v805
        %v831 = vmul.f32 %v690, %v805
        %v832 = vmul.f32 %v693, %v805
        %v833 = vmul.f32 %v696, %v805
        %v834 = vmul.f32 %v699, %v805
        %v835 = vmul.f32 %v702, %v805
        %v836 = vmul.f32 %v705, %v805
        %v837 = vmul.f32 %v708, %v805
        %v838 = vmul.f32 %v711, %v805
        %v839 = vmul.f32 %v714, %v805
        %v840 = vmul.f32 %v717, %v805
        %v841 = vmul.f32 %v720, %v805
        %v842 = vmul.f32 %v723, %v805
        %v843 = vmul.f32 %v726, %v805
        %v844 = vmul.f32 %v729, %v805
        %v845 = vmul.f32 %v732, %v805
        %v846 = vmul.f32 %v735, %v805
        %v847 = vmul.f32 %v738, %v805
        %v848 = vmul.f32 %v741, %v805
        %v849 = vmul.f32 %v744, %v805
        %v850 = vmul.f32 %v747, %v805
        %v851 = vmul.f32 %v750, %v805
        %v852 = vmul.f32 %v753, %v805
        %v853 = vmul.f32 %v756, %v805
        %v854 = vmul.f32 %v759, %v805
        %v855 = vmul.f32 %v762, %v805
        %v856 = vmul.f32 %v765, %v805
        %v857 = vmul.f32 %v768, %v805
        %v858 = vmul.f32 %v771, %v805
        %v859 = vmul.f32 %v774, %v805
        %v860 = vmul.f32 %v777, %v805
        %v861 = vmul.f32 %v780, %v805
        %v862 = vmul.f32 %v783, %v805
        %v863 = vmul.f32 %v786, %v805
        %v864 = vmul.f32 %v789, %v805
        %v865 = vmul.f32 %v792, %v805
        %v866 = vmul.f32 %v795, %v805
        %v867 = vmul.f32 %v798, %v805
        %v868 = vmul.f32 %v801, %v805
        %v869 = vmul.f32 %v804, %v805
        %v870 = vsub.f32 %v544, %v806
        %v871 = vsub.f32 %v545, %v807
        %v872 = vsub.f32 %v546, %v808
        %v873 = vsub.f32 %v547, %v809
        %v874 = vsub.f32 %v548, %v810
        %v875 = vsub.f32 %v549, %v811
        %v876 = vsub.f32 %v550, %v812
        %v877 = vsub.f32 %v551, %v813
        %v878 = vsub.f32 %v552, %v814
        %v879 = vsub.f32 %v553, %v815
        %v880 = vsub.f32 %v554, %v816
        %v881 = vsub.f32 %v555, %v817
        %v882 = vsub.f32 %v556, %v818
        %v883 = vsub.f32 %v557, %v819
        %v884 = vsub.f32 %v558, %v820
        %v885 = vsub.f32 %v559, %v821
        %v886 = vsub.f32 %v560, %v822
        %v887 = vsub.f32 %v561, %v823
        %v888 = vsub.f32 %v562, %v824
        %v889 = vsub.f32 %v563, %v825
        %v890 = vsub.f32 %v564, %v826
        %v891 = vsub.f32 %v565, %v827
        %v892 = vsub.f32 %v566, %v828
        %v893 = vsub.f32 %v567, %v829
        %v894 = vsub.f32 %v568, %v830
        %v895 = vsub.f32 %v569, %v831
        %v896 = vsub.f32 %v570, %v832
        %v897 = vsub.f32 %v571, %v833
        %v898 = vsub.f32 %v572, %v834
        %v899 = vsub.f32 %v573, %v835
        %v900 = vsub.f32 %v574, %v836
        %v901 = vsub.f32 %v575, %v837
        %v902 = vsub.f32 %v576, %v838
        %v903 = vsub.f32 %v577, %v839
        %v904 = vsub.f32 %v578, %v840
        %v905 = vsub.f32 %v579, %v841
        %v906 = vsub.f32 %v580, %v842
        %v907 = vsub.f32 %v581, %v843
        %v908 = vsub.f32 %v582, %v844
        %v909 = vsub.f32 %v583, %v845
        %v910 = vsub.f32 %v584, %v846
        %v911 = vsub.f32 %v585, %v847
        %v912 = vsub.f32 %v586, %v848
        %v913 = vsub.f32 %v587, %v849
        %v914 = vsub.f32 %v588, %v850
        %v915 = vsub.f32 %v589, %v851
        %v916 = vsub.f32 %v590, %v852
        %v917 = vsub.f32 %v591, %v853
        %v918 = vsub.f32 %v592, %v854
        %v919 = vsub.f32 %v593, %v855
        %v920 = vsub.f32 %v594, %v856
        %v921 = vsub.f32 %v595, %v857
        %v922 = vsub.f32 %v596, %v858
        %v923 = vsub.f32 %v597, %v859
        %v924 = vsub.f32 %v598, %v860
        %v925 = vsub.f32 %v599, %v861
        %v926 = vsub.f32 %v600, %v862
        %v927 = vsub.f32 %v601, %v863
        %v928 = vsub.f32 %v602, %v864
        %v929 = vsub.f32 %v603, %v865
        %v930 = vsub.f32 %v604, %v866
        %v931 = vsub.f32 %v605, %v867
        %v932 = vsub.f32 %v606, %v868
        %v933 = vsub.f32 %v607, %v869
        %v934 = vmul.f32 %v870, %v870
        %v935 = vmul.f32 %v871, %v871
        %v936 = vmul.f32 %v872, %v872
        %v937 = vmul.f32 %v873, %v873
        %v938 = vmul.f32 %v874, %v874
        %v939 = vmul.f32 %v875, %v875
        %v940 = vmul.f32 %v876, %v876
        %v941 = vmul.f32 %v877, %v877
        %v942 = vmul.f32 %v878, %v878
        %v943 = vmul.f32 %v879, %v879
        %v944 = vmul.f32 %v880, %v880
        %v945 = vmul.f32 %v881, %v881
        %v946 = vmul.f32 %v882, %v882
        %v947 = vmul.f32 %v883, %v883
        %v948 = vmul.f32 %v884, %v884
        %v949 = vmul.f32 %v885, %v885
        %v950 = vmul.f32 %v886, %v886
        %v951 = vmul.f32 %v887, %v887
        %v952 = vmul.f32 %v888, %v888
        %v953 = vmul.f32 %v889, %v889
        %v954 = vmul.f32 %v890, %v890
        %v955 = vmul.f32 %v891, %v891
        %v956 = vmul.f32 %v892, %v892
        %v957 = vmul.f32 %v893, %v893
        %v958 = vmul.f32 %v894, %v894
        %v959 = vmul.f32 %v895, %v895
        %v960 = vmul.f32 %v896, %v896
        %v961 = vmul.f32 %v897, %v897
        %v962 = vmul.f32 %v898, %v898
        %v963 = vmul.f32 %v899, %v899
        %v964 = vmul.f32 %v900, %v900
        %v965 = vmul.f32 %v901, %v901
        %v966 = vmul.f32 %v902, %v902
        %v967 = vmul.f32 %v903, %v903
        %v968 = vmul.f32 %v904, %v904
        %v969 = vmul.f32 %v905, %v905
        %v970 = vmul.f32 %v906, %v906
        %v971 = vmul.f32 %v907, %v907
        %v972 = vmul.f32 %v908, %v908
        %v973 = vmul.f32 %v909, %v909
        %v974 = vmul.f32 %v910, %v910
        %v975 = vmul.f32 %v911, %v911
        %v976 = vmul.f32 %v912, %v912
        %v977 = vmul.f32 %v913, %v913
        %v978 = vmul.f32 %v914, %v914
        %v979 = vmul.f32 %v915, %v915
        %v980 = vmul.f32 %v916, %v916
        %v981 = vmul.f32 %v917, %v917
        %v982 = vmul.f32 %v918, %v918
        %v983 = vmul.f32 %v919, %v919
        %v984 = vmul.f32 %v920, %v920
        %v985 = vmul.f32 %v921, %v921
        %v986 = vmul.f32 %v922, %v922
        %v987 = vmul.f32 %v923, %v923
        %v988 = vmul.f32 %v924, %v924
        %v989 = vmul.f32 %v925, %v925
        %v990 = vmul.f32 %v926, %v926
        %v991 = vmul.f32 %v927, %v927
        %v992 = vmul.f32 %v928, %v928
        %v993 = vmul.f32 %v929, %v929
        %v994 = vmul.f32 %v930, %v930
        %v995 = vmul.f32 %v931, %v931
        %v996 = vmul.f32 %v932, %v932
        %v997 = vmul.f32 %v933, %v933
        %v998 = vsel %vm612, %v934, 0.0
        %999 = vadd.xlane.f32.xlu0 %v998
        %v1000 = vpop.xlane.xlu0 %999
        %v1001 = vsel %vm612, %v935, 0.0
        %1002 = vadd.xlane.f32.xlu0 %v1001
        %v1003 = vpop.xlane.xlu0 %1002
        %v1004 = vsel %vm612, %v936, 0.0
        %1005 = vadd.xlane.f32.xlu0 %v1004
        %v1006 = vpop.xlane.xlu0 %1005
        %v1007 = vsel %vm612, %v937, 0.0
        %1008 = vadd.xlane.f32.xlu0 %v1007
        %v1009 = vpop.xlane.xlu0 %1008
        %v1010 = vsel %vm612, %v938, 0.0
        %1011 = vadd.xlane.f32.xlu0 %v1010
        %v1012 = vpop.xlane.xlu0 %1011
        %v1013 = vsel %vm612, %v939, 0.0
        %1014 = vadd.xlane.f32.xlu0 %v1013
        %v1015 = vpop.xlane.xlu0 %1014
        %v1016 = vsel %vm612, %v940, 0.0
        %1017 = vadd.xlane.f32.xlu0 %v1016
        %v1018 = vpop.xlane.xlu0 %1017
        %v1019 = vsel %vm612, %v941, 0.0
        %1020 = vadd.xlane.f32.xlu0 %v1019
        %v1021 = vpop.xlane.xlu0 %1020
        %v1022 = vsel %vm612, %v942, 0.0
        %1023 = vadd.xlane.f32.xlu0 %v1022
        %v1024 = vpop.xlane.xlu0 %1023
        %v1025 = vsel %vm612, %v943, 0.0
        %1026 = vadd.xlane.f32.xlu0 %v1025
        %v1027 = vpop.xlane.xlu0 %1026
        %v1028 = vsel %vm612, %v944, 0.0
        %1029 = vadd.xlane.f32.xlu0 %v1028
        %v1030 = vpop.xlane.xlu0 %1029
        %v1031 = vsel %vm612, %v945, 0.0
        %1032 = vadd.xlane.f32.xlu0 %v1031
        %v1033 = vpop.xlane.xlu0 %1032
        %v1034 = vsel %vm612, %v946, 0.0
        %1035 = vadd.xlane.f32.xlu0 %v1034
        %v1036 = vpop.xlane.xlu0 %1035
        %v1037 = vsel %vm612, %v947, 0.0
        %1038 = vadd.xlane.f32.xlu0 %v1037
        %v1039 = vpop.xlane.xlu0 %1038
        %v1040 = vsel %vm612, %v948, 0.0
        %1041 = vadd.xlane.f32.xlu0 %v1040
        %v1042 = vpop.xlane.xlu0 %1041
        %v1043 = vsel %vm612, %v949, 0.0
        %1044 = vadd.xlane.f32.xlu0 %v1043
        %v1045 = vpop.xlane.xlu0 %1044
        %v1046 = vsel %vm612, %v950, 0.0
        %1047 = vadd.xlane.f32.xlu0 %v1046
        %v1048 = vpop.xlane.xlu0 %1047
        %v1049 = vsel %vm612, %v951, 0.0
        %1050 = vadd.xlane.f32.xlu0 %v1049
        %v1051 = vpop.xlane.xlu0 %1050
        %v1052 = vsel %vm612, %v952, 0.0
        %1053 = vadd.xlane.f32.xlu0 %v1052
        %v1054 = vpop.xlane.xlu0 %1053
        %v1055 = vsel %vm612, %v953, 0.0
        %1056 = vadd.xlane.f32.xlu0 %v1055
        %v1057 = vpop.xlane.xlu0 %1056
        %v1058 = vsel %vm612, %v954, 0.0
        %1059 = vadd.xlane.f32.xlu0 %v1058
        %v1060 = vpop.xlane.xlu0 %1059
        %v1061 = vsel %vm612, %v955, 0.0
        %1062 = vadd.xlane.f32.xlu0 %v1061
        %v1063 = vpop.xlane.xlu0 %1062
        %v1064 = vsel %vm612, %v956, 0.0
        %1065 = vadd.xlane.f32.xlu0 %v1064
        %v1066 = vpop.xlane.xlu0 %1065
        %v1067 = vsel %vm612, %v957, 0.0
        %1068 = vadd.xlane.f32.xlu0 %v1067
        %v1069 = vpop.xlane.xlu0 %1068
        %v1070 = vsel %vm612, %v958, 0.0
        %1071 = vadd.xlane.f32.xlu0 %v1070
        %v1072 = vpop.xlane.xlu0 %1071
        %v1073 = vsel %vm612, %v959, 0.0
        %1074 = vadd.xlane.f32.xlu0 %v1073
        %v1075 = vpop.xlane.xlu0 %1074
        %v1076 = vsel %vm612, %v960, 0.0
        %1077 = vadd.xlane.f32.xlu0 %v1076
        %v1078 = vpop.xlane.xlu0 %1077
        %v1079 = vsel %vm612, %v961, 0.0
        %1080 = vadd.xlane.f32.xlu0 %v1079
        %v1081 = vpop.xlane.xlu0 %1080
        %v1082 = vsel %vm612, %v962, 0.0
        %1083 = vadd.xlane.f32.xlu0 %v1082
        %v1084 = vpop.xlane.xlu0 %1083
        %v1085 = vsel %vm612, %v963, 0.0
        %1086 = vadd.xlane.f32.xlu0 %v1085
        %v1087 = vpop.xlane.xlu0 %1086
        %v1088 = vsel %vm612, %v964, 0.0
        %1089 = vadd.xlane.f32.xlu0 %v1088
        %v1090 = vpop.xlane.xlu0 %1089
        %v1091 = vsel %vm612, %v965, 0.0
        %1092 = vadd.xlane.f32.xlu0 %v1091
        %v1093 = vpop.xlane.xlu0 %1092
        %v1094 = vsel %vm612, %v966, 0.0
        %1095 = vadd.xlane.f32.xlu0 %v1094
        %v1096 = vpop.xlane.xlu0 %1095
        %v1097 = vsel %vm612, %v967, 0.0
        %1098 = vadd.xlane.f32.xlu0 %v1097
        %v1099 = vpop.xlane.xlu0 %1098
        %v1100 = vsel %vm612, %v968, 0.0
        %1101 = vadd.xlane.f32.xlu0 %v1100
        %v1102 = vpop.xlane.xlu0 %1101
        %v1103 = vsel %vm612, %v969, 0.0
        %1104 = vadd.xlane.f32.xlu0 %v1103
        %v1105 = vpop.xlane.xlu0 %1104
        %v1106 = vsel %vm612, %v970, 0.0
        %1107 = vadd.xlane.f32.xlu0 %v1106
        %v1108 = vpop.xlane.xlu0 %1107
        %v1109 = vsel %vm612, %v971, 0.0
        %1110 = vadd.xlane.f32.xlu0 %v1109
        %v1111 = vpop.xlane.xlu0 %1110
        %v1112 = vsel %vm612, %v972, 0.0
        %1113 = vadd.xlane.f32.xlu0 %v1112
        %v1114 = vpop.xlane.xlu0 %1113
        %v1115 = vsel %vm612, %v973, 0.0
        %1116 = vadd.xlane.f32.xlu0 %v1115
        %v1117 = vpop.xlane.xlu0 %1116
        %v1118 = vsel %vm612, %v974, 0.0
        %1119 = vadd.xlane.f32.xlu0 %v1118
        %v1120 = vpop.xlane.xlu0 %1119
        %v1121 = vsel %vm612, %v975, 0.0
        %1122 = vadd.xlane.f32.xlu0 %v1121
        %v1123 = vpop.xlane.xlu0 %1122
        %v1124 = vsel %vm612, %v976, 0.0
        %1125 = vadd.xlane.f32.xlu0 %v1124
        %v1126 = vpop.xlane.xlu0 %1125
        %v1127 = vsel %vm612, %v977, 0.0
        %1128 = vadd.xlane.f32.xlu0 %v1127
        %v1129 = vpop.xlane.xlu0 %1128
        %v1130 = vsel %vm612, %v978, 0.0
        %1131 = vadd.xlane.f32.xlu0 %v1130
        %v1132 = vpop.xlane.xlu0 %1131
        %v1133 = vsel %vm612, %v979, 0.0
        %1134 = vadd.xlane.f32.xlu0 %v1133
        %v1135 = vpop.xlane.xlu0 %1134
        %v1136 = vsel %vm612, %v980, 0.0
        %1137 = vadd.xlane.f32.xlu0 %v1136
        %v1138 = vpop.xlane.xlu0 %1137
        %v1139 = vsel %vm612, %v981, 0.0
        %1140 = vadd.xlane.f32.xlu0 %v1139
        %v1141 = vpop.xlane.xlu0 %1140
        %v1142 = vsel %vm612, %v982, 0.0
        %1143 = vadd.xlane.f32.xlu0 %v1142
        %v1144 = vpop.xlane.xlu0 %1143
        %v1145 = vsel %vm612, %v983, 0.0
        %1146 = vadd.xlane.f32.xlu0 %v1145
        %v1147 = vpop.xlane.xlu0 %1146
        %v1148 = vsel %vm612, %v984, 0.0
        %1149 = vadd.xlane.f32.xlu0 %v1148
        %v1150 = vpop.xlane.xlu0 %1149
        %v1151 = vsel %vm612, %v985, 0.0
        %1152 = vadd.xlane.f32.xlu0 %v1151
        %v1153 = vpop.xlane.xlu0 %1152
        %v1154 = vsel %vm612, %v986, 0.0
        %1155 = vadd.xlane.f32.xlu0 %v1154
        %v1156 = vpop.xlane.xlu0 %1155
        %v1157 = vsel %vm612, %v987, 0.0
        %1158 = vadd.xlane.f32.xlu0 %v1157
        %v1159 = vpop.xlane.xlu0 %1158
        %v1160 = vsel %vm612, %v988, 0.0
        %1161 = vadd.xlane.f32.xlu0 %v1160
        %v1162 = vpop.xlane.xlu0 %1161
        %v1163 = vsel %vm612, %v989, 0.0
        %1164 = vadd.xlane.f32.xlu0 %v1163
        %v1165 = vpop.xlane.xlu0 %1164
        %v1166 = vsel %vm612, %v990, 0.0
        %1167 = vadd.xlane.f32.xlu0 %v1166
        %v1168 = vpop.xlane.xlu0 %1167
        %v1169 = vsel %vm612, %v991, 0.0
        %1170 = vadd.xlane.f32.xlu0 %v1169
        %v1171 = vpop.xlane.xlu0 %1170
        %v1172 = vsel %vm612, %v992, 0.0
        %1173 = vadd.xlane.f32.xlu0 %v1172
        %v1174 = vpop.xlane.xlu0 %1173
        %v1175 = vsel %vm612, %v993, 0.0
        %1176 = vadd.xlane.f32.xlu0 %v1175
        %v1177 = vpop.xlane.xlu0 %1176
        %v1178 = vsel %vm612, %v994, 0.0
        %1179 = vadd.xlane.f32.xlu0 %v1178
        %v1180 = vpop.xlane.xlu0 %1179
        %v1181 = vsel %vm612, %v995, 0.0
        %1182 = vadd.xlane.f32.xlu0 %v1181
        %v1183 = vpop.xlane.xlu0 %1182
        %v1184 = vsel %vm612, %v996, 0.0
        %1185 = vadd.xlane.f32.xlu0 %v1184
        %v1186 = vpop.xlane.xlu0 %1185
        %v1187 = vsel %vm612, %v997, 0.0
        %1188 = vadd.xlane.f32.xlu0 %v1187
        %v1189 = vpop.xlane.xlu0 %1188
        %v1190 = vmul.f32 %v1000, %v805
        %v1191 = vmul.f32 %v1003, %v805
        %v1192 = vmul.f32 %v1006, %v805
        %v1193 = vmul.f32 %v1009, %v805
        %v1194 = vmul.f32 %v1012, %v805
        %v1195 = vmul.f32 %v1015, %v805
        %v1196 = vmul.f32 %v1018, %v805
        %v1197 = vmul.f32 %v1021, %v805
        %v1198 = vmul.f32 %v1024, %v805
        %v1199 = vmul.f32 %v1027, %v805
        %v1200 = vmul.f32 %v1030, %v805
        %v1201 = vmul.f32 %v1033, %v805
        %v1202 = vmul.f32 %v1036, %v805
        %v1203 = vmul.f32 %v1039, %v805
        %v1204 = vmul.f32 %v1042, %v805
        %v1205 = vmul.f32 %v1045, %v805
        %v1206 = vmul.f32 %v1048, %v805
        %v1207 = vmul.f32 %v1051, %v805
        %v1208 = vmul.f32 %v1054, %v805
        %v1209 = vmul.f32 %v1057, %v805
        %v1210 = vmul.f32 %v1060, %v805
        %v1211 = vmul.f32 %v1063, %v805
        %v1212 = vmul.f32 %v1066, %v805
        %v1213 = vmul.f32 %v1069, %v805
        %v1214 = vmul.f32 %v1072, %v805
        %v1215 = vmul.f32 %v1075, %v805
        %v1216 = vmul.f32 %v1078, %v805
        %v1217 = vmul.f32 %v1081, %v805
        %v1218 = vmul.f32 %v1084, %v805
        %v1219 = vmul.f32 %v1087, %v805
        %v1220 = vmul.f32 %v1090, %v805
        %v1221 = vmul.f32 %v1093, %v805
        %v1222 = vmul.f32 %v1096, %v805
        %v1223 = vmul.f32 %v1099, %v805
        %v1224 = vmul.f32 %v1102, %v805
        %v1225 = vmul.f32 %v1105, %v805
        %v1226 = vmul.f32 %v1108, %v805
        %v1227 = vmul.f32 %v1111, %v805
        %v1228 = vmul.f32 %v1114, %v805
        %v1229 = vmul.f32 %v1117, %v805
        %v1230 = vmul.f32 %v1120, %v805
        %v1231 = vmul.f32 %v1123, %v805
        %v1232 = vmul.f32 %v1126, %v805
        %v1233 = vmul.f32 %v1129, %v805
        %v1234 = vmul.f32 %v1132, %v805
        %v1235 = vmul.f32 %v1135, %v805
        %v1236 = vmul.f32 %v1138, %v805
        %v1237 = vmul.f32 %v1141, %v805
        %v1238 = vmul.f32 %v1144, %v805
        %v1239 = vmul.f32 %v1147, %v805
        %v1240 = vmul.f32 %v1150, %v805
        %v1241 = vmul.f32 %v1153, %v805
        %v1242 = vmul.f32 %v1156, %v805
        %v1243 = vmul.f32 %v1159, %v805
        %v1244 = vmul.f32 %v1162, %v805
        %v1245 = vmul.f32 %v1165, %v805
        %v1246 = vmul.f32 %v1168, %v805
        %v1247 = vmul.f32 %v1171, %v805
        %v1248 = vmul.f32 %v1174, %v805
        %v1249 = vmul.f32 %v1177, %v805
        %v1250 = vmul.f32 %v1180, %v805
        %v1251 = vmul.f32 %v1183, %v805
        %v1252 = vmul.f32 %v1186, %v805
        %v1253 = vmul.f32 %v1189, %v805
        %v1254 = vadd.f32 %v1190, 1e-05
        %v1255 = vadd.f32 %v1191, 1e-05
        %v1256 = vadd.f32 %v1192, 1e-05
        %v1257 = vadd.f32 %v1193, 1e-05
        %v1258 = vadd.f32 %v1194, 1e-05
        %v1259 = vadd.f32 %v1195, 1e-05
        %v1260 = vadd.f32 %v1196, 1e-05
        %v1261 = vadd.f32 %v1197, 1e-05
        %v1262 = vadd.f32 %v1198, 1e-05
        %v1263 = vadd.f32 %v1199, 1e-05
        %v1264 = vadd.f32 %v1200, 1e-05
        %v1265 = vadd.f32 %v1201, 1e-05
        %v1266 = vadd.f32 %v1202, 1e-05
        %v1267 = vadd.f32 %v1203, 1e-05
        %v1268 = vadd.f32 %v1204, 1e-05
        %v1269 = vadd.f32 %v1205, 1e-05
        %v1270 = vadd.f32 %v1206, 1e-05
        %v1271 = vadd.f32 %v1207, 1e-05
        %v1272 = vadd.f32 %v1208, 1e-05
        %v1273 = vadd.f32 %v1209, 1e-05
        %v1274 = vadd.f32 %v1210, 1e-05
        %v1275 = vadd.f32 %v1211, 1e-05
        %v1276 = vadd.f32 %v1212, 1e-05
        %v1277 = vadd.f32 %v1213, 1e-05
        %v1278 = vadd.f32 %v1214, 1e-05
        %v1279 = vadd.f32 %v1215, 1e-05
        %v1280 = vadd.f32 %v1216, 1e-05
        %v1281 = vadd.f32 %v1217, 1e-05
        %v1282 = vadd.f32 %v1218, 1e-05
        %v1283 = vadd.f32 %v1219, 1e-05
        %v1284 = vadd.f32 %v1220, 1e-05
        %v1285 = vadd.f32 %v1221, 1e-05
        %v1286 = vadd.f32 %v1222, 1e-05
        %v1287 = vadd.f32 %v1223, 1e-05
        %v1288 = vadd.f32 %v1224, 1e-05
        %v1289 = vadd.f32 %v1225, 1e-05
        %v1290 = vadd.f32 %v1226, 1e-05
        %v1291 = vadd.f32 %v1227, 1e-05
        %v1292 = vadd.f32 %v1228, 1e-05
        %v1293 = vadd.f32 %v1229, 1e-05
        %v1294 = vadd.f32 %v1230, 1e-05
        %v1295 = vadd.f32 %v1231, 1e-05
        %v1296 = vadd.f32 %v1232, 1e-05
        %v1297 = vadd.f32 %v1233, 1e-05
        %v1298 = vadd.f32 %v1234, 1e-05
        %v1299 = vadd.f32 %v1235, 1e-05
        %v1300 = vadd.f32 %v1236, 1e-05
        %v1301 = vadd.f32 %v1237, 1e-05
        %v1302 = vadd.f32 %v1238, 1e-05
        %v1303 = vadd.f32 %v1239, 1e-05
        %v1304 = vadd.f32 %v1240, 1e-05
        %v1305 = vadd.f32 %v1241, 1e-05
        %v1306 = vadd.f32 %v1242, 1e-05
        %v1307 = vadd.f32 %v1243, 1e-05
        %v1308 = vadd.f32 %v1244, 1e-05
        %v1309 = vadd.f32 %v1245, 1e-05
        %v1310 = vadd.f32 %v1246, 1e-05
        %v1311 = vadd.f32 %v1247, 1e-05
        %v1312 = vadd.f32 %v1248, 1e-05
        %v1313 = vadd.f32 %v1249, 1e-05
        %v1314 = vadd.f32 %v1250, 1e-05
        %v1315 = vadd.f32 %v1251, 1e-05
        %v1316 = vadd.f32 %v1252, 1e-05
        %v1317 = vadd.f32 %v1253, 1e-05
        %v1318 = vrsqrt.pop %v1254
        %v1319 = vrsqrt.pop %v1255
        %v1320 = vrsqrt.pop %v1256
        %v1321 = vrsqrt.pop %v1257
        %v1322 = vrsqrt.pop %v1258
        %v1323 = vrsqrt.pop %v1259
        %v1324 = vrsqrt.pop %v1260
        %v1325 = vrsqrt.pop %v1261
        %v1326 = vrsqrt.pop %v1262
        %v1327 = vrsqrt.pop %v1263
        %v1328 = vrsqrt.pop %v1264
        %v1329 = vrsqrt.pop %v1265
        %v1330 = vrsqrt.pop %v1266
        %v1331 = vrsqrt.pop %v1267
        %v1332 = vrsqrt.pop %v1268
        %v1333 = vrsqrt.pop %v1269
        %v1334 = vrsqrt.pop %v1270
        %v1335 = vrsqrt.pop %v1271
        %v1336 = vrsqrt.pop %v1272
        %v1337 = vrsqrt.pop %v1273
        %v1338 = vrsqrt.pop %v1274
        %v1339 = vrsqrt.pop %v1275
        %v1340 = vrsqrt.pop %v1276
        %v1341 = vrsqrt.pop %v1277
        %v1342 = vrsqrt.pop %v1278
        %v1343 = vrsqrt.pop %v1279
        %v1344 = vrsqrt.pop %v1280
        %v1345 = vrsqrt.pop %v1281
        %v1346 = vrsqrt.pop %v1282
        %v1347 = vrsqrt.pop %v1283
        %v1348 = vrsqrt.pop %v1284
        %v1349 = vrsqrt.pop %v1285
        %v1350 = vrsqrt.pop %v1286
        %v1351 = vrsqrt.pop %v1287
        %v1352 = vrsqrt.pop %v1288
        %v1353 = vrsqrt.pop %v1289
        %v1354 = vrsqrt.pop %v1290
        %v1355 = vrsqrt.pop %v1291
        %v1356 = vrsqrt.pop %v1292
        %v1357 = vrsqrt.pop %v1293
        %v1358 = vrsqrt.pop %v1294
        %v1359 = vrsqrt.pop %v1295
        %v1360 = vrsqrt.pop %v1296
        %v1361 = vrsqrt.pop %v1297
        %v1362 = vrsqrt.pop %v1298
        %v1363 = vrsqrt.pop %v1299
        %v1364 = vrsqrt.pop %v1300
        %v1365 = vrsqrt.pop %v1301
        %v1366 = vrsqrt.pop %v1302
        %v1367 = vrsqrt.pop %v1303
        %v1368 = vrsqrt.pop %v1304
        %v1369 = vrsqrt.pop %v1305
        %v1370 = vrsqrt.pop %v1306
        %v1371 = vrsqrt.pop %v1307
        %v1372 = vrsqrt.pop %v1308
        %v1373 = vrsqrt.pop %v1309
        %v1374 = vrsqrt.pop %v1310
        %v1375 = vrsqrt.pop %v1311
        %v1376 = vrsqrt.pop %v1312
        %v1377 = vrsqrt.pop %v1313
        %v1378 = vrsqrt.pop %v1314
        %v1379 = vrsqrt.pop %v1315
        %v1380 = vrsqrt.pop %v1316
        %v1381 = vrsqrt.pop %v1317
        %v1382 = vmul.f32 %v870, %v1318
        %v1383 = vmul.f32 %v871, %v1319
        %v1384 = vmul.f32 %v872, %v1320
        %v1385 = vmul.f32 %v873, %v1321
        %v1386 = vmul.f32 %v874, %v1322
        %v1387 = vmul.f32 %v875, %v1323
        %v1388 = vmul.f32 %v876, %v1324
        %v1389 = vmul.f32 %v877, %v1325
        %v1390 = vmul.f32 %v878, %v1326
        %v1391 = vmul.f32 %v879, %v1327
        %v1392 = vmul.f32 %v880, %v1328
        %v1393 = vmul.f32 %v881, %v1329
        %v1394 = vmul.f32 %v882, %v1330
        %v1395 = vmul.f32 %v883, %v1331
        %v1396 = vmul.f32 %v884, %v1332
        %v1397 = vmul.f32 %v885, %v1333
        %v1398 = vmul.f32 %v886, %v1334
        %v1399 = vmul.f32 %v887, %v1335
        %v1400 = vmul.f32 %v888, %v1336
        %v1401 = vmul.f32 %v889, %v1337
        %v1402 = vmul.f32 %v890, %v1338
        %v1403 = vmul.f32 %v891, %v1339
        %v1404 = vmul.f32 %v892, %v1340
        %v1405 = vmul.f32 %v893, %v1341
        %v1406 = vmul.f32 %v894, %v1342
        %v1407 = vmul.f32 %v895, %v1343
        %v1408 = vmul.f32 %v896, %v1344
        %v1409 = vmul.f32 %v897, %v1345
        %v1410 = vmul.f32 %v898, %v1346
        %v1411 = vmul.f32 %v899, %v1347
        %v1412 = vmul.f32 %v900, %v1348
        %v1413 = vmul.f32 %v901, %v1349
        %v1414 = vmul.f32 %v902, %v1350
        %v1415 = vmul.f32 %v903, %v1351
        %v1416 = vmul.f32 %v904, %v1352
        %v1417 = vmul.f32 %v905, %v1353
        %v1418 = vmul.f32 %v906, %v1354
        %v1419 = vmul.f32 %v907, %v1355
        %v1420 = vmul.f32 %v908, %v1356
        %v1421 = vmul.f32 %v909, %v1357
        %v1422 = vmul.f32 %v910, %v1358
        %v1423 = vmul.f32 %v911, %v1359
        %v1424 = vmul.f32 %v912, %v1360
        %v1425 = vmul.f32 %v913, %v1361
        %v1426 = vmul.f32 %v914, %v1362
        %v1427 = vmul.f32 %v915, %v1363
        %v1428 = vmul.f32 %v916, %v1364
        %v1429 = vmul.f32 %v917, %v1365
        %v1430 = vmul.f32 %v918, %v1366
        %v1431 = vmul.f32 %v919, %v1367
        %v1432 = vmul.f32 %v920, %v1368
        %v1433 = vmul.f32 %v921, %v1369
        %v1434 = vmul.f32 %v922, %v1370
        %v1435 = vmul.f32 %v923, %v1371
        %v1436 = vmul.f32 %v924, %v1372
        %v1437 = vmul.f32 %v925, %v1373
        %v1438 = vmul.f32 %v926, %v1374
        %v1439 = vmul.f32 %v927, %v1375
        %v1440 = vmul.f32 %v928, %v1376
        %v1441 = vmul.f32 %v929, %v1377
        %v1442 = vmul.f32 %v930, %v1378
        %v1443 = vmul.f32 %v931, %v1379
        %v1444 = vmul.f32 %v932, %v1380
        %v1445 = vmul.f32 %v933, %v1381
        %v1446 = vld [vmem:[%s2] sm:$0xff]
        %v1447 = vld [vmem:[%s2 + $0x8] sm:$0xff]
        %v1448 = vld [vmem:[%s2 + $0x10] sm:$0xff]
        %v1449 = vld [vmem:[%s2 + $0x18] sm:$0xff]
        %v1450 = vld [vmem:[%s2 + $0x20] sm:$0xff]
        %v1451 = vld [vmem:[%s2 + $0x28] sm:$0xff]
        %v1452 = vld [vmem:[%s2 + $0x30] sm:$0xff]
        %v1453 = vld [vmem:[%s2 + $0x38] sm:$0xff]
        %v1454 = vld [vmem:[%s3] sm:$0x1f]
        %v1455 = vsel %vm612, %v536, 0.0
        %1456 = vadd.xlane.f32.xlu0 %v1455
        %v1457 = vpop.xlane.xlu0 %1456
        %v1458 = vsel %vm612, %v537, 0.0
        %1459 = vadd.xlane.f32.xlu0 %v1458
        %v1460 = vpop.xlane.xlu0 %1459
        %v1461 = vsel %vm612, %v538, 0.0
        %1462 = vadd.xlane.f32.xlu0 %v1461
        %v1463 = vpop.xlane.xlu0 %1462
        %v1464 = vsel %vm612, %v539, 0.0
        %1465 = vadd.xlane.f32.xlu0 %v1464
        %v1466 = vpop.xlane.xlu0 %1465
        %v1467 = vsel %vm612, %v540, 0.0
        %1468 = vadd.xlane.f32.xlu0 %v1467
        %v1469 = vpop.xlane.xlu0 %1468
        %v1470 = vsel %vm612, %v541, 0.0
        %1471 = vadd.xlane.f32.xlu0 %v1470
        %v1472 = vpop.xlane.xlu0 %1471
        %v1473 = vsel %vm612, %v542, 0.0
        %1474 = vadd.xlane.f32.xlu0 %v1473
        %v1475 = vpop.xlane.xlu0 %1474
        %v1476 = vsel %vm612, %v543, 0.0
        %1477 = vadd.xlane.f32.xlu0 %v1476
        %v1478 = vpop.xlane.xlu0 %1477
        %v1479 = vmul.f32 %v1457, %v805
        %v1480 = vmul.f32 %v1460, %v805
        %v1481 = vmul.f32 %v1463, %v805
        %v1482 = vmul.f32 %v1466, %v805
        %v1483 = vmul.f32 %v1469, %v805
        %v1484 = vmul.f32 %v1472, %v805
        %v1485 = vmul.f32 %v1475, %v805
        %v1486 = vmul.f32 %v1478, %v805
        %v1487 = vsub.f32 %v536, %v1479
        %v1488 = vsub.f32 %v537, %v1480
        %v1489 = vsub.f32 %v538, %v1481
        %v1490 = vsub.f32 %v539, %v1482
        %v1491 = vsub.f32 %v540, %v1483
        %v1492 = vsub.f32 %v541, %v1484
        %v1493 = vsub.f32 %v542, %v1485
        %v1494 = vsub.f32 %v543, %v1486
        %v1495 = vmul.f32 %v1487, %v1487
        %v1496 = vmul.f32 %v1488, %v1488
        %v1497 = vmul.f32 %v1489, %v1489
        %v1498 = vmul.f32 %v1490, %v1490
        %v1499 = vmul.f32 %v1491, %v1491
        %v1500 = vmul.f32 %v1492, %v1492
        %v1501 = vmul.f32 %v1493, %v1493
        %v1502 = vmul.f32 %v1494, %v1494
        %v1503 = vsel %vm612, %v1495, 0.0
        %1504 = vadd.xlane.f32.xlu0 %v1503
        %v1505 = vpop.xlane.xlu0 %1504
        %v1506 = vsel %vm612, %v1496, 0.0
        %1507 = vadd.xlane.f32.xlu0 %v1506
        %v1508 = vpop.xlane.xlu0 %1507
        %v1509 = vsel %vm612, %v1497, 0.0
        %1510 = vadd.xlane.f32.xlu0 %v1509
        %v1511 = vpop.xlane.xlu0 %1510
        %v1512 = vsel %vm612, %v1498, 0.0
        %1513 = vadd.xlane.f32.xlu0 %v1512
        %v1514 = vpop.xlane.xlu0 %1513
        %v1515 = vsel %vm612, %v1499, 0.0
        %1516 = vadd.xlane.f32.xlu0 %v1515
        %v1517 = vpop.xlane.xlu0 %1516
        %v1518 = vsel %vm612, %v1500, 0.0
        %1519 = vadd.xlane.f32.xlu0 %v1518
        %v1520 = vpop.xlane.xlu0 %1519
        %v1521 = vsel %vm612, %v1501, 0.0
        %1522 = vadd.xlane.f32.xlu0 %v1521
        %v1523 = vpop.xlane.xlu0 %1522
        %v1524 = vsel %vm612, %v1502, 0.0
        %1525 = vadd.xlane.f32.xlu0 %v1524
        %v1526 = vpop.xlane.xlu0 %1525
        %v1527 = vmul.f32 %v1505, %v805
        %v1528 = vmul.f32 %v1508, %v805
        %v1529 = vmul.f32 %v1511, %v805
        %v1530 = vmul.f32 %v1514, %v805
        %v1531 = vmul.f32 %v1517, %v805
        %v1532 = vmul.f32 %v1520, %v805
        %v1533 = vmul.f32 %v1523, %v805
        %v1534 = vmul.f32 %v1526, %v805
        %v1535 = vadd.f32 %v1527, 1e-05
        %v1536 = vadd.f32 %v1528, 1e-05
        %v1537 = vadd.f32 %v1529, 1e-05
        %v1538 = vadd.f32 %v1530, 1e-05
        %v1539 = vadd.f32 %v1531, 1e-05
        %v1540 = vadd.f32 %v1532, 1e-05
        %v1541 = vadd.f32 %v1533, 1e-05
        %v1542 = vadd.f32 %v1534, 1e-05
        %v1543 = vrsqrt.pop %v1535
        %v1544 = vrsqrt.pop %v1536
        %v1545 = vrsqrt.pop %v1537
        %v1546 = vrsqrt.pop %v1538
        %v1547 = vrsqrt.pop %v1539
        %v1548 = vrsqrt.pop %v1540
        %v1549 = vrsqrt.pop %v1541
        %v1550 = vrsqrt.pop %v1542
        %v1551 = vmul.f32 %v1487, %v1543
        %v1552 = vmul.f32 %v1488, %v1544
        %v1553 = vmul.f32 %v1489, %v1545
        %v1554 = vmul.f32 %v1490, %v1546
        %v1555 = vmul.f32 %v1491, %v1547
        %v1556 = vmul.f32 %v1492, %v1548
        %v1557 = vmul.f32 %v1493, %v1549
        %v1558 = vmul.f32 %v1494, %v1550
        %v1560 = vsel %vm612, %v1551, 0
        %v1563 = vsel %vm612, %v1552, 0
        %v1566 = vsel %vm612, %v1553, 0
        %v1569 = vsel %vm612, %v1554, 0
        %v1572 = vsel %vm612, %v1555, 0
        %v1575 = vsel %vm612, %v1556, 0
        %v1578 = vsel %vm612, %v1557, 0
        %v1581 = vsel %vm612, %v1558, 0
        %1583 = vmatprep.subr.mxu0 0.0
        %1584 = vmatpush1.msra.mxu0 %v1446
        %1585 = vmatprep.subr.mxu0 0.0
        %1586 = vmatpush1.msra.mxu0 %v1448
        %1587 = vmatprep.subr.mxu0 0.0
        %1588 = vmatpush1.msra.mxu0 %v1450
        %1589 = vmatprep.subr.mxu0 0.0
        %1590 = vmatpush1.msra.mxu0 %v1452
        %1591 = vmatprep.subr.mxu0 0.0
        %1592 = vmatpush1.msra.mxu0 0.0
        %1593 = vmatprep.subr.mxu0 0.0
        %1594 = vmatpush1.msra.mxu0 0.0
        %1595 = vmatprep.subr.mxu0 0.0
        %1596 = vmatpush1.msra.mxu0 0.0
        %1597 = vmatprep.subr.mxu0 0.0
        %1598 = vmatpush1.msra.mxu0 0.0
        %1599 = vmatprep.subr.mxu0 0.0
        %1600 = vmatpush1.msra.mxu0 0.0
        %1601 = vmatprep.subr.mxu0 0.0
        %1602 = vmatpush1.msra.mxu0 0.0
        %1603 = vmatprep.subr.mxu0 0.0
        %1604 = vmatpush1.msra.mxu0 0.0
        %1605 = vmatprep.subr.mxu0 0.0
        %1606 = vmatpush1.msra.mxu0 0.0
        %1607 = vmatprep.subr.mxu0 0.0
        %1608 = vmatpush1.msra.mxu0 0.0
        %1609 = vmatprep.subr.mxu0 0.0
        %1610 = vmatpush1.msra.mxu0 0.0
        %1611 = vmatprep.subr.mxu0 0.0
        %1612 = vmatpush1.msra.mxu0 0.0
        %1613 = vmatprep.subr.mxu0 0.0
        %1614 = vmatpush1.msra.mxu0 0.0
        %1615 = vmatprep.subr.mxu0 0.0
        %1616 = vmatpush1.msra.mxu0 0.0
        %1617 = vmatprep.subr.mxu0 0.0
        %1618 = vmatpush1.msra.mxu0 0.0
        %1619 = vmatprep.subr.mxu0 0.0
        %1620 = vmatpush1.msra.mxu0 0.0
        %1621 = vmatprep.subr.mxu0 0.0
        %1622 = vmatpush1.msra.mxu0 0.0
        %1623 = vmatprep.subr.mxu0 0.0
        %1624 = vmatpush1.msra.mxu0 0.0
        %1625 = vmatprep.subr.mxu0 0.0
        %1626 = vmatpush1.msra.mxu0 0.0
        %1627 = vmatprep.subr.mxu0 0.0
        %1628 = vmatpush1.msra.mxu0 0.0
        %1629 = vmatprep.subr.mxu0 0.0
        %1630 = vmatpush1.msra.mxu0 0.0
        %1631 = vmatprep.subr.mxu0 0.0
        %1632 = vmatpush1.msra.mxu0 0.0
        %1633 = vmatprep.subr.mxu0 0.0
        %1634 = vmatpush1.msra.mxu0 0.0
        %1635 = vmatprep.subr.mxu0 0.0
        %1636 = vmatpush1.msra.mxu0 0.0
        %1637 = vmatprep.subr.mxu0 0.0
        %1638 = vmatpush1.msra.mxu0 0.0
        %1639 = vmatprep.subr.mxu0 0.0
        %1640 = vmatpush1.msra.mxu0 0.0
        %1641 = vmatprep.subr.mxu0 0.0
        %1642 = vmatpush1.msra.mxu0 0.0
        %1643 = vmatprep.subr.mxu0 0.0
        %1644 = vmatpush1.msra.mxu0 0.0
        %1645 = vmatprep.subr.mxu0 0.0
        %1646 = vmatpush1.msra.mxu0 0.0
        %1647 = vmatprep.mubr.f32.mxu0 0.0
        %1648 = vmatmul.mubr.f32.gmra.mrb[0].mxu0 %v1560
        %v1649 = vpop.f32.mrb[0].mxu0
        %v1650 = vadd.f32 0.0, %v1649
        %v1651 = vpop.f32.mrb[0].mxu0
        %1652 = vmatprep.mubr.f32.mxu0 0.0
        %1653 = vmatmul.mubr.f32.gmra.mrb[0].mxu0 %v1563
        %v1654 = vpop.f32.mrb[0].mxu0
        %v1655 = vadd.f32 0.0, %v1654
        %v1656 = vpop.f32.mrb[0].mxu0
        %1657 = vmatprep.mubr.f32.mxu0 0.0
        %1658 = vmatmul.mubr.f32.gmra.mrb[0].mxu0 %v1566
        %v1659 = vpop.f32.mrb[0].mxu0
        %v1660 = vadd.f32 0.0, %v1659
        %v1661 = vpop.f32.mrb[0].mxu0
        %1662 = vmatprep.mubr.f32.mxu0 0.0
        %1663 = vmatmul.mubr.f32.gmra.mrb[0].mxu0 %v1569
        %v1664 = vpop.f32.mrb[0].mxu0
        %v1665 = vadd.f32 0.0, %v1664
        %v1666 = vpop.f32.mrb[0].mxu0
        %1667 = vmatprep.mubr.f32.mxu0 0.0
        %1668 = vmatmul.mubr.f32.gmra.mrb[0].mxu0 %v1572
        %v1669 = vpop.f32.mrb[0].mxu0
        %v1670 = vadd.f32 0.0, %v1669
        %v1671 = vpop.f32.mrb[0].mxu0
        %1672 = vmatprep.mubr.f32.mxu0 0.0
        %1673 = vmatmul.mubr.f32.gmra.mrb[0].mxu0 %v1575
        %v1674 = vpop.f32.mrb[0].mxu0
        %v1675 = vadd.f32 0.0, %v1674
        %v1676 = vpop.f32.mrb[0].mxu0
        %1677 = vmatprep.mubr.f32.mxu0 0.0
        %1678 = vmatmul.mubr.f32.gmra.mrb[0].mxu0 %v1578
        %v1679 = vpop.f32.mrb[0].mxu0
        %v1680 = vadd.f32 0.0, %v1679
        %v1681 = vpop.f32.mrb[0].mxu0
        %1682 = vmatprep.mubr.f32.mxu0 0.0
        %1683 = vmatmul.mubr.f32.gmra.mrb[0].mxu0 %v1581
        %v1684 = vpop.f32.mrb[0].mxu0
        %v1685 = vadd.f32 0.0, %v1684
        %v1686 = vpop.f32.mrb[0].mxu0
        %1687 = vdwg.mxu0
        %v1688 = vadd.f32 %v536, %v1650
        %v1689 = vadd.f32 %v537, %v1655
        %v1690 = vadd.f32 %v538, %v1660
        %v1691 = vadd.f32 %v539, %v1665
        %v1692 = vadd.f32 %v540, %v1670
        %v1693 = vadd.f32 %v541, %v1675
        %v1694 = vadd.f32 %v542, %v1680
        %v1695 = vadd.f32 %v543, %v1685
        %v1696 = vlaneseq
        %v1697 = vshrl.u32 %v1696, 7
        %v1698 = vsub.s32 0, %v1697
        %v1699 = vrot.slane %v1454, %v1698
        %v1700 = vadd.f32 %v1688, %v1699
        %v1701 = vadd.f32 %v1689, %v1699
        %v1702 = vadd.f32 %v1690, %v1699
        %v1703 = vadd.f32 %v1691, %v1699
        %v1704 = vadd.f32 %v1692, %v1699
        %v1705 = vadd.f32 %v1693, %v1699
        %v1706 = vadd.f32 %v1694, %v1699
        %v1707 = vadd.f32 %v1695, %v1699
        %v1708 = vsel %vm612, %v1700, 0.0
        %1709 = vadd.xlane.f32.xlu0 %v1708
        %v1710 = vpop.xlane.xlu0 %1709
        %v1711 = vsel %vm612, %v1701, 0.0
        %1712 = vadd.xlane.f32.xlu0 %v1711
        %v1713 = vpop.xlane.xlu0 %1712
        %v1714 = vsel %vm612, %v1702, 0.0
        %1715 = vadd.xlane.f32.xlu0 %v1714
        %v1716 = vpop.xlane.xlu0 %1715
        %v1717 = vsel %vm612, %v1703, 0.0
        %1718 = vadd.xlane.f32.xlu0 %v1717
        %v1719 = vpop.xlane.xlu0 %1718
        %v1720 = vsel %vm612, %v1704, 0.0
        %1721 = vadd.xlane.f32.xlu0 %v1720
        %v1722 = vpop.xlane.xlu0 %1721
        %v1723 = vsel %vm612, %v1705, 0.0
        %1724 = vadd.xlane.f32.xlu0 %v1723
        %v1725 = vpop.xlane.xlu0 %1724
        %v1726 = vsel %vm612, %v1706, 0.0
        %1727 = vadd.xlane.f32.xlu0 %v1726
        %v1728 = vpop.xlane.xlu0 %1727
        %v1729 = vsel %vm612, %v1707, 0.0
        %1730 = vadd.xlane.f32.xlu0 %v1729
        %v1731 = vpop.xlane.xlu0 %1730
        %v1732 = vmul.f32 %v1710, %v805
        %v1733 = vmul.f32 %v1713, %v805
        %v1734 = vmul.f32 %v1716, %v805
        %v1735 = vmul.f32 %v1719, %v805
        %v1736 = vmul.f32 %v1722, %v805
        %v1737 = vmul.f32 %v1725, %v805
        %v1738 = vmul.f32 %v1728, %v805
        %v1739 = vmul.f32 %v1731, %v805
        %v1740 = vsub.f32 %v1700, %v1732
        %v1741 = vsub.f32 %v1701, %v1733
        %v1742 = vsub.f32 %v1702, %v1734
        %v1743 = vsub.f32 %v1703, %v1735
        %v1744 = vsub.f32 %v1704, %v1736
        %v1745 = vsub.f32 %v1705, %v1737
        %v1746 = vsub.f32 %v1706, %v1738
        %v1747 = vsub.f32 %v1707, %v1739
        %v1748 = vmul.f32 %v1740, %v1740
        %v1749 = vmul.f32 %v1741, %v1741
        %v1750 = vmul.f32 %v1742, %v1742
        %v1751 = vmul.f32 %v1743, %v1743
        %v1752 = vmul.f32 %v1744, %v1744
        %v1753 = vmul.f32 %v1745, %v1745
        %v1754 = vmul.f32 %v1746, %v1746
        %v1755 = vmul.f32 %v1747, %v1747
        %v1756 = vsel %vm612, %v1748, 0.0
        %1757 = vadd.xlane.f32.xlu0 %v1756
        %v1758 = vpop.xlane.xlu0 %1757
        %v1759 = vsel %vm612, %v1749, 0.0
        %1760 = vadd.xlane.f32.xlu0 %v1759
        %v1761 = vpop.xlane.xlu0 %1760
        %v1762 = vsel %vm612, %v1750, 0.0
        %1763 = vadd.xlane.f32.xlu0 %v1762
        %v1764 = vpop.xlane.xlu0 %1763
        %v1765 = vsel %vm612, %v1751, 0.0
        %1766 = vadd.xlane.f32.xlu0 %v1765
        %v1767 = vpop.xlane.xlu0 %1766
        %v1768 = vsel %vm612, %v1752, 0.0
        %1769 = vadd.xlane.f32.xlu0 %v1768
        %v1770 = vpop.xlane.xlu0 %1769
        %v1771 = vsel %vm612, %v1753, 0.0
        %1772 = vadd.xlane.f32.xlu0 %v1771
        %v1773 = vpop.xlane.xlu0 %1772
        %v1774 = vsel %vm612, %v1754, 0.0
        %1775 = vadd.xlane.f32.xlu0 %v1774
        %v1776 = vpop.xlane.xlu0 %1775
        %v1777 = vsel %vm612, %v1755, 0.0
        %1778 = vadd.xlane.f32.xlu0 %v1777
        %v1779 = vpop.xlane.xlu0 %1778
        %v1780 = vmul.f32 %v1758, %v805
        %v1781 = vmul.f32 %v1761, %v805
        %v1782 = vmul.f32 %v1764, %v805
        %v1783 = vmul.f32 %v1767, %v805
        %v1784 = vmul.f32 %v1770, %v805
        %v1785 = vmul.f32 %v1773, %v805
        %v1786 = vmul.f32 %v1776, %v805
        %v1787 = vmul.f32 %v1779, %v805
        %v1788 = vadd.f32 %v1780, 1e-05
        %v1789 = vadd.f32 %v1781, 1e-05
        %v1790 = vadd.f32 %v1782, 1e-05
        %v1791 = vadd.f32 %v1783, 1e-05
        %v1792 = vadd.f32 %v1784, 1e-05
        %v1793 = vadd.f32 %v1785, 1e-05
        %v1794 = vadd.f32 %v1786, 1e-05
        %v1795 = vadd.f32 %v1787, 1e-05
        %v1796 = vrsqrt.pop %v1788
        %v1797 = vrsqrt.pop %v1789
        %v1798 = vrsqrt.pop %v1790
        %v1799 = vrsqrt.pop %v1791
        %v1800 = vrsqrt.pop %v1792
        %v1801 = vrsqrt.pop %v1793
        %v1802 = vrsqrt.pop %v1794
        %v1803 = vrsqrt.pop %v1795
        %v1804 = vmul.f32 %v1740, %v1796
        %v1805 = vmul.f32 %v1741, %v1797
        %v1806 = vmul.f32 %v1742, %v1798
        %v1807 = vmul.f32 %v1743, %v1799
        %v1808 = vmul.f32 %v1744, %v1800
        %v1809 = vmul.f32 %v1745, %v1801
        %v1810 = vmul.f32 %v1746, %v1802
        %v1811 = vmul.f32 %v1747, %v1803
        %v1812 = vlaneseq
        %v1813 = vshrl.u32 %v1812, 7
        %v1814 = vsub.s32 1, %v1813
        %v1815 = vrot.slane %v1454, %v1814
        %1820 = vrot.lane.b32.xlu0 %v1446, 96
        %v1821 = vpop.permute.xlu0 %1820
        %1822 = vrot.lane.b32.xlu0 %v1448, 96
        %v1823 = vpop.permute.xlu0 %1822
        %1824 = vrot.lane.b32.xlu0 %v1450, 96
        %v1825 = vpop.permute.xlu0 %1824
        %1826 = vrot.lane.b32.xlu0 %v1452, 96
        %v1827 = vpop.permute.xlu0 %1826
        %v1833 = vsel %vm612, %v1804, 0
        %v1836 = vsel %vm612, %v1805, 0
        %v1839 = vsel %vm612, %v1806, 0
        %v1842 = vsel %vm612, %v1807, 0
        %v1845 = vsel %vm612, %v1808, 0
        %v1848 = vsel %vm612, %v1809, 0
        %v1851 = vsel %vm612, %v1810, 0
        %v1854 = vsel %vm612, %v1811, 0
        %1856 = vmatprep.subr.mxu0 0.0
        %1857 = vmatpush1.msra.mxu0 %v1821
        %1858 = vmatprep.subr.mxu0 0.0
        %1859 = vmatpush1.msra.mxu0 %v1823
        %1860 = vmatprep.subr.mxu0 0.0
        %1861 = vmatpush1.msra.mxu0 %v1825
        %1862 = vmatprep.subr.mxu0 0.0
        %1863 = vmatpush1.msra.mxu0 %v1827
        %1864 = vmatprep.subr.mxu0 0.0
        %1865 = vmatpush1.msra.mxu0 0.0
        %1866 = vmatprep.subr.mxu0 0.0
        %1867 = vmatpush1.msra.mxu0 0.0
        %1868 = vmatprep.subr.mxu0 0.0
        %1869 = vmatpush1.msra.mxu0 0.0
        %1870 = vmatprep.subr.mxu0 0.0
        %1871 = vmatpush1.msra.mxu0 0.0
        %1872 = vmatprep.subr.mxu0 0.0
        %1873 = vmatpush1.msra.mxu0 0.0
        %1874 = vmatprep.subr.mxu0 0.0
        %1875 = vmatpush1.msra.mxu0 0.0
        %1876 = vmatprep.subr.mxu0 0.0
        %1877 = vmatpush1.msra.mxu0 0.0
        %1878 = vmatprep.subr.mxu0 0.0
        %1879 = vmatpush1.msra.mxu0 0.0
        %1880 = vmatprep.subr.mxu0 0.0
        %1881 = vmatpush1.msra.mxu0 0.0
        %1882 = vmatprep.subr.mxu0 0.0
        %1883 = vmatpush1.msra.mxu0 0.0
        %1884 = vmatprep.subr.mxu0 0.0
        %1885 = vmatpush1.msra.mxu0 0.0
        %1886 = vmatprep.subr.mxu0 0.0
        %1887 = vmatpush1.msra.mxu0 0.0
        %1888 = vmatprep.subr.mxu0 0.0
        %1889 = vmatpush1.msra.mxu0 0.0
        %1890 = vmatprep.subr.mxu0 0.0
        %1891 = vmatpush1.msra.mxu0 0.0
        %1892 = vmatprep.subr.mxu0 0.0
        %1893 = vmatpush1.msra.mxu0 0.0
        %1894 = vmatprep.subr.mxu0 0.0
        %1895 = vmatpush1.msra.mxu0 0.0
        %1896 = vmatprep.subr.mxu0 0.0
        %1897 = vmatpush1.msra.mxu0 0.0
        %1898 = vmatprep.subr.mxu0 0.0
        %1899 = vmatpush1.msra.mxu0 0.0
        %1900 = vmatprep.subr.mxu0 0.0
        %1901 = vmatpush1.msra.mxu0 0.0
        %1902 = vmatprep.subr.mxu0 0.0
        %1903 = vmatpush1.msra.mxu0 0.0
        %1904 = vmatprep.subr.mxu0 0.0
        %1905 = vmatpush1.msra.mxu0 0.0
        %1906 = vmatprep.subr.mxu0 0.0
        %1907 = vmatpush1.msra.mxu0 0.0
        %1908 = vmatprep.subr.mxu0 0.0
        %1909 = vmatpush1.msra.mxu0 0.0
        %1910 = vmatprep.subr.mxu0 0.0
        %1911 = vmatpush1.msra.mxu0 0.0
        %1912 = vmatprep.subr.mxu0 0.0
        %1913 = vmatpush1.msra.mxu0 0.0
        %1914 = vmatprep.subr.mxu0 0.0
        %1915 = vmatpush1.msra.mxu0 0.0
        %1916 = vmatprep.subr.mxu0 0.0
        %1917 = vmatpush1.msra.mxu0 0.0
        %1918 = vmatprep.subr.mxu0 0.0
        %1919 = vmatpush1.msra.mxu0 0.0
        %1920 = vmatprep.mubr.f32.mxu0 0.0
        %1921 = vmatmul.mubr.f32.gmra.mrb[0].mxu0 %v1833
        %v1922 = vpop.f32.mrb[0].mxu0
        %v1923 = vadd.f32 %v1815, %v1922
        %v1924 = vpop.f32.mrb[0].mxu0
        %1925 = vmatprep.mubr.f32.mxu0 0.0
        %1926 = vmatmul.mubr.f32.gmra.mrb[0].mxu0 %v1836
        %v1927 = vpop.f32.mrb[0].mxu0
        %v1928 = vadd.f32 %v1815, %v1927
        %v1929 = vpop.f32.mrb[0].mxu0
        %1930 = vmatprep.mubr.f32.mxu0 0.0
        %1931 = vmatmul.mubr.f32.gmra.mrb[0].mxu0 %v1839
        %v1932 = vpop.f32.mrb[0].mxu0
        %v1933 = vadd.f32 %v1815, %v1932
        %v1934 = vpop.f32.mrb[0].mxu0
        %1935 = vmatprep.mubr.f32.mxu0 0.0
        %1936 = vmatmul.mubr.f32.gmra.mrb[0].mxu0 %v1842
        %v1937 = vpop.f32.mrb[0].mxu0
        %v1938 = vadd.f32 %v1815, %v1937
        %v1939 = vpop.f32.mrb[0].mxu0
        %1940 = vmatprep.mubr.f32.mxu0 0.0
        %1941 = vmatmul.mubr.f32.gmra.mrb[0].mxu0 %v1845
        %v1942 = vpop.f32.mrb[0].mxu0
        %v1943 = vadd.f32 %v1815, %v1942
        %v1944 = vpop.f32.mrb[0].mxu0
        %1945 = vmatprep.mubr.f32.mxu0 0.0
        %1946 = vmatmul.mubr.f32.gmra.mrb[0].mxu0 %v1848
        %v1947 = vpop.f32.mrb[0].mxu0
        %v1948 = vadd.f32 %v1815, %v1947
        %v1949 = vpop.f32.mrb[0].mxu0
        %1950 = vmatprep.mubr.f32.mxu0 0.0
        %1951 = vmatmul.mubr.f32.gmra.mrb[0].mxu0 %v1851
        %v1952 = vpop.f32.mrb[0].mxu0
        %v1953 = vadd.f32 %v1815, %v1952
        %v1954 = vpop.f32.mrb[0].mxu0
        %1955 = vmatprep.mubr.f32.mxu0 0.0
        %1956 = vmatmul.mubr.f32.gmra.mrb[0].mxu0 %v1854
        %v1957 = vpop.f32.mrb[0].mxu0
        %v1958 = vadd.f32 %v1815, %v1957
        %v1959 = vpop.f32.mrb[0].mxu0
        %1960 = vdwg.mxu0
        %1961 = vrot.lane.b32.xlu0 %v1446, 64
        %v1962 = vpop.permute.xlu0 %1961
        %1963 = vrot.lane.b32.xlu0 %v1448, 64
        %v1964 = vpop.permute.xlu0 %1963
        %1965 = vrot.lane.b32.xlu0 %v1450, 64
        %v1966 = vpop.permute.xlu0 %1965
        %1967 = vrot.lane.b32.xlu0 %v1452, 64
        %v1968 = vpop.permute.xlu0 %1967
        %v1974 = vsel %vm612, %v1382, 0
        %v1977 = vsel %vm612, %v1383, 0
        %v1980 = vsel %vm612, %v1384, 0
        %v1983 = vsel %vm612, %v1385, 0
        %v1986 = vsel %vm612, %v1386, 0
        %v1989 = vsel %vm612, %v1387, 0
        %v1992 = vsel %vm612, %v1388, 0
        %v1995 = vsel %vm612, %v1389, 0
        %v1998 = vsel %vm612, %v1390, 0
        %v2001 = vsel %vm612, %v1391, 0
        %v2004 = vsel %vm612, %v1392, 0
        %v2007 = vsel %vm612, %v1393, 0
        %v2010 = vsel %vm612, %v1394, 0
        %v2013 = vsel %vm612, %v1395, 0
        %v2016 = vsel %vm612, %v1396, 0
        %v2019 = vsel %vm612, %v1397, 0
        %v2022 = vsel %vm612, %v1398, 0
        %v2025 = vsel %vm612, %v1399, 0
        %v2028 = vsel %vm612, %v1400, 0
        %v2031 = vsel %vm612, %v1401, 0
        %v2034 = vsel %vm612, %v1402, 0
        %v2037 = vsel %vm612, %v1403, 0
        %v2040 = vsel %vm612, %v1404, 0
        %v2043 = vsel %vm612, %v1405, 0
        %v2046 = vsel %vm612, %v1406, 0
        %v2049 = vsel %vm612, %v1407, 0
        %v2052 = vsel %vm612, %v1408, 0
        %v2055 = vsel %vm612, %v1409, 0
        %v2058 = vsel %vm612, %v1410, 0
        %v2061 = vsel %vm612, %v1411, 0
        %v2064 = vsel %vm612, %v1412, 0
        %v2067 = vsel %vm612, %v1413, 0
        %v2070 = vsel %vm612, %v1414, 0
        %v2073 = vsel %vm612, %v1415, 0
        %v2076 = vsel %vm612, %v1416, 0
        %v2079 = vsel %vm612, %v1417, 0
        %v2082 = vsel %vm612, %v1418, 0
        %v2085 = vsel %vm612, %v1419, 0
        %v2088 = vsel %vm612, %v1420, 0
        %v2091 = vsel %vm612, %v1421, 0
        %v2094 = vsel %vm612, %v1422, 0
        %v2097 = vsel %vm612, %v1423, 0
        %v2100 = vsel %vm612, %v1424, 0
        %v2103 = vsel %vm612, %v1425, 0
        %v2106 = vsel %vm612, %v1426, 0
        %v2109 = vsel %vm612, %v1427, 0
        %v2112 = vsel %vm612, %v1428, 0
        %v2115 = vsel %vm612, %v1429, 0
        %v2118 = vsel %vm612, %v1430, 0
        %v2121 = vsel %vm612, %v1431, 0
        %v2124 = vsel %vm612, %v1432, 0
        %v2127 = vsel %vm612, %v1433, 0
        %v2130 = vsel %vm612, %v1434, 0
        %v2133 = vsel %vm612, %v1435, 0
        %v2136 = vsel %vm612, %v1436, 0
        %v2139 = vsel %vm612, %v1437, 0
        %v2142 = vsel %vm612, %v1438, 0
        %v2145 = vsel %vm612, %v1439, 0
        %v2148 = vsel %vm612, %v1440, 0
        %v2151 = vsel %vm612, %v1441, 0
        %v2154 = vsel %vm612, %v1442, 0
        %v2157 = vsel %vm612, %v1443, 0
        %v2160 = vsel %vm612, %v1444, 0
        %v2163 = vsel %vm612, %v1445, 0
        %2165 = vmatprep.subr.mxu0 0.0
        %2166 = vmatpush1.msra.mxu0 %v1962
        %2167 = vmatprep.subr.mxu0 0.0
        %2168 = vmatpush1.msra.mxu0 %v1964
        %2169 = vmatprep.subr.mxu0 0.0
        %2170 = vmatpush1.msra.mxu0 %v1966
        %2171 = vmatprep.subr.mxu0 0.0
        %2172 = vmatpush1.msra.mxu0 %v1968
        %2173 = vmatprep.subr.mxu0 0.0
        %2174 = vmatpush1.msra.mxu0 0.0
        %2175 = vmatprep.subr.mxu0 0.0
        %2176 = vmatpush1.msra.mxu0 0.0
        %2177 = vmatprep.subr.mxu0 0.0
        %2178 = vmatpush1.msra.mxu0 0.0
        %2179 = vmatprep.subr.mxu0 0.0
        %2180 = vmatpush1.msra.mxu0 0.0
        %2181 = vmatprep.subr.mxu0 0.0
        %2182 = vmatpush1.msra.mxu0 0.0
        %2183 = vmatprep.subr.mxu0 0.0
        %2184 = vmatpush1.msra.mxu0 0.0
        %2185 = vmatprep.subr.mxu0 0.0
        %2186 = vmatpush1.msra.mxu0 0.0
        %2187 = vmatprep.subr.mxu0 0.0
        %2188 = vmatpush1.msra.mxu0 0.0
        %2189 = vmatprep.subr.mxu0 0.0
        %2190 = vmatpush1.msra.mxu0 0.0
        %2191 = vmatprep.subr.mxu0 0.0
        %2192 = vmatpush1.msra.mxu0 0.0
        %2193 = vmatprep.subr.mxu0 0.0
        %2194 = vmatpush1.msra.mxu0 0.0
        %2195 = vmatprep.subr.mxu0 0.0
        %2196 = vmatpush1.msra.mxu0 0.0
        %2197 = vmatprep.subr.mxu0 0.0
        %2198 = vmatpush1.msra.mxu0 0.0
        %2199 = vmatprep.subr.mxu0 0.0
        %2200 = vmatpush1.msra.mxu0 0.0
        %2201 = vmatprep.subr.mxu0 0.0
        %2202 = vmatpush1.msra.mxu0 0.0
        %2203 = vmatprep.subr.mxu0 0.0
        %2204 = vmatpush1.msra.mxu0 0.0
        %2205 = vmatprep.subr.mxu0 0.0
        %2206 = vmatpush1.msra.mxu0 0.0
        %2207 = vmatprep.subr.mxu0 0.0
        %2208 = vmatpush1.msra.mxu0 0.0
        %2209 = vmatprep.subr.mxu0 0.0
        %2210 = vmatpush1.msra.mxu0 0.0
        %2211 = vmatprep.subr.mxu0 0.0
        %2212 = vmatpush1.msra.mxu0 0.0
        %2213 = vmatprep.subr.mxu0 0.0
        %2214 = vmatpush1.msra.mxu0 0.0
        %2215 = vmatprep.subr.mxu0 0.0
        %2216 = vmatpush1.msra.mxu0 0.0
        %2217 = vmatprep.subr.mxu0 0.0
        %2218 = vmatpush1.msra.mxu0 0.0
        %2219 = vmatprep.subr.mxu0 0.0
        %2220 = vmatpush1.msra.mxu0 0.0
        %2221 = vmatprep.subr.mxu0 0.0
        %2222 = vmatpush1.msra.mxu0 0.0
        %2223 = vmatprep.subr.mxu0 0.0
        %2224 = vmatpush1.msra.mxu0 0.0
        %2225 = vmatprep.subr.mxu0 0.0
        %2226 = vmatpush1.msra.mxu0 0.0
        %2227 = vmatprep.subr.mxu0 0.0
        %2228 = vmatpush1.msra.mxu0 0.0
        %2229 = vmatprep.mubr.f32.mxu0 0.0
        %2230 = vmatmul.mubr.f32.gmra.mrb[0].mxu0 %v1974
        %v2231 = vpop.f32.mrb[0].mxu0
        %v2232 = vadd.f32 0.0, %v2231
        %v2233 = vpop.f32.mrb[0].mxu0
        %2234 = vmatprep.mubr.f32.mxu0 0.0
        %2235 = vmatmul.mubr.f32.gmra.mrb[0].mxu0 %v1977
        %v2236 = vpop.f32.mrb[0].mxu0
        %v2237 = vadd.f32 0.0, %v2236
        %v2238 = vpop.f32.mrb[0].mxu0
        %2239 = vmatprep.mubr.f32.mxu0 0.0
        %2240 = vmatmul.mubr.f32.gmra.mrb[0].mxu0 %v1980
        %v2241 = vpop.f32.mrb[0].mxu0
        %v2242 = vadd.f32 0.0, %v2241
        %v2243 = vpop.f32.mrb[0].mxu0
        %2244 = vmatprep.mubr.f32.mxu0 0.0
        %2245 = vmatmul.mubr.f32.gmra.mrb[0].mxu0 %v1983
        %v2246 = vpop.f32.mrb[0].mxu0
        %v2247 = vadd.f32 0.0, %v2246
        %v2248 = vpop.f32.mrb[0].mxu0
        %2249 = vmatprep.mubr.f32.mxu0 0.0
        %2250 = vmatmul.mubr.f32.gmra.mrb[0].mxu0 %v1986
        %v2251 = vpop.f32.mrb[0].mxu0
        %v2252 = vadd.f32 0.0, %v2251
        %v2253 = vpop.f32.mrb[0].mxu0
        %2254 = vmatprep.mubr.f32.mxu0 0.0
        %2255 = vmatmul.mubr.f32.gmra.mrb[0].mxu0 %v1989
        %v2256 = vpop.f32.mrb[0].mxu0
        %v2257 = vadd.f32 0.0, %v2256
        %v2258 = vpop.f32.mrb[0].mxu0
        %2259 = vmatprep.mubr.f32.mxu0 0.0
        %2260 = vmatmul.mubr.f32.gmra.mrb[0].mxu0 %v1992
        %v2261 = vpop.f32.mrb[0].mxu0
        %v2262 = vadd.f32 0.0, %v2261
        %v2263 = vpop.f32.mrb[0].mxu0
        %2264 = vmatprep.mubr.f32.mxu0 0.0
        %2265 = vmatmul.mubr.f32.gmra.mrb[0].mxu0 %v1995
        %v2266 = vpop.f32.mrb[0].mxu0
        %v2267 = vadd.f32 0.0, %v2266
        %v2268 = vpop.f32.mrb[0].mxu0
        %2269 = vmatprep.mubr.f32.mxu0 0.0
        %2270 = vmatmul.mubr.f32.gmra.mrb[0].mxu0 %v1998
        %v2271 = vpop.f32.mrb[0].mxu0
        %v2272 = vadd.f32 0.0, %v2271
        %v2273 = vpop.f32.mrb[0].mxu0
        %2274 = vmatprep.mubr.f32.mxu0 0.0
        %2275 = vmatmul.mubr.f32.gmra.mrb[0].mxu0 %v2001
        %v2276 = vpop.f32.mrb[0].mxu0
        %v2277 = vadd.f32 0.0, %v2276
        %v2278 = vpop.f32.mrb[0].mxu0
        %2279 = vmatprep.mubr.f32.mxu0 0.0
        %2280 = vmatmul.mubr.f32.gmra.mrb[0].mxu0 %v2004
        %v2281 = vpop.f32.mrb[0].mxu0
        %v2282 = vadd.f32 0.0, %v2281
        %v2283 = vpop.f32.mrb[0].mxu0
        %2284 = vmatprep.mubr.f32.mxu0 0.0
        %2285 = vmatmul.mubr.f32.gmra.mrb[0].mxu0 %v2007
        %v2286 = vpop.f32.mrb[0].mxu0
        %v2287 = vadd.f32 0.0, %v2286
        %v2288 = vpop.f32.mrb[0].mxu0
        %2289 = vmatprep.mubr.f32.mxu0 0.0
        %2290 = vmatmul.mubr.f32.gmra.mrb[0].mxu0 %v2010
        %v2291 = vpop.f32.mrb[0].mxu0
        %v2292 = vadd.f32 0.0, %v2291
        %v2293 = vpop.f32.mrb[0].mxu0
        %2294 = vmatprep.mubr.f32.mxu0 0.0
        %2295 = vmatmul.mubr.f32.gmra.mrb[0].mxu0 %v2013
        %v2296 = vpop.f32.mrb[0].mxu0
        %v2297 = vadd.f32 0.0, %v2296
        %v2298 = vpop.f32.mrb[0].mxu0
        %2299 = vmatprep.mubr.f32.mxu0 0.0
        %2300 = vmatmul.mubr.f32.gmra.mrb[0].mxu0 %v2016
        %v2301 = vpop.f32.mrb[0].mxu0
        %v2302 = vadd.f32 0.0, %v2301
        %v2303 = vpop.f32.mrb[0].mxu0
        %2304 = vmatprep.mubr.f32.mxu0 0.0
        %2305 = vmatmul.mubr.f32.gmra.mrb[0].mxu0 %v2019
        %v2306 = vpop.f32.mrb[0].mxu0
        %v2307 = vadd.f32 0.0, %v2306
        %v2308 = vpop.f32.mrb[0].mxu0
        %2309 = vmatprep.mubr.f32.mxu0 0.0
        %2310 = vmatmul.mubr.f32.gmra.mrb[0].mxu0 %v2022
        %v2311 = vpop.f32.mrb[0].mxu0
        %v2312 = vadd.f32 0.0, %v2311
        %v2313 = vpop.f32.mrb[0].mxu0
        %2314 = vmatprep.mubr.f32.mxu0 0.0
        %2315 = vmatmul.mubr.f32.gmra.mrb[0].mxu0 %v2025
        %v2316 = vpop.f32.mrb[0].mxu0
        %v2317 = vadd.f32 0.0, %v2316
        %v2318 = vpop.f32.mrb[0].mxu0
        %2319 = vmatprep.mubr.f32.mxu0 0.0
        %2320 = vmatmul.mubr.f32.gmra.mrb[0].mxu0 %v2028
        %v2321 = vpop.f32.mrb[0].mxu0
        %v2322 = vadd.f32 0.0, %v2321
        %v2323 = vpop.f32.mrb[0].mxu0
        %2324 = vmatprep.mubr.f32.mxu0 0.0
        %2325 = vmatmul.mubr.f32.gmra.mrb[0].mxu0 %v2031
        %v2326 = vpop.f32.mrb[0].mxu0
        %v2327 = vadd.f32 0.0, %v2326
        %v2328 = vpop.f32.mrb[0].mxu0
        %2329 = vmatprep.mubr.f32.mxu0 0.0
        %2330 = vmatmul.mubr.f32.gmra.mrb[0].mxu0 %v2034
        %v2331 = vpop.f32.mrb[0].mxu0
        %v2332 = vadd.f32 0.0, %v2331
        %v2333 = vpop.f32.mrb[0].mxu0
        %2334 = vmatprep.mubr.f32.mxu0 0.0
        %2335 = vmatmul.mubr.f32.gmra.mrb[0].mxu0 %v2037
        %v2336 = vpop.f32.mrb[0].mxu0
        %v2337 = vadd.f32 0.0, %v2336
        %v2338 = vpop.f32.mrb[0].mxu0
        %2339 = vmatprep.mubr.f32.mxu0 0.0
        %2340 = vmatmul.mubr.f32.gmra.mrb[0].mxu0 %v2040
        %v2341 = vpop.f32.mrb[0].mxu0
        %v2342 = vadd.f32 0.0, %v2341
        %v2343 = vpop.f32.mrb[0].mxu0
        %2344 = vmatprep.mubr.f32.mxu0 0.0
        %2345 = vmatmul.mubr.f32.gmra.mrb[0].mxu0 %v2043
        %v2346 = vpop.f32.mrb[0].mxu0
        %v2347 = vadd.f32 0.0, %v2346
        %v2348 = vpop.f32.mrb[0].mxu0
        %2349 = vmatprep.mubr.f32.mxu0 0.0
        %2350 = vmatmul.mubr.f32.gmra.mrb[0].mxu0 %v2046
        %v2351 = vpop.f32.mrb[0].mxu0
        %v2352 = vadd.f32 0.0, %v2351
        %v2353 = vpop.f32.mrb[0].mxu0
        %2354 = vmatprep.mubr.f32.mxu0 0.0
        %2355 = vmatmul.mubr.f32.gmra.mrb[0].mxu0 %v2049
        %v2356 = vpop.f32.mrb[0].mxu0
        %v2357 = vadd.f32 0.0, %v2356
        %v2358 = vpop.f32.mrb[0].mxu0
        %2359 = vmatprep.mubr.f32.mxu0 0.0
        %2360 = vmatmul.mubr.f32.gmra.mrb[0].mxu0 %v2052
        %v2361 = vpop.f32.mrb[0].mxu0
        %v2362 = vadd.f32 0.0, %v2361
        %v2363 = vpop.f32.mrb[0].mxu0
        %2364 = vmatprep.mubr.f32.mxu0 0.0
        %2365 = vmatmul.mubr.f32.gmra.mrb[0].mxu0 %v2055
        %v2366 = vpop.f32.mrb[0].mxu0
        %v2367 = vadd.f32 0.0, %v2366
        %v2368 = vpop.f32.mrb[0].mxu0
        %2369 = vmatprep.mubr.f32.mxu0 0.0
        %2370 = vmatmul.mubr.f32.gmra.mrb[0].mxu0 %v2058
        %v2371 = vpop.f32.mrb[0].mxu0
        %v2372 = vadd.f32 0.0, %v2371
        %v2373 = vpop.f32.mrb[0].mxu0
        %2374 = vmatprep.mubr.f32.mxu0 0.0
        %2375 = vmatmul.mubr.f32.gmra.mrb[0].mxu0 %v2061
        %v2376 = vpop.f32.mrb[0].mxu0
        %v2377 = vadd.f32 0.0, %v2376
        %v2378 = vpop.f32.mrb[0].mxu0
        %2379 = vmatprep.mubr.f32.mxu0 0.0
        %2380 = vmatmul.mubr.f32.gmra.mrb[0].mxu0 %v2064
        %v2381 = vpop.f32.mrb[0].mxu0
        %v2382 = vadd.f32 0.0, %v2381
        %v2383 = vpop.f32.mrb[0].mxu0
        %2384 = vmatprep.mubr.f32.mxu0 0.0
        %2385 = vmatmul.mubr.f32.gmra.mrb[0].mxu0 %v2067
        %v2386 = vpop.f32.mrb[0].mxu0
        %v2387 = vadd.f32 0.0, %v2386
        %v2388 = vpop.f32.mrb[0].mxu0
        %2389 = vmatprep.mubr.f32.mxu0 0.0
        %2390 = vmatmul.mubr.f32.gmra.mrb[0].mxu0 %v2070
        %v2391 = vpop.f32.mrb[0].mxu0
        %v2392 = vadd.f32 0.0, %v2391
        %v2393 = vpop.f32.mrb[0].mxu0
        %2394 = vmatprep.mubr.f32.mxu0 0.0
        %2395 = vmatmul.mubr.f32.gmra.mrb[0].mxu0 %v2073
        %v2396 = vpop.f32.mrb[0].mxu0
        %v2397 = vadd.f32 0.0, %v2396
        %v2398 = vpop.f32.mrb[0].mxu0
        %2399 = vmatprep.mubr.f32.mxu0 0.0
        %2400 = vmatmul.mubr.f32.gmra.mrb[0].mxu0 %v2076
        %v2401 = vpop.f32.mrb[0].mxu0
        %v2402 = vadd.f32 0.0, %v2401
        %v2403 = vpop.f32.mrb[0].mxu0
        %2404 = vmatprep.mubr.f32.mxu0 0.0
        %2405 = vmatmul.mubr.f32.gmra.mrb[0].mxu0 %v2079
        %v2406 = vpop.f32.mrb[0].mxu0
        %v2407 = vadd.f32 0.0, %v2406
        %v2408 = vpop.f32.mrb[0].mxu0
        %2409 = vmatprep.mubr.f32.mxu0 0.0
        %2410 = vmatmul.mubr.f32.gmra.mrb[0].mxu0 %v2082
        %v2411 = vpop.f32.mrb[0].mxu0
        %v2412 = vadd.f32 0.0, %v2411
        %v2413 = vpop.f32.mrb[0].mxu0
        %2414 = vmatprep.mubr.f32.mxu0 0.0
        %2415 = vmatmul.mubr.f32.gmra.mrb[0].mxu0 %v2085
        %v2416 = vpop.f32.mrb[0].mxu0
        %v2417 = vadd.f32 0.0, %v2416
        %v2418 = vpop.f32.mrb[0].mxu0
        %2419 = vmatprep.mubr.f32.mxu0 0.0
        %2420 = vmatmul.mubr.f32.gmra.mrb[0].mxu0 %v2088
        %v2421 = vpop.f32.mrb[0].mxu0
        %v2422 = vadd.f32 0.0, %v2421
        %v2423 = vpop.f32.mrb[0].mxu0
        %2424 = vmatprep.mubr.f32.mxu0 0.0
        %2425 = vmatmul.mubr.f32.gmra.mrb[0].mxu0 %v2091
        %v2426 = vpop.f32.mrb[0].mxu0
        %v2427 = vadd.f32 0.0, %v2426
        %v2428 = vpop.f32.mrb[0].mxu0
        %2429 = vmatprep.mubr.f32.mxu0 0.0
        %2430 = vmatmul.mubr.f32.gmra.mrb[0].mxu0 %v2094
        %v2431 = vpop.f32.mrb[0].mxu0
        %v2432 = vadd.f32 0.0, %v2431
        %v2433 = vpop.f32.mrb[0].mxu0
        %2434 = vmatprep.mubr.f32.mxu0 0.0
        %2435 = vmatmul.mubr.f32.gmra.mrb[0].mxu0 %v2097
        %v2436 = vpop.f32.mrb[0].mxu0
        %v2437 = vadd.f32 0.0, %v2436
        %v2438 = vpop.f32.mrb[0].mxu0
        %2439 = vmatprep.mubr.f32.mxu0 0.0
        %2440 = vmatmul.mubr.f32.gmra.mrb[0].mxu0 %v2100
        %v2441 = vpop.f32.mrb[0].mxu0
        %v2442 = vadd.f32 0.0, %v2441
        %v2443 = vpop.f32.mrb[0].mxu0
        %2444 = vmatprep.mubr.f32.mxu0 0.0
        %2445 = vmatmul.mubr.f32.gmra.mrb[0].mxu0 %v2103
        %v2446 = vpop.f32.mrb[0].mxu0
        %v2447 = vadd.f32 0.0, %v2446
        %v2448 = vpop.f32.mrb[0].mxu0
        %2449 = vmatprep.mubr.f32.mxu0 0.0
        %2450 = vmatmul.mubr.f32.gmra.mrb[0].mxu0 %v2106
        %v2451 = vpop.f32.mrb[0].mxu0
        %v2452 = vadd.f32 0.0, %v2451
        %v2453 = vpop.f32.mrb[0].mxu0
        %2454 = vmatprep.mubr.f32.mxu0 0.0
        %2455 = vmatmul.mubr.f32.gmra.mrb[0].mxu0 %v2109
        %v2456 = vpop.f32.mrb[0].mxu0
        %v2457 = vadd.f32 0.0, %v2456
        %v2458 = vpop.f32.mrb[0].mxu0
        %2459 = vmatprep.mubr.f32.mxu0 0.0
        %2460 = vmatmul.mubr.f32.gmra.mrb[0].mxu0 %v2112
        %v2461 = vpop.f32.mrb[0].mxu0
        %v2462 = vadd.f32 0.0, %v2461
        %v2463 = vpop.f32.mrb[0].mxu0
        %2464 = vmatprep.mubr.f32.mxu0 0.0
        %2465 = vmatmul.mubr.f32.gmra.mrb[0].mxu0 %v2115
        %v2466 = vpop.f32.mrb[0].mxu0
        %v2467 = vadd.f32 0.0, %v2466
        %v2468 = vpop.f32.mrb[0].mxu0
        %2469 = vmatprep.mubr.f32.mxu0 0.0
        %2470 = vmatmul.mubr.f32.gmra.mrb[0].mxu0 %v2118
        %v2471 = vpop.f32.mrb[0].mxu0
        %v2472 = vadd.f32 0.0, %v2471
        %v2473 = vpop.f32.mrb[0].mxu0
        %2474 = vmatprep.mubr.f32.mxu0 0.0
        %2475 = vmatmul.mubr.f32.gmra.mrb[0].mxu0 %v2121
        %v2476 = vpop.f32.mrb[0].mxu0
        %v2477 = vadd.f32 0.0, %v2476
        %v2478 = vpop.f32.mrb[0].mxu0
        %2479 = vmatprep.mubr.f32.mxu0 0.0
        %2480 = vmatmul.mubr.f32.gmra.mrb[0].mxu0 %v2124
        %v2481 = vpop.f32.mrb[0].mxu0
        %v2482 = vadd.f32 0.0, %v2481
        %v2483 = vpop.f32.mrb[0].mxu0
        %2484 = vmatprep.mubr.f32.mxu0 0.0
        %2485 = vmatmul.mubr.f32.gmra.mrb[0].mxu0 %v2127
        %v2486 = vpop.f32.mrb[0].mxu0
        %v2487 = vadd.f32 0.0, %v2486
        %v2488 = vpop.f32.mrb[0].mxu0
        %2489 = vmatprep.mubr.f32.mxu0 0.0
        %2490 = vmatmul.mubr.f32.gmra.mrb[0].mxu0 %v2130
        %v2491 = vpop.f32.mrb[0].mxu0
        %v2492 = vadd.f32 0.0, %v2491
        %v2493 = vpop.f32.mrb[0].mxu0
        %2494 = vmatprep.mubr.f32.mxu0 0.0
        %2495 = vmatmul.mubr.f32.gmra.mrb[0].mxu0 %v2133
        %v2496 = vpop.f32.mrb[0].mxu0
        %v2497 = vadd.f32 0.0, %v2496
        %v2498 = vpop.f32.mrb[0].mxu0
        %2499 = vmatprep.mubr.f32.mxu0 0.0
        %2500 = vmatmul.mubr.f32.gmra.mrb[0].mxu0 %v2136
        %v2501 = vpop.f32.mrb[0].mxu0
        %v2502 = vadd.f32 0.0, %v2501
        %v2503 = vpop.f32.mrb[0].mxu0
        %2504 = vmatprep.mubr.f32.mxu0 0.0
        %2505 = vmatmul.mubr.f32.gmra.mrb[0].mxu0 %v2139
        %v2506 = vpop.f32.mrb[0].mxu0
        %v2507 = vadd.f32 0.0, %v2506
        %v2508 = vpop.f32.mrb[0].mxu0
        %2509 = vmatprep.mubr.f32.mxu0 0.0
        %2510 = vmatmul.mubr.f32.gmra.mrb[0].mxu0 %v2142
        %v2511 = vpop.f32.mrb[0].mxu0
        %v2512 = vadd.f32 0.0, %v2511
        %v2513 = vpop.f32.mrb[0].mxu0
        %2514 = vmatprep.mubr.f32.mxu0 0.0
        %2515 = vmatmul.mubr.f32.gmra.mrb[0].mxu0 %v2145
        %v2516 = vpop.f32.mrb[0].mxu0
        %v2517 = vadd.f32 0.0, %v2516
        %v2518 = vpop.f32.mrb[0].mxu0
        %2519 = vmatprep.mubr.f32.mxu0 0.0
        %2520 = vmatmul.mubr.f32.gmra.mrb[0].mxu0 %v2148
        %v2521 = vpop.f32.mrb[0].mxu0
        %v2522 = vadd.f32 0.0, %v2521
        %v2523 = vpop.f32.mrb[0].mxu0
        %2524 = vmatprep.mubr.f32.mxu0 0.0
        %2525 = vmatmul.mubr.f32.gmra.mrb[0].mxu0 %v2151
        %v2526 = vpop.f32.mrb[0].mxu0
        %v2527 = vadd.f32 0.0, %v2526
        %v2528 = vpop.f32.mrb[0].mxu0
        %2529 = vmatprep.mubr.f32.mxu0 0.0
        %2530 = vmatmul.mubr.f32.gmra.mrb[0].mxu0 %v2154
        %v2531 = vpop.f32.mrb[0].mxu0
        %v2532 = vadd.f32 0.0, %v2531
        %v2533 = vpop.f32.mrb[0].mxu0
        %2534 = vmatprep.mubr.f32.mxu0 0.0
        %2535 = vmatmul.mubr.f32.gmra.mrb[0].mxu0 %v2157
        %v2536 = vpop.f32.mrb[0].mxu0
        %v2537 = vadd.f32 0.0, %v2536
        %v2538 = vpop.f32.mrb[0].mxu0
        %2539 = vmatprep.mubr.f32.mxu0 0.0
        %2540 = vmatmul.mubr.f32.gmra.mrb[0].mxu0 %v2160
        %v2541 = vpop.f32.mrb[0].mxu0
        %v2542 = vadd.f32 0.0, %v2541
        %v2543 = vpop.f32.mrb[0].mxu0
        %2544 = vmatprep.mubr.f32.mxu0 0.0
        %2545 = vmatmul.mubr.f32.gmra.mrb[0].mxu0 %v2163
        %v2546 = vpop.f32.mrb[0].mxu0
        %v2547 = vadd.f32 0.0, %v2546
        %v2548 = vpop.f32.mrb[0].mxu0
        %2549 = vdwg.mxu0
        %v2550 = vlaneseq
        %v2551 = vshrl.u32 %v2550, 7
        %v2552 = vsub.s32 2, %v2551
        %v2553 = vrot.slane %v1454, %v2552
        %v2554 = vadd.f32 %v2232, %v2553
        %v2555 = vadd.f32 %v2237, %v2553
        %v2556 = vadd.f32 %v2242, %v2553
        %v2557 = vadd.f32 %v2247, %v2553
        %v2558 = vadd.f32 %v2252, %v2553
        %v2559 = vadd.f32 %v2257, %v2553
        %v2560 = vadd.f32 %v2262, %v2553
        %v2561 = vadd.f32 %v2267, %v2553
        %v2562 = vadd.f32 %v2272, %v2553
        %v2563 = vadd.f32 %v2277, %v2553
        %v2564 = vadd.f32 %v2282, %v2553
        %v2565 = vadd.f32 %v2287, %v2553
        %v2566 = vadd.f32 %v2292, %v2553
        %v2567 = vadd.f32 %v2297, %v2553
        %v2568 = vadd.f32 %v2302, %v2553
        %v2569 = vadd.f32 %v2307, %v2553
        %v2570 = vadd.f32 %v2312, %v2553
        %v2571 = vadd.f32 %v2317, %v2553
        %v2572 = vadd.f32 %v2322, %v2553
        %v2573 = vadd.f32 %v2327, %v2553
        %v2574 = vadd.f32 %v2332, %v2553
        %v2575 = vadd.f32 %v2337, %v2553
        %v2576 = vadd.f32 %v2342, %v2553
        %v2577 = vadd.f32 %v2347, %v2553
        %v2578 = vadd.f32 %v2352, %v2553
        %v2579 = vadd.f32 %v2357, %v2553
        %v2580 = vadd.f32 %v2362, %v2553
        %v2581 = vadd.f32 %v2367, %v2553
        %v2582 = vadd.f32 %v2372, %v2553
        %v2583 = vadd.f32 %v2377, %v2553
        %v2584 = vadd.f32 %v2382, %v2553
        %v2585 = vadd.f32 %v2387, %v2553
        %v2586 = vadd.f32 %v2392, %v2553
        %v2587 = vadd.f32 %v2397, %v2553
        %v2588 = vadd.f32 %v2402, %v2553
        %v2589 = vadd.f32 %v2407, %v2553
        %v2590 = vadd.f32 %v2412, %v2553
        %v2591 = vadd.f32 %v2417, %v2553
        %v2592 = vadd.f32 %v2422, %v2553
        %v2593 = vadd.f32 %v2427, %v2553
        %v2594 = vadd.f32 %v2432, %v2553
        %v2595 = vadd.f32 %v2437, %v2553
        %v2596 = vadd.f32 %v2442, %v2553
        %v2597 = vadd.f32 %v2447, %v2553
        %v2598 = vadd.f32 %v2452, %v2553
        %v2599 = vadd.f32 %v2457, %v2553
        %v2600 = vadd.f32 %v2462, %v2553
        %v2601 = vadd.f32 %v2467, %v2553
        %v2602 = vadd.f32 %v2472, %v2553
        %v2603 = vadd.f32 %v2477, %v2553
        %v2604 = vadd.f32 %v2482, %v2553
        %v2605 = vadd.f32 %v2487, %v2553
        %v2606 = vadd.f32 %v2492, %v2553
        %v2607 = vadd.f32 %v2497, %v2553
        %v2608 = vadd.f32 %v2502, %v2553
        %v2609 = vadd.f32 %v2507, %v2553
        %v2610 = vadd.f32 %v2512, %v2553
        %v2611 = vadd.f32 %v2517, %v2553
        %v2612 = vadd.f32 %v2522, %v2553
        %v2613 = vadd.f32 %v2527, %v2553
        %v2614 = vadd.f32 %v2532, %v2553
        %v2615 = vadd.f32 %v2537, %v2553
        %v2616 = vadd.f32 %v2542, %v2553
        %v2617 = vadd.f32 %v2547, %v2553
        %v2618 = vlaneseq
        %v2619 = vshrl.u32 %v2618, 7
        %v2620 = vsub.s32 3, %v2619
        %v2621 = vrot.slane %v1454, %v2620
        %2623 = vrot.lane.b32.xlu0 %v2621, 32
        %v2624 = vpop.permute.xlu0 %2623
        %v2626 = vadd.f32 %v2232, %v2624
        %v2627 = vadd.f32 %v2237, %v2624
        %v2628 = vadd.f32 %v2242, %v2624
        %v2629 = vadd.f32 %v2247, %v2624
        %v2630 = vadd.f32 %v2252, %v2624
        %v2631 = vadd.f32 %v2257, %v2624
        %v2632 = vadd.f32 %v2262, %v2624
        %v2633 = vadd.f32 %v2267, %v2624
        %v2634 = vadd.f32 %v2272, %v2624
        %v2635 = vadd.f32 %v2277, %v2624
        %v2636 = vadd.f32 %v2282, %v2624
        %v2637 = vadd.f32 %v2287, %v2624
        %v2638 = vadd.f32 %v2292, %v2624
        %v2639 = vadd.f32 %v2297, %v2624
        %v2640 = vadd.f32 %v2302, %v2624
        %v2641 = vadd.f32 %v2307, %v2624
        %v2642 = vadd.f32 %v2312, %v2624
        %v2643 = vadd.f32 %v2317, %v2624
        %v2644 = vadd.f32 %v2322, %v2624
        %v2645 = vadd.f32 %v2327, %v2624
        %v2646 = vadd.f32 %v2332, %v2624
        %v2647 = vadd.f32 %v2337, %v2624
        %v2648 = vadd.f32 %v2342, %v2624
        %v2649 = vadd.f32 %v2347, %v2624
        %v2650 = vadd.f32 %v2352, %v2624
        %v2651 = vadd.f32 %v2357, %v2624
        %v2652 = vadd.f32 %v2362, %v2624
        %v2653 = vadd.f32 %v2367, %v2624
        %v2654 = vadd.f32 %v2372, %v2624
        %v2655 = vadd.f32 %v2377, %v2624
        %v2656 = vadd.f32 %v2382, %v2624
        %v2657 = vadd.f32 %v2387, %v2624
        %v2658 = vadd.f32 %v2392, %v2624
        %v2659 = vadd.f32 %v2397, %v2624
        %v2660 = vadd.f32 %v2402, %v2624
        %v2661 = vadd.f32 %v2407, %v2624
        %v2662 = vadd.f32 %v2412, %v2624
        %v2663 = vadd.f32 %v2417, %v2624
        %v2664 = vadd.f32 %v2422, %v2624
        %v2665 = vadd.f32 %v2427, %v2624
        %v2666 = vadd.f32 %v2432, %v2624
        %v2667 = vadd.f32 %v2437, %v2624
        %v2668 = vadd.f32 %v2442, %v2624
        %v2669 = vadd.f32 %v2447, %v2624
        %v2670 = vadd.f32 %v2452, %v2624
        %v2671 = vadd.f32 %v2457, %v2624
        %v2672 = vadd.f32 %v2462, %v2624
        %v2673 = vadd.f32 %v2467, %v2624
        %v2674 = vadd.f32 %v2472, %v2624
        %v2675 = vadd.f32 %v2477, %v2624
        %v2676 = vadd.f32 %v2482, %v2624
        %v2677 = vadd.f32 %v2487, %v2624
        %v2678 = vadd.f32 %v2492, %v2624
        %v2679 = vadd.f32 %v2497, %v2624
        %v2680 = vadd.f32 %v2502, %v2624
        %v2681 = vadd.f32 %v2507, %v2624
        %v2682 = vadd.f32 %v2512, %v2624
        %v2683 = vadd.f32 %v2517, %v2624
        %v2684 = vadd.f32 %v2522, %v2624
        %v2685 = vadd.f32 %v2527, %v2624
        %v2686 = vadd.f32 %v2532, %v2624
        %v2687 = vadd.f32 %v2537, %v2624
        %v2688 = vadd.f32 %v2542, %v2624
        %v2689 = vadd.f32 %v2547, %v2624
        %v2690 = vmul.f32 %v1923, %v2554
        %v2691 = vmul.f32 %v1928, %v2555
        %v2692 = vmul.f32 %v1933, %v2556
        %v2693 = vmul.f32 %v1938, %v2557
        %v2694 = vmul.f32 %v1943, %v2558
        %v2695 = vmul.f32 %v1948, %v2559
        %v2696 = vmul.f32 %v1953, %v2560
        %v2697 = vmul.f32 %v1958, %v2561
        %v2698 = vmul.f32 %v1923, %v2562
        %v2699 = vmul.f32 %v1928, %v2563
        %v2700 = vmul.f32 %v1933, %v2564
        %v2701 = vmul.f32 %v1938, %v2565
        %v2702 = vmul.f32 %v1943, %v2566
        %v2703 = vmul.f32 %v1948, %v2567
        %v2704 = vmul.f32 %v1953, %v2568
        %v2705 = vmul.f32 %v1958, %v2569
        %v2706 = vmul.f32 %v1923, %v2570
        %v2707 = vmul.f32 %v1928, %v2571
        %v2708 = vmul.f32 %v1933, %v2572
        %v2709 = vmul.f32 %v1938, %v2573
        %v2710 = vmul.f32 %v1943, %v2574
        %v2711 = vmul.f32 %v1948, %v2575
        %v2712 = vmul.f32 %v1953, %v2576
        %v2713 = vmul.f32 %v1958, %v2577
        %v2714 = vmul.f32 %v1923, %v2578
        %v2715 = vmul.f32 %v1928, %v2579
        %v2716 = vmul.f32 %v1933, %v2580
        %v2717 = vmul.f32 %v1938, %v2581
        %v2718 = vmul.f32 %v1943, %v2582
        %v2719 = vmul.f32 %v1948, %v2583
        %v2720 = vmul.f32 %v1953, %v2584
        %v2721 = vmul.f32 %v1958, %v2585
        %v2722 = vmul.f32 %v1923, %v2586
        %v2723 = vmul.f32 %v1928, %v2587
        %v2724 = vmul.f32 %v1933, %v2588
        %v2725 = vmul.f32 %v1938, %v2589
        %v2726 = vmul.f32 %v1943, %v2590
        %v2727 = vmul.f32 %v1948, %v2591
        %v2728 = vmul.f32 %v1953, %v2592
        %v2729 = vmul.f32 %v1958, %v2593
        %v2730 = vmul.f32 %v1923, %v2594
        %v2731 = vmul.f32 %v1928, %v2595
        %v2732 = vmul.f32 %v1933, %v2596
        %v2733 = vmul.f32 %v1938, %v2597
        %v2734 = vmul.f32 %v1943, %v2598
        %v2735 = vmul.f32 %v1948, %v2599
        %v2736 = vmul.f32 %v1953, %v2600
        %v2737 = vmul.f32 %v1958, %v2601
        %v2738 = vmul.f32 %v1923, %v2602
        %v2739 = vmul.f32 %v1928, %v2603
        %v2740 = vmul.f32 %v1933, %v2604
        %v2741 = vmul.f32 %v1938, %v2605
        %v2742 = vmul.f32 %v1943, %v2606
        %v2743 = vmul.f32 %v1948, %v2607
        %v2744 = vmul.f32 %v1953, %v2608
        %v2745 = vmul.f32 %v1958, %v2609
        %v2746 = vmul.f32 %v1923, %v2610
        %v2747 = vmul.f32 %v1928, %v2611
        %v2748 = vmul.f32 %v1933, %v2612
        %v2749 = vmul.f32 %v1938, %v2613
        %v2750 = vmul.f32 %v1943, %v2614
        %v2751 = vmul.f32 %v1948, %v2615
        %v2752 = vmul.f32 %v1953, %v2616
        %v2753 = vmul.f32 %v1958, %v2617
        %v2755 = vsel %vm612, %v2690, 0
        %v2758 = vsel %vm612, %v2691, 0
        %v2761 = vsel %vm612, %v2692, 0
        %v2764 = vsel %vm612, %v2693, 0
        %v2767 = vsel %vm612, %v2694, 0
        %v2770 = vsel %vm612, %v2695, 0
        %v2773 = vsel %vm612, %v2696, 0
        %v2776 = vsel %vm612, %v2697, 0
        %v2779 = vsel %vm612, %v2698, 0
        %v2782 = vsel %vm612, %v2699, 0
        %v2785 = vsel %vm612, %v2700, 0
        %v2788 = vsel %vm612, %v2701, 0
        %v2791 = vsel %vm612, %v2702, 0
        %v2794 = vsel %vm612, %v2703, 0
        %v2797 = vsel %vm612, %v2704, 0
        %v2800 = vsel %vm612, %v2705, 0
        %v2803 = vsel %vm612, %v2706, 0
        %v2806 = vsel %vm612, %v2707, 0
        %v2809 = vsel %vm612, %v2708, 0
        %v2812 = vsel %vm612, %v2709, 0
        %v2815 = vsel %vm612, %v2710, 0
        %v2818 = vsel %vm612, %v2711, 0
        %v2821 = vsel %vm612, %v2712, 0
        %v2824 = vsel %vm612, %v2713, 0
        %v2827 = vsel %vm612, %v2714, 0
        %v2830 = vsel %vm612, %v2715, 0
        %v2833 = vsel %vm612, %v2716, 0
        %v2836 = vsel %vm612, %v2717, 0
        %v2839 = vsel %vm612, %v2718, 0
        %v2842 = vsel %vm612, %v2719, 0
        %v2845 = vsel %vm612, %v2720, 0
        %v2848 = vsel %vm612, %v2721, 0
        %v2851 = vsel %vm612, %v2722, 0
        %v2854 = vsel %vm612, %v2723, 0
        %v2857 = vsel %vm612, %v2724, 0
        %v2860 = vsel %vm612, %v2725, 0
        %v2863 = vsel %vm612, %v2726, 0
        %v2866 = vsel %vm612, %v2727, 0
        %v2869 = vsel %vm612, %v2728, 0
        %v2872 = vsel %vm612, %v2729, 0
        %v2875 = vsel %vm612, %v2730, 0
        %v2878 = vsel %vm612, %v2731, 0
        %v2881 = vsel %vm612, %v2732, 0
        %v2884 = vsel %vm612, %v2733, 0
        %v2887 = vsel %vm612, %v2734, 0
        %v2890 = vsel %vm612, %v2735, 0
        %v2893 = vsel %vm612, %v2736, 0
        %v2896 = vsel %vm612, %v2737, 0
        %v2899 = vsel %vm612, %v2738, 0
        %v2902 = vsel %vm612, %v2739, 0
        %v2905 = vsel %vm612, %v2740, 0
        %v2908 = vsel %vm612, %v2741, 0
        %v2911 = vsel %vm612, %v2742, 0
        %v2914 = vsel %vm612, %v2743, 0
        %v2917 = vsel %vm612, %v2744, 0
        %v2920 = vsel %vm612, %v2745, 0
        %v2923 = vsel %vm612, %v2746, 0
        %v2926 = vsel %vm612, %v2747, 0
        %v2929 = vsel %vm612, %v2748, 0
        %v2932 = vsel %vm612, %v2749, 0
        %v2935 = vsel %vm612, %v2750, 0
        %v2938 = vsel %vm612, %v2751, 0
        %v2941 = vsel %vm612, %v2752, 0
        %v2944 = vsel %vm612, %v2753, 0
        %2946 = vmatprep.subr.mxu0 0.0
        %2947 = vmatpush1.msra.mxu0 %v608
        %2948 = vmatprep.subr.mxu0 0.0
        %2949 = vmatpush1.msra.mxu0 %v609
        %2950 = vmatprep.subr.mxu0 0.0
        %2951 = vmatpush1.msra.mxu0 %v610
        %2952 = vmatprep.subr.mxu0 0.0
        %2953 = vmatpush1.msra.mxu0 %v611
        %2954 = vmatprep.subr.mxu0 0.0
        %2955 = vmatpush1.msra.mxu0 0.0
        %2956 = vmatprep.subr.mxu0 0.0
        %2957 = vmatpush1.msra.mxu0 0.0
        %2958 = vmatprep.subr.mxu0 0.0
        %2959 = vmatpush1.msra.mxu0 0.0
        %2960 = vmatprep.subr.mxu0 0.0
        %2961 = vmatpush1.msra.mxu0 0.0
        %2962 = vmatprep.subr.mxu0 0.0
        %2963 = vmatpush1.msra.mxu0 0.0
        %2964 = vmatprep.subr.mxu0 0.0
        %2965 = vmatpush1.msra.mxu0 0.0
        %2966 = vmatprep.subr.mxu0 0.0
        %2967 = vmatpush1.msra.mxu0 0.0
        %2968 = vmatprep.subr.mxu0 0.0
        %2969 = vmatpush1.msra.mxu0 0.0
        %2970 = vmatprep.subr.mxu0 0.0
        %2971 = vmatpush1.msra.mxu0 0.0
        %2972 = vmatprep.subr.mxu0 0.0
        %2973 = vmatpush1.msra.mxu0 0.0
        %2974 = vmatprep.subr.mxu0 0.0
        %2975 = vmatpush1.msra.mxu0 0.0
        %2976 = vmatprep.subr.mxu0 0.0
        %2977 = vmatpush1.msra.mxu0 0.0
        %2978 = vmatprep.subr.mxu0 0.0
        %2979 = vmatpush1.msra.mxu0 0.0
        %2980 = vmatprep.subr.mxu0 0.0
        %2981 = vmatpush1.msra.mxu0 0.0
        %2982 = vmatprep.subr.mxu0 0.0
        %2983 = vmatpush1.msra.mxu0 0.0
        %2984 = vmatprep.subr.mxu0 0.0
        %2985 = vmatpush1.msra.mxu0 0.0
        %2986 = vmatprep.subr.mxu0 0.0
        %2987 = vmatpush1.msra.mxu0 0.0
        %2988 = vmatprep.subr.mxu0 0.0
        %2989 = vmatpush1.msra.mxu0 0.0
        %2990 = vmatprep.subr.mxu0 0.0
        %2991 = vmatpush1.msra.mxu0 0.0
        %2992 = vmatprep.subr.mxu0 0.0
        %2993 = vmatpush1.msra.mxu0 0.0
        %2994 = vmatprep.subr.mxu0 0.0
        %2995 = vmatpush1.msra.mxu0 0.0
        %2996 = vmatprep.subr.mxu0 0.0
        %2997 = vmatpush1.msra.mxu0 0.0
        %2998 = vmatprep.subr.mxu0 0.0
        %2999 = vmatpush1.msra.mxu0 0.0
        %3000 = vmatprep.subr.mxu0 0.0
        %3001 = vmatpush1.msra.mxu0 0.0
        %3002 = vmatprep.subr.mxu0 0.0
        %3003 = vmatpush1.msra.mxu0 0.0
        %3004 = vmatprep.subr.mxu0 0.0
        %3005 = vmatpush1.msra.mxu0 0.0
        %3006 = vmatprep.subr.mxu0 0.0
        %3007 = vmatpush1.msra.mxu0 0.0
        %3008 = vmatprep.subr.mxu0 0.0
        %3009 = vmatpush1.msra.mxu0 0.0
        %3010 = vmatprep.mubr.f32.mxu0 0.0
        %3011 = vmatmul.mubr.f32.gmra.mrb[0].mxu0 %v2755
        %v3012 = vpop.f32.mrb[0].mxu0
        %v3013 = vadd.f32 0.0, %v3012
        %v3014 = vpop.f32.mrb[0].mxu0
        %3015 = vmatprep.mubr.f32.mxu0 0.0
        %3016 = vmatmul.mubr.f32.gmra.mrb[0].mxu0 %v2758
        %v3017 = vpop.f32.mrb[0].mxu0
        %v3018 = vadd.f32 0.0, %v3017
        %v3019 = vpop.f32.mrb[0].mxu0
        %3020 = vmatprep.mubr.f32.mxu0 0.0
        %3021 = vmatmul.mubr.f32.gmra.mrb[0].mxu0 %v2761
        %v3022 = vpop.f32.mrb[0].mxu0
        %v3023 = vadd.f32 0.0, %v3022
        %v3024 = vpop.f32.mrb[0].mxu0
        %3025 = vmatprep.mubr.f32.mxu0 0.0
        %3026 = vmatmul.mubr.f32.gmra.mrb[0].mxu0 %v2764
        %v3027 = vpop.f32.mrb[0].mxu0
        %v3028 = vadd.f32 0.0, %v3027
        %v3029 = vpop.f32.mrb[0].mxu0
        %3030 = vmatprep.mubr.f32.mxu0 0.0
        %3031 = vmatmul.mubr.f32.gmra.mrb[0].mxu0 %v2767
        %v3032 = vpop.f32.mrb[0].mxu0
        %v3033 = vadd.f32 0.0, %v3032
        %v3034 = vpop.f32.mrb[0].mxu0
        %3035 = vmatprep.mubr.f32.mxu0 0.0
        %3036 = vmatmul.mubr.f32.gmra.mrb[0].mxu0 %v2770
        %v3037 = vpop.f32.mrb[0].mxu0
        %v3038 = vadd.f32 0.0, %v3037
        %v3039 = vpop.f32.mrb[0].mxu0
        %3040 = vmatprep.mubr.f32.mxu0 0.0
        %3041 = vmatmul.mubr.f32.gmra.mrb[0].mxu0 %v2773
        %v3042 = vpop.f32.mrb[0].mxu0
        %v3043 = vadd.f32 0.0, %v3042
        %v3044 = vpop.f32.mrb[0].mxu0
        %3045 = vmatprep.mubr.f32.mxu0 0.0
        %3046 = vmatmul.mubr.f32.gmra.mrb[0].mxu0 %v2776
        %v3047 = vpop.f32.mrb[0].mxu0
        %v3048 = vadd.f32 0.0, %v3047
        %v3049 = vpop.f32.mrb[0].mxu0
        %3050 = vmatprep.mubr.f32.mxu0 0.0
        %3051 = vmatmul.mubr.f32.gmra.mrb[0].mxu0 %v2779
        %v3052 = vpop.f32.mrb[0].mxu0
        %v3053 = vadd.f32 0.0, %v3052
        %v3054 = vpop.f32.mrb[0].mxu0
        %3055 = vmatprep.mubr.f32.mxu0 0.0
        %3056 = vmatmul.mubr.f32.gmra.mrb[0].mxu0 %v2782
        %v3057 = vpop.f32.mrb[0].mxu0
        %v3058 = vadd.f32 0.0, %v3057
        %v3059 = vpop.f32.mrb[0].mxu0
        %3060 = vmatprep.mubr.f32.mxu0 0.0
        %3061 = vmatmul.mubr.f32.gmra.mrb[0].mxu0 %v2785
        %v3062 = vpop.f32.mrb[0].mxu0
        %v3063 = vadd.f32 0.0, %v3062
        %v3064 = vpop.f32.mrb[0].mxu0
        %3065 = vmatprep.mubr.f32.mxu0 0.0
        %3066 = vmatmul.mubr.f32.gmra.mrb[0].mxu0 %v2788
        %v3067 = vpop.f32.mrb[0].mxu0
        %v3068 = vadd.f32 0.0, %v3067
        %v3069 = vpop.f32.mrb[0].mxu0
        %3070 = vmatprep.mubr.f32.mxu0 0.0
        %3071 = vmatmul.mubr.f32.gmra.mrb[0].mxu0 %v2791
        %v3072 = vpop.f32.mrb[0].mxu0
        %v3073 = vadd.f32 0.0, %v3072
        %v3074 = vpop.f32.mrb[0].mxu0
        %3075 = vmatprep.mubr.f32.mxu0 0.0
        %3076 = vmatmul.mubr.f32.gmra.mrb[0].mxu0 %v2794
        %v3077 = vpop.f32.mrb[0].mxu0
        %v3078 = vadd.f32 0.0, %v3077
        %v3079 = vpop.f32.mrb[0].mxu0
        %3080 = vmatprep.mubr.f32.mxu0 0.0
        %3081 = vmatmul.mubr.f32.gmra.mrb[0].mxu0 %v2797
        %v3082 = vpop.f32.mrb[0].mxu0
        %v3083 = vadd.f32 0.0, %v3082
        %v3084 = vpop.f32.mrb[0].mxu0
        %3085 = vmatprep.mubr.f32.mxu0 0.0
        %3086 = vmatmul.mubr.f32.gmra.mrb[0].mxu0 %v2800
        %v3087 = vpop.f32.mrb[0].mxu0
        %v3088 = vadd.f32 0.0, %v3087
        %v3089 = vpop.f32.mrb[0].mxu0
        %3090 = vmatprep.mubr.f32.mxu0 0.0
        %3091 = vmatmul.mubr.f32.gmra.mrb[0].mxu0 %v2803
        %v3092 = vpop.f32.mrb[0].mxu0
        %v3093 = vadd.f32 0.0, %v3092
        %v3094 = vpop.f32.mrb[0].mxu0
        %3095 = vmatprep.mubr.f32.mxu0 0.0
        %3096 = vmatmul.mubr.f32.gmra.mrb[0].mxu0 %v2806
        %v3097 = vpop.f32.mrb[0].mxu0
        %v3098 = vadd.f32 0.0, %v3097
        %v3099 = vpop.f32.mrb[0].mxu0
        %3100 = vmatprep.mubr.f32.mxu0 0.0
        %3101 = vmatmul.mubr.f32.gmra.mrb[0].mxu0 %v2809
        %v3102 = vpop.f32.mrb[0].mxu0
        %v3103 = vadd.f32 0.0, %v3102
        %v3104 = vpop.f32.mrb[0].mxu0
        %3105 = vmatprep.mubr.f32.mxu0 0.0
        %3106 = vmatmul.mubr.f32.gmra.mrb[0].mxu0 %v2812
        %v3107 = vpop.f32.mrb[0].mxu0
        %v3108 = vadd.f32 0.0, %v3107
        %v3109 = vpop.f32.mrb[0].mxu0
        %3110 = vmatprep.mubr.f32.mxu0 0.0
        %3111 = vmatmul.mubr.f32.gmra.mrb[0].mxu0 %v2815
        %v3112 = vpop.f32.mrb[0].mxu0
        %v3113 = vadd.f32 0.0, %v3112
        %v3114 = vpop.f32.mrb[0].mxu0
        %3115 = vmatprep.mubr.f32.mxu0 0.0
        %3116 = vmatmul.mubr.f32.gmra.mrb[0].mxu0 %v2818
        %v3117 = vpop.f32.mrb[0].mxu0
        %v3118 = vadd.f32 0.0, %v3117
        %v3119 = vpop.f32.mrb[0].mxu0
        %3120 = vmatprep.mubr.f32.mxu0 0.0
        %3121 = vmatmul.mubr.f32.gmra.mrb[0].mxu0 %v2821
        %v3122 = vpop.f32.mrb[0].mxu0
        %v3123 = vadd.f32 0.0, %v3122
        %v3124 = vpop.f32.mrb[0].mxu0
        %3125 = vmatprep.mubr.f32.mxu0 0.0
        %3126 = vmatmul.mubr.f32.gmra.mrb[0].mxu0 %v2824
        %v3127 = vpop.f32.mrb[0].mxu0
        %v3128 = vadd.f32 0.0, %v3127
        %v3129 = vpop.f32.mrb[0].mxu0
        %3130 = vmatprep.mubr.f32.mxu0 0.0
        %3131 = vmatmul.mubr.f32.gmra.mrb[0].mxu0 %v2827
        %v3132 = vpop.f32.mrb[0].mxu0
        %v3133 = vadd.f32 0.0, %v3132
        %v3134 = vpop.f32.mrb[0].mxu0
        %3135 = vmatprep.mubr.f32.mxu0 0.0
        %3136 = vmatmul.mubr.f32.gmra.mrb[0].mxu0 %v2830
        %v3137 = vpop.f32.mrb[0].mxu0
        %v3138 = vadd.f32 0.0, %v3137
        %v3139 = vpop.f32.mrb[0].mxu0
        %3140 = vmatprep.mubr.f32.mxu0 0.0
        %3141 = vmatmul.mubr.f32.gmra.mrb[0].mxu0 %v2833
        %v3142 = vpop.f32.mrb[0].mxu0
        %v3143 = vadd.f32 0.0, %v3142
        %v3144 = vpop.f32.mrb[0].mxu0
        %3145 = vmatprep.mubr.f32.mxu0 0.0
        %3146 = vmatmul.mubr.f32.gmra.mrb[0].mxu0 %v2836
        %v3147 = vpop.f32.mrb[0].mxu0
        %v3148 = vadd.f32 0.0, %v3147
        %v3149 = vpop.f32.mrb[0].mxu0
        %3150 = vmatprep.mubr.f32.mxu0 0.0
        %3151 = vmatmul.mubr.f32.gmra.mrb[0].mxu0 %v2839
        %v3152 = vpop.f32.mrb[0].mxu0
        %v3153 = vadd.f32 0.0, %v3152
        %v3154 = vpop.f32.mrb[0].mxu0
        %3155 = vmatprep.mubr.f32.mxu0 0.0
        %3156 = vmatmul.mubr.f32.gmra.mrb[0].mxu0 %v2842
        %v3157 = vpop.f32.mrb[0].mxu0
        %v3158 = vadd.f32 0.0, %v3157
        %v3159 = vpop.f32.mrb[0].mxu0
        %3160 = vmatprep.mubr.f32.mxu0 0.0
        %3161 = vmatmul.mubr.f32.gmra.mrb[0].mxu0 %v2845
        %v3162 = vpop.f32.mrb[0].mxu0
        %v3163 = vadd.f32 0.0, %v3162
        %v3164 = vpop.f32.mrb[0].mxu0
        %3165 = vmatprep.mubr.f32.mxu0 0.0
        %3166 = vmatmul.mubr.f32.gmra.mrb[0].mxu0 %v2848
        %v3167 = vpop.f32.mrb[0].mxu0
        %v3168 = vadd.f32 0.0, %v3167
        %v3169 = vpop.f32.mrb[0].mxu0
        %3170 = vmatprep.mubr.f32.mxu0 0.0
        %3171 = vmatmul.mubr.f32.gmra.mrb[0].mxu0 %v2851
        %v3172 = vpop.f32.mrb[0].mxu0
        %v3173 = vadd.f32 0.0, %v3172
        %v3174 = vpop.f32.mrb[0].mxu0
        %3175 = vmatprep.mubr.f32.mxu0 0.0
        %3176 = vmatmul.mubr.f32.gmra.mrb[0].mxu0 %v2854
        %v3177 = vpop.f32.mrb[0].mxu0
        %v3178 = vadd.f32 0.0, %v3177
        %v3179 = vpop.f32.mrb[0].mxu0
        %3180 = vmatprep.mubr.f32.mxu0 0.0
        %3181 = vmatmul.mubr.f32.gmra.mrb[0].mxu0 %v2857
        %v3182 = vpop.f32.mrb[0].mxu0
        %v3183 = vadd.f32 0.0, %v3182
        %v3184 = vpop.f32.mrb[0].mxu0
        %3185 = vmatprep.mubr.f32.mxu0 0.0
        %3186 = vmatmul.mubr.f32.gmra.mrb[0].mxu0 %v2860
        %v3187 = vpop.f32.mrb[0].mxu0
        %v3188 = vadd.f32 0.0, %v3187
        %v3189 = vpop.f32.mrb[0].mxu0
        %3190 = vmatprep.mubr.f32.mxu0 0.0
        %3191 = vmatmul.mubr.f32.gmra.mrb[0].mxu0 %v2863
        %v3192 = vpop.f32.mrb[0].mxu0
        %v3193 = vadd.f32 0.0, %v3192
        %v3194 = vpop.f32.mrb[0].mxu0
        %3195 = vmatprep.mubr.f32.mxu0 0.0
        %3196 = vmatmul.mubr.f32.gmra.mrb[0].mxu0 %v2866
        %v3197 = vpop.f32.mrb[0].mxu0
        %v3198 = vadd.f32 0.0, %v3197
        %v3199 = vpop.f32.mrb[0].mxu0
        %3200 = vmatprep.mubr.f32.mxu0 0.0
        %3201 = vmatmul.mubr.f32.gmra.mrb[0].mxu0 %v2869
        %v3202 = vpop.f32.mrb[0].mxu0
        %v3203 = vadd.f32 0.0, %v3202
        %v3204 = vpop.f32.mrb[0].mxu0
        %3205 = vmatprep.mubr.f32.mxu0 0.0
        %3206 = vmatmul.mubr.f32.gmra.mrb[0].mxu0 %v2872
        %v3207 = vpop.f32.mrb[0].mxu0
        %v3208 = vadd.f32 0.0, %v3207
        %v3209 = vpop.f32.mrb[0].mxu0
        %3210 = vmatprep.mubr.f32.mxu0 0.0
        %3211 = vmatmul.mubr.f32.gmra.mrb[0].mxu0 %v2875
        %v3212 = vpop.f32.mrb[0].mxu0
        %v3213 = vadd.f32 0.0, %v3212
        %v3214 = vpop.f32.mrb[0].mxu0
        %3215 = vmatprep.mubr.f32.mxu0 0.0
        %3216 = vmatmul.mubr.f32.gmra.mrb[0].mxu0 %v2878
        %v3217 = vpop.f32.mrb[0].mxu0
        %v3218 = vadd.f32 0.0, %v3217
        %v3219 = vpop.f32.mrb[0].mxu0
        %3220 = vmatprep.mubr.f32.mxu0 0.0
        %3221 = vmatmul.mubr.f32.gmra.mrb[0].mxu0 %v2881
        %v3222 = vpop.f32.mrb[0].mxu0
        %v3223 = vadd.f32 0.0, %v3222
        %v3224 = vpop.f32.mrb[0].mxu0
        %3225 = vmatprep.mubr.f32.mxu0 0.0
        %3226 = vmatmul.mubr.f32.gmra.mrb[0].mxu0 %v2884
        %v3227 = vpop.f32.mrb[0].mxu0
        %v3228 = vadd.f32 0.0, %v3227
        %v3229 = vpop.f32.mrb[0].mxu0
        %3230 = vmatprep.mubr.f32.mxu0 0.0
        %3231 = vmatmul.mubr.f32.gmra.mrb[0].mxu0 %v2887
        %v3232 = vpop.f32.mrb[0].mxu0
        %v3233 = vadd.f32 0.0, %v3232
        %v3234 = vpop.f32.mrb[0].mxu0
        %3235 = vmatprep.mubr.f32.mxu0 0.0
        %3236 = vmatmul.mubr.f32.gmra.mrb[0].mxu0 %v2890
        %v3237 = vpop.f32.mrb[0].mxu0
        %v3238 = vadd.f32 0.0, %v3237
        %v3239 = vpop.f32.mrb[0].mxu0
        %3240 = vmatprep.mubr.f32.mxu0 0.0
        %3241 = vmatmul.mubr.f32.gmra.mrb[0].mxu0 %v2893
        %v3242 = vpop.f32.mrb[0].mxu0
        %v3243 = vadd.f32 0.0, %v3242
        %v3244 = vpop.f32.mrb[0].mxu0
        %3245 = vmatprep.mubr.f32.mxu0 0.0
        %3246 = vmatmul.mubr.f32.gmra.mrb[0].mxu0 %v2896
        %v3247 = vpop.f32.mrb[0].mxu0
        %v3248 = vadd.f32 0.0, %v3247
        %v3249 = vpop.f32.mrb[0].mxu0
        %3250 = vmatprep.mubr.f32.mxu0 0.0
        %3251 = vmatmul.mubr.f32.gmra.mrb[0].mxu0 %v2899
        %v3252 = vpop.f32.mrb[0].mxu0
        %v3253 = vadd.f32 0.0, %v3252
        %v3254 = vpop.f32.mrb[0].mxu0
        %3255 = vmatprep.mubr.f32.mxu0 0.0
        %3256 = vmatmul.mubr.f32.gmra.mrb[0].mxu0 %v2902
        %v3257 = vpop.f32.mrb[0].mxu0
        %v3258 = vadd.f32 0.0, %v3257
        %v3259 = vpop.f32.mrb[0].mxu0
        %3260 = vmatprep.mubr.f32.mxu0 0.0
        %3261 = vmatmul.mubr.f32.gmra.mrb[0].mxu0 %v2905
        %v3262 = vpop.f32.mrb[0].mxu0
        %v3263 = vadd.f32 0.0, %v3262
        %v3264 = vpop.f32.mrb[0].mxu0
        %3265 = vmatprep.mubr.f32.mxu0 0.0
        %3266 = vmatmul.mubr.f32.gmra.mrb[0].mxu0 %v2908
        %v3267 = vpop.f32.mrb[0].mxu0
        %v3268 = vadd.f32 0.0, %v3267
        %v3269 = vpop.f32.mrb[0].mxu0
        %3270 = vmatprep.mubr.f32.mxu0 0.0
        %3271 = vmatmul.mubr.f32.gmra.mrb[0].mxu0 %v2911
        %v3272 = vpop.f32.mrb[0].mxu0
        %v3273 = vadd.f32 0.0, %v3272
        %v3274 = vpop.f32.mrb[0].mxu0
        %3275 = vmatprep.mubr.f32.mxu0 0.0
        %3276 = vmatmul.mubr.f32.gmra.mrb[0].mxu0 %v2914
        %v3277 = vpop.f32.mrb[0].mxu0
        %v3278 = vadd.f32 0.0, %v3277
        %v3279 = vpop.f32.mrb[0].mxu0
        %3280 = vmatprep.mubr.f32.mxu0 0.0
        %3281 = vmatmul.mubr.f32.gmra.mrb[0].mxu0 %v2917
        %v3282 = vpop.f32.mrb[0].mxu0
        %v3283 = vadd.f32 0.0, %v3282
        %v3284 = vpop.f32.mrb[0].mxu0
        %3285 = vmatprep.mubr.f32.mxu0 0.0
        %3286 = vmatmul.mubr.f32.gmra.mrb[0].mxu0 %v2920
        %v3287 = vpop.f32.mrb[0].mxu0
        %v3288 = vadd.f32 0.0, %v3287
        %v3289 = vpop.f32.mrb[0].mxu0
        %3290 = vmatprep.mubr.f32.mxu0 0.0
        %3291 = vmatmul.mubr.f32.gmra.mrb[0].mxu0 %v2923
        %v3292 = vpop.f32.mrb[0].mxu0
        %v3293 = vadd.f32 0.0, %v3292
        %v3294 = vpop.f32.mrb[0].mxu0
        %3295 = vmatprep.mubr.f32.mxu0 0.0
        %3296 = vmatmul.mubr.f32.gmra.mrb[0].mxu0 %v2926
        %v3297 = vpop.f32.mrb[0].mxu0
        %v3298 = vadd.f32 0.0, %v3297
        %v3299 = vpop.f32.mrb[0].mxu0
        %3300 = vmatprep.mubr.f32.mxu0 0.0
        %3301 = vmatmul.mubr.f32.gmra.mrb[0].mxu0 %v2929
        %v3302 = vpop.f32.mrb[0].mxu0
        %v3303 = vadd.f32 0.0, %v3302
        %v3304 = vpop.f32.mrb[0].mxu0
        %3305 = vmatprep.mubr.f32.mxu0 0.0
        %3306 = vmatmul.mubr.f32.gmra.mrb[0].mxu0 %v2932
        %v3307 = vpop.f32.mrb[0].mxu0
        %v3308 = vadd.f32 0.0, %v3307
        %v3309 = vpop.f32.mrb[0].mxu0
        %3310 = vmatprep.mubr.f32.mxu0 0.0
        %3311 = vmatmul.mubr.f32.gmra.mrb[0].mxu0 %v2935
        %v3312 = vpop.f32.mrb[0].mxu0
        %v3313 = vadd.f32 0.0, %v3312
        %v3314 = vpop.f32.mrb[0].mxu0
        %3315 = vmatprep.mubr.f32.mxu0 0.0
        %3316 = vmatmul.mubr.f32.gmra.mrb[0].mxu0 %v2938
        %v3317 = vpop.f32.mrb[0].mxu0
        %v3318 = vadd.f32 0.0, %v3317
        %v3319 = vpop.f32.mrb[0].mxu0
        %3320 = vmatprep.mubr.f32.mxu0 0.0
        %3321 = vmatmul.mubr.f32.gmra.mrb[0].mxu0 %v2941
        %v3322 = vpop.f32.mrb[0].mxu0
        %v3323 = vadd.f32 0.0, %v3322
        %v3324 = vpop.f32.mrb[0].mxu0
        %3325 = vmatprep.mubr.f32.mxu0 0.0
        %3326 = vmatmul.mubr.f32.gmra.mrb[0].mxu0 %v2944
        %v3327 = vpop.f32.mrb[0].mxu0
        %v3328 = vadd.f32 0.0, %v3327
        %v3329 = vpop.f32.mrb[0].mxu0
        %3330 = vdwg.mxu0
        %v3331 = vmax.f32 %v3013, %v3053
        %v3332 = vmax.f32 %v3018, %v3058
        %v3333 = vmax.f32 %v3023, %v3063
        %v3334 = vmax.f32 %v3028, %v3068
        %v3335 = vmax.f32 %v3033, %v3073
        %v3336 = vmax.f32 %v3038, %v3078
        %v3337 = vmax.f32 %v3043, %v3083
        %v3338 = vmax.f32 %v3048, %v3088
        %v3339 = vmax.f32 %v3331, %v3093
        %v3340 = vmax.f32 %v3332, %v3098
        %v3341 = vmax.f32 %v3333, %v3103
        %v3342 = vmax.f32 %v3334, %v3108
        %v3343 = vmax.f32 %v3335, %v3113
        %v3344 = vmax.f32 %v3336, %v3118
        %v3345 = vmax.f32 %v3337, %v3123
        %v3346 = vmax.f32 %v3338, %v3128
        %v3347 = vmax.f32 %v3339, %v3133
        %v3348 = vmax.f32 %v3340, %v3138
        %v3349 = vmax.f32 %v3341, %v3143
        %v3350 = vmax.f32 %v3342, %v3148
        %v3351 = vmax.f32 %v3343, %v3153
        %v3352 = vmax.f32 %v3344, %v3158
        %v3353 = vmax.f32 %v3345, %v3163
        %v3354 = vmax.f32 %v3346, %v3168
        %v3355 = vmax.f32 %v3347, %v3173
        %v3356 = vmax.f32 %v3348, %v3178
        %v3357 = vmax.f32 %v3349, %v3183
        %v3358 = vmax.f32 %v3350, %v3188
        %v3359 = vmax.f32 %v3351, %v3193
        %v3360 = vmax.f32 %v3352, %v3198
        %v3361 = vmax.f32 %v3353, %v3203
        %v3362 = vmax.f32 %v3354, %v3208
        %v3363 = vmax.f32 %v3355, %v3213
        %v3364 = vmax.f32 %v3356, %v3218
        %v3365 = vmax.f32 %v3357, %v3223
        %v3366 = vmax.f32 %v3358, %v3228
        %v3367 = vmax.f32 %v3359, %v3233
        %v3368 = vmax.f32 %v3360, %v3238
        %v3369 = vmax.f32 %v3361, %v3243
        %v3370 = vmax.f32 %v3362, %v3248
        %v3371 = vmax.f32 %v3363, %v3253
        %v3372 = vmax.f32 %v3364, %v3258
        %v3373 = vmax.f32 %v3365, %v3263
        %v3374 = vmax.f32 %v3366, %v3268
        %v3375 = vmax.f32 %v3367, %v3273
        %v3376 = vmax.f32 %v3368, %v3278
        %v3377 = vmax.f32 %v3369, %v3283
        %v3378 = vmax.f32 %v3370, %v3288
        %v3379 = vmax.f32 %v3371, %v3293
        %v3380 = vmax.f32 %v3372, %v3298
        %v3381 = vmax.f32 %v3373, %v3303
        %v3382 = vmax.f32 %v3374, %v3308
        %v3383 = vmax.f32 %v3375, %v3313
        %v3384 = vmax.f32 %v3376, %v3318
        %v3385 = vmax.f32 %v3377, %v3323
        %v3386 = vmax.f32 %v3378, %v3328
        %v3387 = vsub.f32 %v3013, %v3379
        %v3388 = vsub.f32 %v3018, %v3380
        %v3389 = vsub.f32 %v3023, %v3381
        %v3390 = vsub.f32 %v3028, %v3382
        %v3391 = vsub.f32 %v3033, %v3383
        %v3392 = vsub.f32 %v3038, %v3384
        %v3393 = vsub.f32 %v3043, %v3385
        %v3394 = vsub.f32 %v3048, %v3386
        %v3395 = vmul.f32 %v3387, 1.442695
        %v3396 = vpow.pop %v3395
        %v3397 = vmul.f32 %v3388, 1.442695
        %v3398 = vpow.pop %v3397
        %v3399 = vmul.f32 %v3389, 1.442695
        %v3400 = vpow.pop %v3399
        %v3401 = vmul.f32 %v3390, 1.442695
        %v3402 = vpow.pop %v3401
        %v3403 = vmul.f32 %v3391, 1.442695
        %v3404 = vpow.pop %v3403
        %v3405 = vmul.f32 %v3392, 1.442695
        %v3406 = vpow.pop %v3405
        %v3407 = vmul.f32 %v3393, 1.442695
        %v3408 = vpow.pop %v3407
        %v3409 = vmul.f32 %v3394, 1.442695
        %v3410 = vpow.pop %v3409
        %v3411 = vadd.f32 %v3396, 0.0
        %v3412 = vadd.f32 %v3398, 0.0
        %v3413 = vadd.f32 %v3400, 0.0
        %v3414 = vadd.f32 %v3402, 0.0
        %v3415 = vadd.f32 %v3404, 0.0
        %v3416 = vadd.f32 %v3406, 0.0
        %v3417 = vadd.f32 %v3408, 0.0
        %v3418 = vadd.f32 %v3410, 0.0
        %3427 = vrot.lane.b32.xlu0 %v2626, 96
        %v3428 = vpop.permute.xlu0 %3427
        %3429 = vrot.lane.b32.xlu0 %v2627, 96
        %v3430 = vpop.permute.xlu0 %3429
        %3431 = vrot.lane.b32.xlu0 %v2628, 96
        %v3432 = vpop.permute.xlu0 %3431
        %3433 = vrot.lane.b32.xlu0 %v2629, 96
        %v3434 = vpop.permute.xlu0 %3433
        %3435 = vrot.lane.b32.xlu0 %v2630, 96
        %v3436 = vpop.permute.xlu0 %3435
        %3437 = vrot.lane.b32.xlu0 %v2631, 96
        %v3438 = vpop.permute.xlu0 %3437
        %3439 = vrot.lane.b32.xlu0 %v2632, 96
        %v3440 = vpop.permute.xlu0 %3439
        %3441 = vrot.lane.b32.xlu0 %v2633, 96
        %v3442 = vpop.permute.xlu0 %3441
        %v3451 = vmul.f32 %v3396, %v3428
        %v3452 = vmul.f32 %v3398, %v3430
        %v3453 = vmul.f32 %v3400, %v3432
        %v3454 = vmul.f32 %v3402, %v3434
        %v3455 = vmul.f32 %v3404, %v3436
        %v3456 = vmul.f32 %v3406, %v3438
        %v3457 = vmul.f32 %v3408, %v3440
        %v3458 = vmul.f32 %v3410, %v3442
        %v3459 = vadd.f32 %v3451, 0.0
        %v3460 = vadd.f32 %v3452, 0.0
        %v3461 = vadd.f32 %v3453, 0.0
        %v3462 = vadd.f32 %v3454, 0.0
        %v3463 = vadd.f32 %v3455, 0.0
        %v3464 = vadd.f32 %v3456, 0.0
        %v3465 = vadd.f32 %v3457, 0.0
        %v3466 = vadd.f32 %v3458, 0.0
        %v3467 = vsub.f32 %v3053, %v3379
        %v3468 = vsub.f32 %v3058, %v3380
        %v3469 = vsub.f32 %v3063, %v3381
        %v3470 = vsub.f32 %v3068, %v3382
        %v3471 = vsub.f32 %v3073, %v3383
        %v3472 = vsub.f32 %v3078, %v3384
        %v3473 = vsub.f32 %v3083, %v3385
        %v3474 = vsub.f32 %v3088, %v3386
        %v3475 = vmul.f32 %v3467, 1.442695
        %v3476 = vpow.pop %v3475
        %v3477 = vmul.f32 %v3468, 1.442695
        %v3478 = vpow.pop %v3477
        %v3479 = vmul.f32 %v3469, 1.442695
        %v3480 = vpow.pop %v3479
        %v3481 = vmul.f32 %v3470, 1.442695
        %v3482 = vpow.pop %v3481
        %v3483 = vmul.f32 %v3471, 1.442695
        %v3484 = vpow.pop %v3483
        %v3485 = vmul.f32 %v3472, 1.442695
        %v3486 = vpow.pop %v3485
        %v3487 = vmul.f32 %v3473, 1.442695
        %v3488 = vpow.pop %v3487
        %v3489 = vmul.f32 %v3474, 1.442695
        %v3490 = vpow.pop %v3489
        %v3491 = vadd.f32 %v3411, %v3476
        %v3492 = vadd.f32 %v3412, %v3478
        %v3493 = vadd.f32 %v3413, %v3480
        %v3494 = vadd.f32 %v3414, %v3482
        %v3495 = vadd.f32 %v3415, %v3484
        %v3496 = vadd.f32 %v3416, %v3486
        %v3497 = vadd.f32 %v3417, %v3488
        %v3498 = vadd.f32 %v3418, %v3490
        %3507 = vrot.lane.b32.xlu0 %v2634, 96
        %v3508 = vpop.permute.xlu0 %3507
        %3509 = vrot.lane.b32.xlu0 %v2635, 96
        %v3510 = vpop.permute.xlu0 %3509
        %3511 = vrot.lane.b32.xlu0 %v2636, 96
        %v3512 = vpop.permute.xlu0 %3511
        %3513 = vrot.lane.b32.xlu0 %v2637, 96
        %v3514 = vpop.permute.xlu0 %3513
        %3515 = vrot.lane.b32.xlu0 %v2638, 96
        %v3516 = vpop.permute.xlu0 %3515
        %3517 = vrot.lane.b32.xlu0 %v2639, 96
        %v3518 = vpop.permute.xlu0 %3517
        %3519 = vrot.lane.b32.xlu0 %v2640, 96
        %v3520 = vpop.permute.xlu0 %3519
        %3521 = vrot.lane.b32.xlu0 %v2641, 96
        %v3522 = vpop.permute.xlu0 %3521
        %v3531 = vmul.f32 %v3476, %v3508
        %v3532 = vmul.f32 %v3478, %v3510
        %v3533 = vmul.f32 %v3480, %v3512
        %v3534 = vmul.f32 %v3482, %v3514
        %v3535 = vmul.f32 %v3484, %v3516
        %v3536 = vmul.f32 %v3486, %v3518
        %v3537 = vmul.f32 %v3488, %v3520
        %v3538 = vmul.f32 %v3490, %v3522
        %v3539 = vadd.f32 %v3459, %v3531
        %v3540 = vadd.f32 %v3460, %v3532
        %v3541 = vadd.f32 %v3461, %v3533
        %v3542 = vadd.f32 %v3462, %v3534
        %v3543 = vadd.f32 %v3463, %v3535
        %v3544 = vadd.f32 %v3464, %v3536
        %v3545 = vadd.f32 %v3465, %v3537
        %v3546 = vadd.f32 %v3466, %v3538
        %v3547 = vsub.f32 %v3093, %v3379
        %v3548 = vsub.f32 %v3098, %v3380
        %v3549 = vsub.f32 %v3103, %v3381
        %v3550 = vsub.f32 %v3108, %v3382
        %v3551 = vsub.f32 %v3113, %v3383
        %v3552 = vsub.f32 %v3118, %v3384
        %v3553 = vsub.f32 %v3123, %v3385
        %v3554 = vsub.f32 %v3128, %v3386
        %v3555 = vmul.f32 %v3547, 1.442695
        %v3556 = vpow.pop %v3555
        %v3557 = vmul.f32 %v3548, 1.442695
        %v3558 = vpow.pop %v3557
        %v3559 = vmul.f32 %v3549, 1.442695
        %v3560 = vpow.pop %v3559
        %v3561 = vmul.f32 %v3550, 1.442695
        %v3562 = vpow.pop %v3561
        %v3563 = vmul.f32 %v3551, 1.442695
        %v3564 = vpow.pop %v3563
        %v3565 = vmul.f32 %v3552, 1.442695
        %v3566 = vpow.pop %v3565
        %v3567 = vmul.f32 %v3553, 1.442695
        %v3568 = vpow.pop %v3567
        %v3569 = vmul.f32 %v3554, 1.442695
        %v3570 = vpow.pop %v3569
        %v3571 = vadd.f32 %v3491, %v3556
        %v3572 = vadd.f32 %v3492, %v3558
        %v3573 = vadd.f32 %v3493, %v3560
        %v3574 = vadd.f32 %v3494, %v3562
        %v3575 = vadd.f32 %v3495, %v3564
        %v3576 = vadd.f32 %v3496, %v3566
        %v3577 = vadd.f32 %v3497, %v3568
        %v3578 = vadd.f32 %v3498, %v3570
        %3587 = vrot.lane.b32.xlu0 %v2642, 96
        %v3588 = vpop.permute.xlu0 %3587
        %3589 = vrot.lane.b32.xlu0 %v2643, 96
        %v3590 = vpop.permute.xlu0 %3589
        %3591 = vrot.lane.b32.xlu0 %v2644, 96
        %v3592 = vpop.permute.xlu0 %3591
        %3593 = vrot.lane.b32.xlu0 %v2645, 96
        %v3594 = vpop.permute.xlu0 %3593
        %3595 = vrot.lane.b32.xlu0 %v2646, 96
        %v3596 = vpop.permute.xlu0 %3595
        %3597 = vrot.lane.b32.xlu0 %v2647, 96
        %v3598 = vpop.permute.xlu0 %3597
        %3599 = vrot.lane.b32.xlu0 %v2648, 96
        %v3600 = vpop.permute.xlu0 %3599
        %3601 = vrot.lane.b32.xlu0 %v2649, 96
        %v3602 = vpop.permute.xlu0 %3601
        %v3611 = vmul.f32 %v3556, %v3588
        %v3612 = vmul.f32 %v3558, %v3590
        %v3613 = vmul.f32 %v3560, %v3592
        %v3614 = vmul.f32 %v3562, %v3594
        %v3615 = vmul.f32 %v3564, %v3596
        %v3616 = vmul.f32 %v3566, %v3598
        %v3617 = vmul.f32 %v3568, %v3600
        %v3618 = vmul.f32 %v3570, %v3602
        %v3619 = vadd.f32 %v3539, %v3611
        %v3620 = vadd.f32 %v3540, %v3612
        %v3621 = vadd.f32 %v3541, %v3613
        %v3622 = vadd.f32 %v3542, %v3614
        %v3623 = vadd.f32 %v3543, %v3615
        %v3624 = vadd.f32 %v3544, %v3616
        %v3625 = vadd.f32 %v3545, %v3617
        %v3626 = vadd.f32 %v3546, %v3618
        %v3627 = vsub.f32 %v3133, %v3379
        %v3628 = vsub.f32 %v3138, %v3380
        %v3629 = vsub.f32 %v3143, %v3381
        %v3630 = vsub.f32 %v3148, %v3382
        %v3631 = vsub.f32 %v3153, %v3383
        %v3632 = vsub.f32 %v3158, %v3384
        %v3633 = vsub.f32 %v3163, %v3385
        %v3634 = vsub.f32 %v3168, %v3386
        %v3635 = vmul.f32 %v3627, 1.442695
        %v3636 = vpow.pop %v3635
        %v3637 = vmul.f32 %v3628, 1.442695
        %v3638 = vpow.pop %v3637
        %v3639 = vmul.f32 %v3629, 1.442695
        %v3640 = vpow.pop %v3639
        %v3641 = vmul.f32 %v3630, 1.442695
        %v3642 = vpow.pop %v3641
        %v3643 = vmul.f32 %v3631, 1.442695
        %v3644 = vpow.pop %v3643
        %v3645 = vmul.f32 %v3632, 1.442695
        %v3646 = vpow.pop %v3645
        %v3647 = vmul.f32 %v3633, 1.442695
        %v3648 = vpow.pop %v3647
        %v3649 = vmul.f32 %v3634, 1.442695
        %v3650 = vpow.pop %v3649
        %v3651 = vadd.f32 %v3571, %v3636
        %v3652 = vadd.f32 %v3572, %v3638
        %v3653 = vadd.f32 %v3573, %v3640
        %v3654 = vadd.f32 %v3574, %v3642
        %v3655 = vadd.f32 %v3575, %v3644
        %v3656 = vadd.f32 %v3576, %v3646
        %v3657 = vadd.f32 %v3577, %v3648
        %v3658 = vadd.f32 %v3578, %v3650
        %3667 = vrot.lane.b32.xlu0 %v2650, 96
        %v3668 = vpop.permute.xlu0 %3667
        %3669 = vrot.lane.b32.xlu0 %v2651, 96
        %v3670 = vpop.permute.xlu0 %3669
        %3671 = vrot.lane.b32.xlu0 %v2652, 96
        %v3672 = vpop.permute.xlu0 %3671
        %3673 = vrot.lane.b32.xlu0 %v2653, 96
        %v3674 = vpop.permute.xlu0 %3673
        %3675 = vrot.lane.b32.xlu0 %v2654, 96
        %v3676 = vpop.permute.xlu0 %3675
        %3677 = vrot.lane.b32.xlu0 %v2655, 96
        %v3678 = vpop.permute.xlu0 %3677
        %3679 = vrot.lane.b32.xlu0 %v2656, 96
        %v3680 = vpop.permute.xlu0 %3679
        %3681 = vrot.lane.b32.xlu0 %v2657, 96
        %v3682 = vpop.permute.xlu0 %3681
        %v3691 = vmul.f32 %v3636, %v3668
        %v3692 = vmul.f32 %v3638, %v3670
        %v3693 = vmul.f32 %v3640, %v3672
        %v3694 = vmul.f32 %v3642, %v3674
        %v3695 = vmul.f32 %v3644, %v3676
        %v3696 = vmul.f32 %v3646, %v3678
        %v3697 = vmul.f32 %v3648, %v3680
        %v3698 = vmul.f32 %v3650, %v3682
        %v3699 = vadd.f32 %v3619, %v3691
        %v3700 = vadd.f32 %v3620, %v3692
        %v3701 = vadd.f32 %v3621, %v3693
        %v3702 = vadd.f32 %v3622, %v3694
        %v3703 = vadd.f32 %v3623, %v3695
        %v3704 = vadd.f32 %v3624, %v3696
        %v3705 = vadd.f32 %v3625, %v3697
        %v3706 = vadd.f32 %v3626, %v3698
        %v3707 = vsub.f32 %v3173, %v3379
        %v3708 = vsub.f32 %v3178, %v3380
        %v3709 = vsub.f32 %v3183, %v3381
        %v3710 = vsub.f32 %v3188, %v3382
        %v3711 = vsub.f32 %v3193, %v3383
        %v3712 = vsub.f32 %v3198, %v3384
        %v3713 = vsub.f32 %v3203, %v3385
        %v3714 = vsub.f32 %v3208, %v3386
        %v3715 = vmul.f32 %v3707, 1.442695
        %v3716 = vpow.pop %v3715
        %v3717 = vmul.f32 %v3708, 1.442695
        %v3718 = vpow.pop %v3717
        %v3719 = vmul.f32 %v3709, 1.442695
        %v3720 = vpow.pop %v3719
        %v3721 = vmul.f32 %v3710, 1.442695
        %v3722 = vpow.pop %v3721
        %v3723 = vmul.f32 %v3711, 1.442695
        %v3724 = vpow.pop %v3723
        %v3725 = vmul.f32 %v3712, 1.442695
        %v3726 = vpow.pop %v3725
        %v3727 = vmul.f32 %v3713, 1.442695
        %v3728 = vpow.pop %v3727
        %v3729 = vmul.f32 %v3714, 1.442695
        %v3730 = vpow.pop %v3729
        %v3731 = vadd.f32 %v3651, %v3716
        %v3732 = vadd.f32 %v3652, %v3718
        %v3733 = vadd.f32 %v3653, %v3720
        %v3734 = vadd.f32 %v3654, %v3722
        %v3735 = vadd.f32 %v3655, %v3724
        %v3736 = vadd.f32 %v3656, %v3726
        %v3737 = vadd.f32 %v3657, %v3728
        %v3738 = vadd.f32 %v3658, %v3730
        %3747 = vrot.lane.b32.xlu0 %v2658, 96
        %v3748 = vpop.permute.xlu0 %3747
        %3749 = vrot.lane.b32.xlu0 %v2659, 96
        %v3750 = vpop.permute.xlu0 %3749
        %3751 = vrot.lane.b32.xlu0 %v2660, 96
        %v3752 = vpop.permute.xlu0 %3751
        %3753 = vrot.lane.b32.xlu0 %v2661, 96
        %v3754 = vpop.permute.xlu0 %3753
        %3755 = vrot.lane.b32.xlu0 %v2662, 96
        %v3756 = vpop.permute.xlu0 %3755
        %3757 = vrot.lane.b32.xlu0 %v2663, 96
        %v3758 = vpop.permute.xlu0 %3757
        %3759 = vrot.lane.b32.xlu0 %v2664, 96
        %v3760 = vpop.permute.xlu0 %3759
        %3761 = vrot.lane.b32.xlu0 %v2665, 96
        %v3762 = vpop.permute.xlu0 %3761
        %v3771 = vmul.f32 %v3716, %v3748
        %v3772 = vmul.f32 %v3718, %v3750
        %v3773 = vmul.f32 %v3720, %v3752
        %v3774 = vmul.f32 %v3722, %v3754
        %v3775 = vmul.f32 %v3724, %v3756
        %v3776 = vmul.f32 %v3726, %v3758
        %v3777 = vmul.f32 %v3728, %v3760
        %v3778 = vmul.f32 %v3730, %v3762
        %v3779 = vadd.f32 %v3699, %v3771
        %v3780 = vadd.f32 %v3700, %v3772
        %v3781 = vadd.f32 %v3701, %v3773
        %v3782 = vadd.f32 %v3702, %v3774
        %v3783 = vadd.f32 %v3703, %v3775
        %v3784 = vadd.f32 %v3704, %v3776
        %v3785 = vadd.f32 %v3705, %v3777
        %v3786 = vadd.f32 %v3706, %v3778
        %v3787 = vsub.f32 %v3213, %v3379
        %v3788 = vsub.f32 %v3218, %v3380
        %v3789 = vsub.f32 %v3223, %v3381
        %v3790 = vsub.f32 %v3228, %v3382
        %v3791 = vsub.f32 %v3233, %v3383
        %v3792 = vsub.f32 %v3238, %v3384
        %v3793 = vsub.f32 %v3243, %v3385
        %v3794 = vsub.f32 %v3248, %v3386
        %v3795 = vmul.f32 %v3787, 1.442695
        %v3796 = vpow.pop %v3795
        %v3797 = vmul.f32 %v3788, 1.442695
        %v3798 = vpow.pop %v3797
        %v3799 = vmul.f32 %v3789, 1.442695
        %v3800 = vpow.pop %v3799
        %v3801 = vmul.f32 %v3790, 1.442695
        %v3802 = vpow.pop %v3801
        %v3803 = vmul.f32 %v3791, 1.442695
        %v3804 = vpow.pop %v3803
        %v3805 = vmul.f32 %v3792, 1.442695
        %v3806 = vpow.pop %v3805
        %v3807 = vmul.f32 %v3793, 1.442695
        %v3808 = vpow.pop %v3807
        %v3809 = vmul.f32 %v3794, 1.442695
        %v3810 = vpow.pop %v3809
        %v3811 = vadd.f32 %v3731, %v3796
        %v3812 = vadd.f32 %v3732, %v3798
        %v3813 = vadd.f32 %v3733, %v3800
        %v3814 = vadd.f32 %v3734, %v3802
        %v3815 = vadd.f32 %v3735, %v3804
        %v3816 = vadd.f32 %v3736, %v3806
        %v3817 = vadd.f32 %v3737, %v3808
        %v3818 = vadd.f32 %v3738, %v3810
        %3827 = vrot.lane.b32.xlu0 %v2666, 96
        %v3828 = vpop.permute.xlu0 %3827
        %3829 = vrot.lane.b32.xlu0 %v2667, 96
        %v3830 = vpop.permute.xlu0 %3829
        %3831 = vrot.lane.b32.xlu0 %v2668, 96
        %v3832 = vpop.permute.xlu0 %3831
        %3833 = vrot.lane.b32.xlu0 %v2669, 96
        %v3834 = vpop.permute.xlu0 %3833
        %3835 = vrot.lane.b32.xlu0 %v2670, 96
        %v3836 = vpop.permute.xlu0 %3835
        %3837 = vrot.lane.b32.xlu0 %v2671, 96
        %v3838 = vpop.permute.xlu0 %3837
        %3839 = vrot.lane.b32.xlu0 %v2672, 96
        %v3840 = vpop.permute.xlu0 %3839
        %3841 = vrot.lane.b32.xlu0 %v2673, 96
        %v3842 = vpop.permute.xlu0 %3841
        %v3851 = vmul.f32 %v3796, %v3828
        %v3852 = vmul.f32 %v3798, %v3830
        %v3853 = vmul.f32 %v3800, %v3832
        %v3854 = vmul.f32 %v3802, %v3834
        %v3855 = vmul.f32 %v3804, %v3836
        %v3856 = vmul.f32 %v3806, %v3838
        %v3857 = vmul.f32 %v3808, %v3840
        %v3858 = vmul.f32 %v3810, %v3842
        %v3859 = vadd.f32 %v3779, %v3851
        %v3860 = vadd.f32 %v3780, %v3852
        %v3861 = vadd.f32 %v3781, %v3853
        %v3862 = vadd.f32 %v3782, %v3854
        %v3863 = vadd.f32 %v3783, %v3855
        %v3864 = vadd.f32 %v3784, %v3856
        %v3865 = vadd.f32 %v3785, %v3857
        %v3866 = vadd.f32 %v3786, %v3858
        %v3867 = vsub.f32 %v3253, %v3379
        %v3868 = vsub.f32 %v3258, %v3380
        %v3869 = vsub.f32 %v3263, %v3381
        %v3870 = vsub.f32 %v3268, %v3382
        %v3871 = vsub.f32 %v3273, %v3383
        %v3872 = vsub.f32 %v3278, %v3384
        %v3873 = vsub.f32 %v3283, %v3385
        %v3874 = vsub.f32 %v3288, %v3386
        %v3875 = vmul.f32 %v3867, 1.442695
        %v3876 = vpow.pop %v3875
        %v3877 = vmul.f32 %v3868, 1.442695
        %v3878 = vpow.pop %v3877
        %v3879 = vmul.f32 %v3869, 1.442695
        %v3880 = vpow.pop %v3879
        %v3881 = vmul.f32 %v3870, 1.442695
        %v3882 = vpow.pop %v3881
        %v3883 = vmul.f32 %v3871, 1.442695
        %v3884 = vpow.pop %v3883
        %v3885 = vmul.f32 %v3872, 1.442695
        %v3886 = vpow.pop %v3885
        %v3887 = vmul.f32 %v3873, 1.442695
        %v3888 = vpow.pop %v3887
        %v3889 = vmul.f32 %v3874, 1.442695
        %v3890 = vpow.pop %v3889
        %v3891 = vadd.f32 %v3811, %v3876
        %v3892 = vadd.f32 %v3812, %v3878
        %v3893 = vadd.f32 %v3813, %v3880
        %v3894 = vadd.f32 %v3814, %v3882
        %v3895 = vadd.f32 %v3815, %v3884
        %v3896 = vadd.f32 %v3816, %v3886
        %v3897 = vadd.f32 %v3817, %v3888
        %v3898 = vadd.f32 %v3818, %v3890
        %3907 = vrot.lane.b32.xlu0 %v2674, 96
        %v3908 = vpop.permute.xlu0 %3907
        %3909 = vrot.lane.b32.xlu0 %v2675, 96
        %v3910 = vpop.permute.xlu0 %3909
        %3911 = vrot.lane.b32.xlu0 %v2676, 96
        %v3912 = vpop.permute.xlu0 %3911
        %3913 = vrot.lane.b32.xlu0 %v2677, 96
        %v3914 = vpop.permute.xlu0 %3913
        %3915 = vrot.lane.b32.xlu0 %v2678, 96
        %v3916 = vpop.permute.xlu0 %3915
        %3917 = vrot.lane.b32.xlu0 %v2679, 96
        %v3918 = vpop.permute.xlu0 %3917
        %3919 = vrot.lane.b32.xlu0 %v2680, 96
        %v3920 = vpop.permute.xlu0 %3919
        %3921 = vrot.lane.b32.xlu0 %v2681, 96
        %v3922 = vpop.permute.xlu0 %3921
        %v3931 = vmul.f32 %v3876, %v3908
        %v3932 = vmul.f32 %v3878, %v3910
        %v3933 = vmul.f32 %v3880, %v3912
        %v3934 = vmul.f32 %v3882, %v3914
        %v3935 = vmul.f32 %v3884, %v3916
        %v3936 = vmul.f32 %v3886, %v3918
        %v3937 = vmul.f32 %v3888, %v3920
        %v3938 = vmul.f32 %v3890, %v3922
        %v3939 = vadd.f32 %v3859, %v3931
        %v3940 = vadd.f32 %v3860, %v3932
        %v3941 = vadd.f32 %v3861, %v3933
        %v3942 = vadd.f32 %v3862, %v3934
        %v3943 = vadd.f32 %v3863, %v3935
        %v3944 = vadd.f32 %v3864, %v3936
        %v3945 = vadd.f32 %v3865, %v3937
        %v3946 = vadd.f32 %v3866, %v3938
        %v3947 = vsub.f32 %v3293, %v3379
        %v3948 = vsub.f32 %v3298, %v3380
        %v3949 = vsub.f32 %v3303, %v3381
        %v3950 = vsub.f32 %v3308, %v3382
        %v3951 = vsub.f32 %v3313, %v3383
        %v3952 = vsub.f32 %v3318, %v3384
        %v3953 = vsub.f32 %v3323, %v3385
        %v3954 = vsub.f32 %v3328, %v3386
        %v3955 = vmul.f32 %v3947, 1.442695
        %v3956 = vpow.pop %v3955
        %v3957 = vmul.f32 %v3948, 1.442695
        %v3958 = vpow.pop %v3957
        %v3959 = vmul.f32 %v3949, 1.442695
        %v3960 = vpow.pop %v3959
        %v3961 = vmul.f32 %v3950, 1.442695
        %v3962 = vpow.pop %v3961
        %v3963 = vmul.f32 %v3951, 1.442695
        %v3964 = vpow.pop %v3963
        %v3965 = vmul.f32 %v3952, 1.442695
        %v3966 = vpow.pop %v3965
        %v3967 = vmul.f32 %v3953, 1.442695
        %v3968 = vpow.pop %v3967
        %v3969 = vmul.f32 %v3954, 1.442695
        %v3970 = vpow.pop %v3969
        %v3971 = vadd.f32 %v3891, %v3956
        %v3972 = vadd.f32 %v3892, %v3958
        %v3973 = vadd.f32 %v3893, %v3960
        %v3974 = vadd.f32 %v3894, %v3962
        %v3975 = vadd.f32 %v3895, %v3964
        %v3976 = vadd.f32 %v3896, %v3966
        %v3977 = vadd.f32 %v3897, %v3968
        %v3978 = vadd.f32 %v3898, %v3970
        %3987 = vrot.lane.b32.xlu0 %v2682, 96
        %v3988 = vpop.permute.xlu0 %3987
        %3989 = vrot.lane.b32.xlu0 %v2683, 96
        %v3990 = vpop.permute.xlu0 %3989
        %3991 = vrot.lane.b32.xlu0 %v2684, 96
        %v3992 = vpop.permute.xlu0 %3991
        %3993 = vrot.lane.b32.xlu0 %v2685, 96
        %v3994 = vpop.permute.xlu0 %3993
        %3995 = vrot.lane.b32.xlu0 %v2686, 96
        %v3996 = vpop.permute.xlu0 %3995
        %3997 = vrot.lane.b32.xlu0 %v2687, 96
        %v3998 = vpop.permute.xlu0 %3997
        %3999 = vrot.lane.b32.xlu0 %v2688, 96
        %v4000 = vpop.permute.xlu0 %3999
        %4001 = vrot.lane.b32.xlu0 %v2689, 96
        %v4002 = vpop.permute.xlu0 %4001
        %v4011 = vmul.f32 %v3956, %v3988
        %v4012 = vmul.f32 %v3958, %v3990
        %v4013 = vmul.f32 %v3960, %v3992
        %v4014 = vmul.f32 %v3962, %v3994
        %v4015 = vmul.f32 %v3964, %v3996
        %v4016 = vmul.f32 %v3966, %v3998
        %v4017 = vmul.f32 %v3968, %v4000
        %v4018 = vmul.f32 %v3970, %v4002
        %v4019 = vadd.f32 %v3939, %v4011
        %v4020 = vadd.f32 %v3940, %v4012
        %v4021 = vadd.f32 %v3941, %v4013
        %v4022 = vadd.f32 %v3942, %v4014
        %v4023 = vadd.f32 %v3943, %v4015
        %v4024 = vadd.f32 %v3944, %v4016
        %v4025 = vadd.f32 %v3945, %v4017
        %v4026 = vadd.f32 %v3946, %v4018
        %v4027 = vrcp.pop %v3971
        %v4028 = vrcp.pop %v3972
        %v4029 = vrcp.pop %v3973
        %v4030 = vrcp.pop %v3974
        %v4031 = vrcp.pop %v3975
        %v4032 = vrcp.pop %v3976
        %v4033 = vrcp.pop %v3977
        %v4034 = vrcp.pop %v3978
        %v4035 = vmul.f32 %v4019, %v4027
        %v4036 = vmul.f32 %v4020, %v4028
        %v4037 = vmul.f32 %v4021, %v4029
        %v4038 = vmul.f32 %v4022, %v4030
        %v4039 = vmul.f32 %v4023, %v4031
        %v4040 = vmul.f32 %v4024, %v4032
        %v4041 = vmul.f32 %v4025, %v4033
        %v4042 = vmul.f32 %v4026, %v4034
        %v4044 = vsel %vm612, %v4035, 0
        %v4047 = vsel %vm612, %v4036, 0
        %v4050 = vsel %vm612, %v4037, 0
        %v4053 = vsel %vm612, %v4038, 0
        %v4056 = vsel %vm612, %v4039, 0
        %v4059 = vsel %vm612, %v4040, 0
        %v4062 = vsel %vm612, %v4041, 0
        %v4065 = vsel %vm612, %v4042, 0
        %4067 = vmatprep.subr.mxu0 0.0
        %4068 = vmatpush1.msra.mxu0 %v1447
        %4069 = vmatprep.subr.mxu0 0.0
        %4070 = vmatpush1.msra.mxu0 %v1449
        %4071 = vmatprep.subr.mxu0 0.0
        %4072 = vmatpush1.msra.mxu0 %v1451
        %4073 = vmatprep.subr.mxu0 0.0
        %4074 = vmatpush1.msra.mxu0 %v1453
        %4075 = vmatprep.subr.mxu0 0.0
        %4076 = vmatpush1.msra.mxu0 0.0
        %4077 = vmatprep.subr.mxu0 0.0
        %4078 = vmatpush1.msra.mxu0 0.0
        %4079 = vmatprep.subr.mxu0 0.0
        %4080 = vmatpush1.msra.mxu0 0.0
        %4081 = vmatprep.subr.mxu0 0.0
        %4082 = vmatpush1.msra.mxu0 0.0
        %4083 = vmatprep.subr.mxu0 0.0
        %4084 = vmatpush1.msra.mxu0 0.0
        %4085 = vmatprep.subr.mxu0 0.0
        %4086 = vmatpush1.msra.mxu0 0.0
        %4087 = vmatprep.subr.mxu0 0.0
        %4088 = vmatpush1.msra.mxu0 0.0
        %4089 = vmatprep.subr.mxu0 0.0
        %4090 = vmatpush1.msra.mxu0 0.0
        %4091 = vmatprep.subr.mxu0 0.0
        %4092 = vmatpush1.msra.mxu0 0.0
        %4093 = vmatprep.subr.mxu0 0.0
        %4094 = vmatpush1.msra.mxu0 0.0
        %4095 = vmatprep.subr.mxu0 0.0
        %4096 = vmatpush1.msra.mxu0 0.0
        %4097 = vmatprep.subr.mxu0 0.0
        %4098 = vmatpush1.msra.mxu0 0.0
        %4099 = vmatprep.subr.mxu0 0.0
        %4100 = vmatpush1.msra.mxu0 0.0
        %4101 = vmatprep.subr.mxu0 0.0
        %4102 = vmatpush1.msra.mxu0 0.0
        %4103 = vmatprep.subr.mxu0 0.0
        %4104 = vmatpush1.msra.mxu0 0.0
        %4105 = vmatprep.subr.mxu0 0.0
        %4106 = vmatpush1.msra.mxu0 0.0
        %4107 = vmatprep.subr.mxu0 0.0
        %4108 = vmatpush1.msra.mxu0 0.0
        %4109 = vmatprep.subr.mxu0 0.0
        %4110 = vmatpush1.msra.mxu0 0.0
        %4111 = vmatprep.subr.mxu0 0.0
        %4112 = vmatpush1.msra.mxu0 0.0
        %4113 = vmatprep.subr.mxu0 0.0
        %4114 = vmatpush1.msra.mxu0 0.0
        %4115 = vmatprep.subr.mxu0 0.0
        %4116 = vmatpush1.msra.mxu0 0.0
        %4117 = vmatprep.subr.mxu0 0.0
        %4118 = vmatpush1.msra.mxu0 0.0
        %4119 = vmatprep.subr.mxu0 0.0
        %4120 = vmatpush1.msra.mxu0 0.0
        %4121 = vmatprep.subr.mxu0 0.0
        %4122 = vmatpush1.msra.mxu0 0.0
        %4123 = vmatprep.subr.mxu0 0.0
        %4124 = vmatpush1.msra.mxu0 0.0
        %4125 = vmatprep.subr.mxu0 0.0
        %4126 = vmatpush1.msra.mxu0 0.0
        %4127 = vmatprep.subr.mxu0 0.0
        %4128 = vmatpush1.msra.mxu0 0.0
        %4129 = vmatprep.subr.mxu0 0.0
        %4130 = vmatpush1.msra.mxu0 0.0
        %4131 = vmatprep.mubr.f32.mxu0 0.0
        %4132 = vmatmul.mubr.f32.gmra.mrb[0].mxu0 %v4044
        %v4133 = vpop.f32.mrb[0].mxu0
        %v4134 = vadd.f32 0.0, %v4133
        %v4135 = vpop.f32.mrb[0].mxu0
        %4136 = vmatprep.mubr.f32.mxu0 0.0
        %4137 = vmatmul.mubr.f32.gmra.mrb[0].mxu0 %v4047
        %v4138 = vpop.f32.mrb[0].mxu0
        %v4139 = vadd.f32 0.0, %v4138
        %v4140 = vpop.f32.mrb[0].mxu0
        %4141 = vmatprep.mubr.f32.mxu0 0.0
        %4142 = vmatmul.mubr.f32.gmra.mrb[0].mxu0 %v4050
        %v4143 = vpop.f32.mrb[0].mxu0
        %v4144 = vadd.f32 0.0, %v4143
        %v4145 = vpop.f32.mrb[0].mxu0
        %4146 = vmatprep.mubr.f32.mxu0 0.0
        %4147 = vmatmul.mubr.f32.gmra.mrb[0].mxu0 %v4053
        %v4148 = vpop.f32.mrb[0].mxu0
        %v4149 = vadd.f32 0.0, %v4148
        %v4150 = vpop.f32.mrb[0].mxu0
        %4151 = vmatprep.mubr.f32.mxu0 0.0
        %4152 = vmatmul.mubr.f32.gmra.mrb[0].mxu0 %v4056
        %v4153 = vpop.f32.mrb[0].mxu0
        %v4154 = vadd.f32 0.0, %v4153
        %v4155 = vpop.f32.mrb[0].mxu0
        %4156 = vmatprep.mubr.f32.mxu0 0.0
        %4157 = vmatmul.mubr.f32.gmra.mrb[0].mxu0 %v4059
        %v4158 = vpop.f32.mrb[0].mxu0
        %v4159 = vadd.f32 0.0, %v4158
        %v4160 = vpop.f32.mrb[0].mxu0
        %4161 = vmatprep.mubr.f32.mxu0 0.0
        %4162 = vmatmul.mubr.f32.gmra.mrb[0].mxu0 %v4062
        %v4163 = vpop.f32.mrb[0].mxu0
        %v4164 = vadd.f32 0.0, %v4163
        %v4165 = vpop.f32.mrb[0].mxu0
        %4166 = vmatprep.mubr.f32.mxu0 0.0
        %4167 = vmatmul.mubr.f32.gmra.mrb[0].mxu0 %v4065
        %v4168 = vpop.f32.mrb[0].mxu0
        %v4169 = vadd.f32 0.0, %v4168
        %v4170 = vpop.f32.mrb[0].mxu0
        %4171 = vdwg.mxu0
        %v4172 = vadd.f32 %v1700, %v4134
        %v4173 = vadd.f32 %v1701, %v4139
        %v4174 = vadd.f32 %v1702, %v4144
        %v4175 = vadd.f32 %v1703, %v4149
        %v4176 = vadd.f32 %v1704, %v4154
        %v4177 = vadd.f32 %v1705, %v4159
        %v4178 = vadd.f32 %v1706, %v4164
        %v4179 = vadd.f32 %v1707, %v4169
        %v4180 = vlaneseq
        %v4181 = vshrl.u32 %v4180, 7
        %v4182 = vsub.s32 4, %v4181
        %v4183 = vrot.slane %v1454, %v4182
        %v4184 = vadd.f32 %v4172, %v4183
        %v4185 = vadd.f32 %v4173, %v4183
        %v4186 = vadd.f32 %v4174, %v4183
        %v4187 = vadd.f32 %v4175, %v4183
        %v4188 = vadd.f32 %v4176, %v4183
        %v4189 = vadd.f32 %v4177, %v4183
        %v4190 = vadd.f32 %v4178, %v4183
        %v4191 = vadd.f32 %v4179, %v4183
        %s4192 = scalar_lea.vmem %s2, 64
        %v4193 = vld [vmem:[%s4192] sm:$0xff]
        %v4194 = vld [vmem:[%s4192 + $0x10] sm:$0xff]
        %v4195 = vld [vmem:[%s4192 + $0x20] sm:$0xff]
        %v4196 = vld [vmem:[%s4192 + $0x30] sm:$0xff]
        %s4197 = scalar_lea.vmem %s3, 8
        %v4198 = vld [vmem:[%s4197] sm:$0x1f]
        %v4199 = vsel %vm612, %v4184, 0.0
        %4200 = vadd.xlane.f32.xlu0 %v4199
        %v4201 = vpop.xlane.xlu0 %4200
        %v4202 = vsel %vm612, %v4185, 0.0
        %4203 = vadd.xlane.f32.xlu0 %v4202
        %v4204 = vpop.xlane.xlu0 %4203
        %v4205 = vsel %vm612, %v4186, 0.0
        %4206 = vadd.xlane.f32.xlu0 %v4205
        %v4207 = vpop.xlane.xlu0 %4206
        %v4208 = vsel %vm612, %v4187, 0.0
        %4209 = vadd.xlane.f32.xlu0 %v4208
        %v4210 = vpop.xlane.xlu0 %4209
        %v4211 = vsel %vm612, %v4188, 0.0
        %4212 = vadd.xlane.f32.xlu0 %v4211
        %v4213 = vpop.xlane.xlu0 %4212
        %v4214 = vsel %vm612, %v4189, 0.0
        %4215 = vadd.xlane.f32.xlu0 %v4214
        %v4216 = vpop.xlane.xlu0 %4215
        %v4217 = vsel %vm612, %v4190, 0.0
        %4218 = vadd.xlane.f32.xlu0 %v4217
        %v4219 = vpop.xlane.xlu0 %4218
        %v4220 = vsel %vm612, %v4191, 0.0
        %4221 = vadd.xlane.f32.xlu0 %v4220
        %v4222 = vpop.xlane.xlu0 %4221
        %v4223 = vmul.f32 %v4201, %v805
        %v4224 = vmul.f32 %v4204, %v805
        %v4225 = vmul.f32 %v4207, %v805
        %v4226 = vmul.f32 %v4210, %v805
        %v4227 = vmul.f32 %v4213, %v805
        %v4228 = vmul.f32 %v4216, %v805
        %v4229 = vmul.f32 %v4219, %v805
        %v4230 = vmul.f32 %v4222, %v805
        %v4231 = vsub.f32 %v4184, %v4223
        %v4232 = vsub.f32 %v4185, %v4224
        %v4233 = vsub.f32 %v4186, %v4225
        %v4234 = vsub.f32 %v4187, %v4226
        %v4235 = vsub.f32 %v4188, %v4227
        %v4236 = vsub.f32 %v4189, %v4228
        %v4237 = vsub.f32 %v4190, %v4229
        %v4238 = vsub.f32 %v4191, %v4230
        %v4239 = vmul.f32 %v4231, %v4231
        %v4240 = vmul.f32 %v4232, %v4232
        %v4241 = vmul.f32 %v4233, %v4233
        %v4242 = vmul.f32 %v4234, %v4234
        %v4243 = vmul.f32 %v4235, %v4235
        %v4244 = vmul.f32 %v4236, %v4236
        %v4245 = vmul.f32 %v4237, %v4237
        %v4246 = vmul.f32 %v4238, %v4238
        %v4247 = vsel %vm612, %v4239, 0.0
        %4248 = vadd.xlane.f32.xlu0 %v4247
        %v4249 = vpop.xlane.xlu0 %4248
        %v4250 = vsel %vm612, %v4240, 0.0
        %4251 = vadd.xlane.f32.xlu0 %v4250
        %v4252 = vpop.xlane.xlu0 %4251
        %v4253 = vsel %vm612, %v4241, 0.0
        %4254 = vadd.xlane.f32.xlu0 %v4253
        %v4255 = vpop.xlane.xlu0 %4254
        %v4256 = vsel %vm612, %v4242, 0.0
        %4257 = vadd.xlane.f32.xlu0 %v4256
        %v4258 = vpop.xlane.xlu0 %4257
        %v4259 = vsel %vm612, %v4243, 0.0
        %4260 = vadd.xlane.f32.xlu0 %v4259
        %v4261 = vpop.xlane.xlu0 %4260
        %v4262 = vsel %vm612, %v4244, 0.0
        %4263 = vadd.xlane.f32.xlu0 %v4262
        %v4264 = vpop.xlane.xlu0 %4263
        %v4265 = vsel %vm612, %v4245, 0.0
        %4266 = vadd.xlane.f32.xlu0 %v4265
        %v4267 = vpop.xlane.xlu0 %4266
        %v4268 = vsel %vm612, %v4246, 0.0
        %4269 = vadd.xlane.f32.xlu0 %v4268
        %v4270 = vpop.xlane.xlu0 %4269
        %v4271 = vmul.f32 %v4249, %v805
        %v4272 = vmul.f32 %v4252, %v805
        %v4273 = vmul.f32 %v4255, %v805
        %v4274 = vmul.f32 %v4258, %v805
        %v4275 = vmul.f32 %v4261, %v805
        %v4276 = vmul.f32 %v4264, %v805
        %v4277 = vmul.f32 %v4267, %v805
        %v4278 = vmul.f32 %v4270, %v805
        %v4279 = vadd.f32 %v4271, 1e-05
        %v4280 = vadd.f32 %v4272, 1e-05
        %v4281 = vadd.f32 %v4273, 1e-05
        %v4282 = vadd.f32 %v4274, 1e-05
        %v4283 = vadd.f32 %v4275, 1e-05
        %v4284 = vadd.f32 %v4276, 1e-05
        %v4285 = vadd.f32 %v4277, 1e-05
        %v4286 = vadd.f32 %v4278, 1e-05
        %v4287 = vrsqrt.pop %v4279
        %v4288 = vrsqrt.pop %v4280
        %v4289 = vrsqrt.pop %v4281
        %v4290 = vrsqrt.pop %v4282
        %v4291 = vrsqrt.pop %v4283
        %v4292 = vrsqrt.pop %v4284
        %v4293 = vrsqrt.pop %v4285
        %v4294 = vrsqrt.pop %v4286
        %v4295 = vmul.f32 %v4231, %v4287
        %v4296 = vmul.f32 %v4232, %v4288
        %v4297 = vmul.f32 %v4233, %v4289
        %v4298 = vmul.f32 %v4234, %v4290
        %v4299 = vmul.f32 %v4235, %v4291
        %v4300 = vmul.f32 %v4236, %v4292
        %v4301 = vmul.f32 %v4237, %v4293
        %v4302 = vmul.f32 %v4238, %v4294
        %v4304 = vsel %vm612, %v4295, 0
        %v4307 = vsel %vm612, %v4296, 0
        %v4310 = vsel %vm612, %v4297, 0
        %v4313 = vsel %vm612, %v4298, 0
        %v4316 = vsel %vm612, %v4299, 0
        %v4319 = vsel %vm612, %v4300, 0
        %v4322 = vsel %vm612, %v4301, 0
        %v4325 = vsel %vm612, %v4302, 0
        %4327 = vmatprep.subr.mxu0 0.0
        %4328 = vmatpush1.msra.mxu0 %v4193
        %4329 = vmatprep.subr.mxu0 0.0
        %4330 = vmatpush1.msra.mxu0 %v4194
        %4331 = vmatprep.subr.mxu0 0.0
        %4332 = vmatpush1.msra.mxu0 %v4195
        %4333 = vmatprep.subr.mxu0 0.0
        %4334 = vmatpush1.msra.mxu0 %v4196
        %4335 = vmatprep.subr.mxu0 0.0
        %4336 = vmatpush1.msra.mxu0 0.0
        %4337 = vmatprep.subr.mxu0 0.0
        %4338 = vmatpush1.msra.mxu0 0.0
        %4339 = vmatprep.subr.mxu0 0.0
        %4340 = vmatpush1.msra.mxu0 0.0
        %4341 = vmatprep.subr.mxu0 0.0
        %4342 = vmatpush1.msra.mxu0 0.0
        %4343 = vmatprep.subr.mxu0 0.0
        %4344 = vmatpush1.msra.mxu0 0.0
        %4345 = vmatprep.subr.mxu0 0.0
        %4346 = vmatpush1.msra.mxu0 0.0
        %4347 = vmatprep.subr.mxu0 0.0
        %4348 = vmatpush1.msra.mxu0 0.0
        %4349 = vmatprep.subr.mxu0 0.0
        %4350 = vmatpush1.msra.mxu0 0.0
        %4351 = vmatprep.subr.mxu0 0.0
        %4352 = vmatpush1.msra.mxu0 0.0
        %4353 = vmatprep.subr.mxu0 0.0
        %4354 = vmatpush1.msra.mxu0 0.0
        %4355 = vmatprep.subr.mxu0 0.0
        %4356 = vmatpush1.msra.mxu0 0.0
        %4357 = vmatprep.subr.mxu0 0.0
        %4358 = vmatpush1.msra.mxu0 0.0
        %4359 = vmatprep.subr.mxu0 0.0
        %4360 = vmatpush1.msra.mxu0 0.0
        %4361 = vmatprep.subr.mxu0 0.0
        %4362 = vmatpush1.msra.mxu0 0.0
        %4363 = vmatprep.subr.mxu0 0.0
        %4364 = vmatpush1.msra.mxu0 0.0
        %4365 = vmatprep.subr.mxu0 0.0
        %4366 = vmatpush1.msra.mxu0 0.0
        %4367 = vmatprep.subr.mxu0 0.0
        %4368 = vmatpush1.msra.mxu0 0.0
        %4369 = vmatprep.subr.mxu0 0.0
        %4370 = vmatpush1.msra.mxu0 0.0
        %4371 = vmatprep.subr.mxu0 0.0
        %4372 = vmatpush1.msra.mxu0 0.0
        %4373 = vmatprep.subr.mxu0 0.0
        %4374 = vmatpush1.msra.mxu0 0.0
        %4375 = vmatprep.subr.mxu0 0.0
        %4376 = vmatpush1.msra.mxu0 0.0
        %4377 = vmatprep.subr.mxu0 0.0
        %4378 = vmatpush1.msra.mxu0 0.0
        %4379 = vmatprep.subr.mxu0 0.0
        %4380 = vmatpush1.msra.mxu0 0.0
        %4381 = vmatprep.subr.mxu0 0.0
        %4382 = vmatpush1.msra.mxu0 0.0
        %4383 = vmatprep.subr.mxu0 0.0
        %4384 = vmatpush1.msra.mxu0 0.0
        %4385 = vmatprep.subr.mxu0 0.0
        %4386 = vmatpush1.msra.mxu0 0.0
        %4387 = vmatprep.subr.mxu0 0.0
        %4388 = vmatpush1.msra.mxu0 0.0
        %4389 = vmatprep.subr.mxu0 0.0
        %4390 = vmatpush1.msra.mxu0 0.0
        %4391 = vmatprep.mubr.f32.mxu0 0.0
        %4392 = vmatmul.mubr.f32.gmra.mrb[0].mxu0 %v4304
        %v4393 = vpop.f32.mrb[0].mxu0
        %v4394 = vadd.f32 0.0, %v4393
        %v4395 = vpop.f32.mrb[0].mxu0
        %4396 = vmatprep.mubr.f32.mxu0 0.0
        %4397 = vmatmul.mubr.f32.gmra.mrb[0].mxu0 %v4307
        %v4398 = vpop.f32.mrb[0].mxu0
        %v4399 = vadd.f32 0.0, %v4398
        %v4400 = vpop.f32.mrb[0].mxu0
        %4401 = vmatprep.mubr.f32.mxu0 0.0
        %4402 = vmatmul.mubr.f32.gmra.mrb[0].mxu0 %v4310
        %v4403 = vpop.f32.mrb[0].mxu0
        %v4404 = vadd.f32 0.0, %v4403
        %v4405 = vpop.f32.mrb[0].mxu0
        %4406 = vmatprep.mubr.f32.mxu0 0.0
        %4407 = vmatmul.mubr.f32.gmra.mrb[0].mxu0 %v4313
        %v4408 = vpop.f32.mrb[0].mxu0
        %v4409 = vadd.f32 0.0, %v4408
        %v4410 = vpop.f32.mrb[0].mxu0
        %4411 = vmatprep.mubr.f32.mxu0 0.0
        %4412 = vmatmul.mubr.f32.gmra.mrb[0].mxu0 %v4316
        %v4413 = vpop.f32.mrb[0].mxu0
        %v4414 = vadd.f32 0.0, %v4413
        %v4415 = vpop.f32.mrb[0].mxu0
        %4416 = vmatprep.mubr.f32.mxu0 0.0
        %4417 = vmatmul.mubr.f32.gmra.mrb[0].mxu0 %v4319
        %v4418 = vpop.f32.mrb[0].mxu0
        %v4419 = vadd.f32 0.0, %v4418
        %v4420 = vpop.f32.mrb[0].mxu0
        %4421 = vmatprep.mubr.f32.mxu0 0.0
        %4422 = vmatmul.mubr.f32.gmra.mrb[0].mxu0 %v4322
        %v4423 = vpop.f32.mrb[0].mxu0
        %v4424 = vadd.f32 0.0, %v4423
        %v4425 = vpop.f32.mrb[0].mxu0
        %4426 = vmatprep.mubr.f32.mxu0 0.0
        %4427 = vmatmul.mubr.f32.gmra.mrb[0].mxu0 %v4325
        %v4428 = vpop.f32.mrb[0].mxu0
        %v4429 = vadd.f32 0.0, %v4428
        %v4430 = vpop.f32.mrb[0].mxu0
        %4431 = vdwg.mxu0
        %v4432 = vadd.f32 %v4184, %v4394
        %v4433 = vadd.f32 %v4185, %v4399
        %v4434 = vadd.f32 %v4186, %v4404
        %v4435 = vadd.f32 %v4187, %v4409
        %v4436 = vadd.f32 %v4188, %v4414
        %v4437 = vadd.f32 %v4189, %v4419
        %v4438 = vadd.f32 %v4190, %v4424
        %v4439 = vadd.f32 %v4191, %v4429
        %v4440 = vlaneseq
        %v4441 = vshrl.u32 %v4440, 7
        %v4442 = vsub.s32 0, %v4441
        %v4443 = vrot.slane %v4198, %v4442
        %v4444 = vadd.f32 %v4432, %v4443
        %v4445 = vadd.f32 %v4433, %v4443
        %v4446 = vadd.f32 %v4434, %v4443
        %v4447 = vadd.f32 %v4435, %v4443
        %v4448 = vadd.f32 %v4436, %v4443
        %v4449 = vadd.f32 %v4437, %v4443
        %v4450 = vadd.f32 %v4438, %v4443
        %v4451 = vadd.f32 %v4439, %v4443
        %v4452 = vsel %vm612, %v4444, 0.0
        %4453 = vadd.xlane.f32.xlu0 %v4452
        %v4454 = vpop.xlane.xlu0 %4453
        %v4455 = vsel %vm612, %v4445, 0.0
        %4456 = vadd.xlane.f32.xlu0 %v4455
        %v4457 = vpop.xlane.xlu0 %4456
        %v4458 = vsel %vm612, %v4446, 0.0
        %4459 = vadd.xlane.f32.xlu0 %v4458
        %v4460 = vpop.xlane.xlu0 %4459
        %v4461 = vsel %vm612, %v4447, 0.0
        %4462 = vadd.xlane.f32.xlu0 %v4461
        %v4463 = vpop.xlane.xlu0 %4462
        %v4464 = vsel %vm612, %v4448, 0.0
        %4465 = vadd.xlane.f32.xlu0 %v4464
        %v4466 = vpop.xlane.xlu0 %4465
        %v4467 = vsel %vm612, %v4449, 0.0
        %4468 = vadd.xlane.f32.xlu0 %v4467
        %v4469 = vpop.xlane.xlu0 %4468
        %v4470 = vsel %vm612, %v4450, 0.0
        %4471 = vadd.xlane.f32.xlu0 %v4470
        %v4472 = vpop.xlane.xlu0 %4471
        %v4473 = vsel %vm612, %v4451, 0.0
        %4474 = vadd.xlane.f32.xlu0 %v4473
        %v4475 = vpop.xlane.xlu0 %4474
        %v4476 = vmul.f32 %v4454, %v805
        %v4477 = vmul.f32 %v4457, %v805
        %v4478 = vmul.f32 %v4460, %v805
        %v4479 = vmul.f32 %v4463, %v805
        %v4480 = vmul.f32 %v4466, %v805
        %v4481 = vmul.f32 %v4469, %v805
        %v4482 = vmul.f32 %v4472, %v805
        %v4483 = vmul.f32 %v4475, %v805
        %v4484 = vsub.f32 %v4444, %v4476
        %v4485 = vsub.f32 %v4445, %v4477
        %v4486 = vsub.f32 %v4446, %v4478
        %v4487 = vsub.f32 %v4447, %v4479
        %v4488 = vsub.f32 %v4448, %v4480
        %v4489 = vsub.f32 %v4449, %v4481
        %v4490 = vsub.f32 %v4450, %v4482
        %v4491 = vsub.f32 %v4451, %v4483
        %v4492 = vmul.f32 %v4484, %v4484
        %v4493 = vmul.f32 %v4485, %v4485
        %v4494 = vmul.f32 %v4486, %v4486
        %v4495 = vmul.f32 %v4487, %v4487
        %v4496 = vmul.f32 %v4488, %v4488
        %v4497 = vmul.f32 %v4489, %v4489
        %v4498 = vmul.f32 %v4490, %v4490
        %v4499 = vmul.f32 %v4491, %v4491
        %v4500 = vsel %vm612, %v4492, 0.0
        %4501 = vadd.xlane.f32.xlu0 %v4500
        %v4502 = vpop.xlane.xlu0 %4501
        %v4503 = vsel %vm612, %v4493, 0.0
        %4504 = vadd.xlane.f32.xlu0 %v4503
        %v4505 = vpop.xlane.xlu0 %4504
        %v4506 = vsel %vm612, %v4494, 0.0
        %4507 = vadd.xlane.f32.xlu0 %v4506
        %v4508 = vpop.xlane.xlu0 %4507
        %v4509 = vsel %vm612, %v4495, 0.0
        %4510 = vadd.xlane.f32.xlu0 %v4509
        %v4511 = vpop.xlane.xlu0 %4510
        %v4512 = vsel %vm612, %v4496, 0.0
        %4513 = vadd.xlane.f32.xlu0 %v4512
        %v4514 = vpop.xlane.xlu0 %4513
        %v4515 = vsel %vm612, %v4497, 0.0
        %4516 = vadd.xlane.f32.xlu0 %v4515
        %v4517 = vpop.xlane.xlu0 %4516
        %v4518 = vsel %vm612, %v4498, 0.0
        %4519 = vadd.xlane.f32.xlu0 %v4518
        %v4520 = vpop.xlane.xlu0 %4519
        %v4521 = vsel %vm612, %v4499, 0.0
        %4522 = vadd.xlane.f32.xlu0 %v4521
        %v4523 = vpop.xlane.xlu0 %4522
        %v4524 = vmul.f32 %v4502, %v805
        %v4525 = vmul.f32 %v4505, %v805
        %v4526 = vmul.f32 %v4508, %v805
        %v4527 = vmul.f32 %v4511, %v805
        %v4528 = vmul.f32 %v4514, %v805
        %v4529 = vmul.f32 %v4517, %v805
        %v4530 = vmul.f32 %v4520, %v805
        %v4531 = vmul.f32 %v4523, %v805
        %v4532 = vadd.f32 %v4524, 1e-05
        %v4533 = vadd.f32 %v4525, 1e-05
        %v4534 = vadd.f32 %v4526, 1e-05
        %v4535 = vadd.f32 %v4527, 1e-05
        %v4536 = vadd.f32 %v4528, 1e-05
        %v4537 = vadd.f32 %v4529, 1e-05
        %v4538 = vadd.f32 %v4530, 1e-05
        %v4539 = vadd.f32 %v4531, 1e-05
        %v4540 = vrsqrt.pop %v4532
        %v4541 = vrsqrt.pop %v4533
        %v4542 = vrsqrt.pop %v4534
        %v4543 = vrsqrt.pop %v4535
        %v4544 = vrsqrt.pop %v4536
        %v4545 = vrsqrt.pop %v4537
        %v4546 = vrsqrt.pop %v4538
        %v4547 = vrsqrt.pop %v4539
        %v4548 = vmul.f32 %v4484, %v4540
        %v4549 = vmul.f32 %v4485, %v4541
        %v4550 = vmul.f32 %v4486, %v4542
        %v4551 = vmul.f32 %v4487, %v4543
        %v4552 = vmul.f32 %v4488, %v4544
        %v4553 = vmul.f32 %v4489, %v4545
        %v4554 = vmul.f32 %v4490, %v4546
        %v4555 = vmul.f32 %v4491, %v4547
        %v4556 = vlaneseq
        %v4557 = vshrl.u32 %v4556, 7
        %v4558 = vsub.s32 1, %v4557
        %v4559 = vrot.slane %v4198, %v4558
        %4564 = vrot.lane.b32.xlu0 %v4193, 96
        %v4565 = vpop.permute.xlu0 %4564
        %4566 = vrot.lane.b32.xlu0 %v4194, 96
        %v4567 = vpop.permute.xlu0 %4566
        %4568 = vrot.lane.b32.xlu0 %v4195, 96
        %v4569 = vpop.permute.xlu0 %4568
        %4570 = vrot.lane.b32.xlu0 %v4196, 96
        %v4571 = vpop.permute.xlu0 %4570
        %v4577 = vsel %vm612, %v4548, 0
        %v4580 = vsel %vm612, %v4549, 0
        %v4583 = vsel %vm612, %v4550, 0
        %v4586 = vsel %vm612, %v4551, 0
        %v4589 = vsel %vm612, %v4552, 0
        %v4592 = vsel %vm612, %v4553, 0
        %v4595 = vsel %vm612, %v4554, 0
        %v4598 = vsel %vm612, %v4555, 0
        %4600 = vmatprep.subr.mxu0 0.0
        %4601 = vmatpush1.msra.mxu0 %v4565
        %4602 = vmatprep.subr.mxu0 0.0
        %4603 = vmatpush1.msra.mxu0 %v4567
        %4604 = vmatprep.subr.mxu0 0.0
        %4605 = vmatpush1.msra.mxu0 %v4569
        %4606 = vmatprep.subr.mxu0 0.0
        %4607 = vmatpush1.msra.mxu0 %v4571
        %4608 = vmatprep.subr.mxu0 0.0
        %4609 = vmatpush1.msra.mxu0 0.0
        %4610 = vmatprep.subr.mxu0 0.0
        %4611 = vmatpush1.msra.mxu0 0.0
        %4612 = vmatprep.subr.mxu0 0.0
        %4613 = vmatpush1.msra.mxu0 0.0
        %4614 = vmatprep.subr.mxu0 0.0
        %4615 = vmatpush1.msra.mxu0 0.0
        %4616 = vmatprep.subr.mxu0 0.0
        %4617 = vmatpush1.msra.mxu0 0.0
        %4618 = vmatprep.subr.mxu0 0.0
        %4619 = vmatpush1.msra.mxu0 0.0
        %4620 = vmatprep.subr.mxu0 0.0
        %4621 = vmatpush1.msra.mxu0 0.0
        %4622 = vmatprep.subr.mxu0 0.0
        %4623 = vmatpush1.msra.mxu0 0.0
        %4624 = vmatprep.subr.mxu0 0.0
        %4625 = vmatpush1.msra.mxu0 0.0
        %4626 = vmatprep.subr.mxu0 0.0
        %4627 = vmatpush1.msra.mxu0 0.0
        %4628 = vmatprep.subr.mxu0 0.0
        %4629 = vmatpush1.msra.mxu0 0.0
        %4630 = vmatprep.subr.mxu0 0.0
        %4631 = vmatpush1.msra.mxu0 0.0
        %4632 = vmatprep.subr.mxu0 0.0
        %4633 = vmatpush1.msra.mxu0 0.0
        %4634 = vmatprep.subr.mxu0 0.0
        %4635 = vmatpush1.msra.mxu0 0.0
        %4636 = vmatprep.subr.mxu0 0.0
        %4637 = vmatpush1.msra.mxu0 0.0
        %4638 = vmatprep.subr.mxu0 0.0
        %4639 = vmatpush1.msra.mxu0 0.0
        %4640 = vmatprep.subr.mxu0 0.0
        %4641 = vmatpush1.msra.mxu0 0.0
        %4642 = vmatprep.subr.mxu0 0.0
        %4643 = vmatpush1.msra.mxu0 0.0
        %4644 = vmatprep.subr.mxu0 0.0
        %4645 = vmatpush1.msra.mxu0 0.0
        %4646 = vmatprep.subr.mxu0 0.0
        %4647 = vmatpush1.msra.mxu0 0.0
        %4648 = vmatprep.subr.mxu0 0.0
        %4649 = vmatpush1.msra.mxu0 0.0
        %4650 = vmatprep.subr.mxu0 0.0
        %4651 = vmatpush1.msra.mxu0 0.0
        %4652 = vmatprep.subr.mxu0 0.0
        %4653 = vmatpush1.msra.mxu0 0.0
        %4654 = vmatprep.subr.mxu0 0.0
        %4655 = vmatpush1.msra.mxu0 0.0
        %4656 = vmatprep.subr.mxu0 0.0
        %4657 = vmatpush1.msra.mxu0 0.0
        %4658 = vmatprep.subr.mxu0 0.0
        %4659 = vmatpush1.msra.mxu0 0.0
        %4660 = vmatprep.subr.mxu0 0.0
        %4661 = vmatpush1.msra.mxu0 0.0
        %4662 = vmatprep.subr.mxu0 0.0
        %4663 = vmatpush1.msra.mxu0 0.0
        %4664 = vmatprep.mubr.f32.mxu0 0.0
        %4665 = vmatmul.mubr.f32.gmra.mrb[0].mxu0 %v4577
        %v4666 = vpop.f32.mrb[0].mxu0
        %v4667 = vadd.f32 %v4559, %v4666
        %v4668 = vpop.f32.mrb[0].mxu0
        %4669 = vmatprep.mubr.f32.mxu0 0.0
        %4670 = vmatmul.mubr.f32.gmra.mrb[0].mxu0 %v4580
        %v4671 = vpop.f32.mrb[0].mxu0
        %v4672 = vadd.f32 %v4559, %v4671
        %v4673 = vpop.f32.mrb[0].mxu0
        %4674 = vmatprep.mubr.f32.mxu0 0.0
        %4675 = vmatmul.mubr.f32.gmra.mrb[0].mxu0 %v4583
        %v4676 = vpop.f32.mrb[0].mxu0
        %v4677 = vadd.f32 %v4559, %v4676
        %v4678 = vpop.f32.mrb[0].mxu0
        %4679 = vmatprep.mubr.f32.mxu0 0.0
        %4680 = vmatmul.mubr.f32.gmra.mrb[0].mxu0 %v4586
        %v4681 = vpop.f32.mrb[0].mxu0
        %v4682 = vadd.f32 %v4559, %v4681
        %v4683 = vpop.f32.mrb[0].mxu0
        %4684 = vmatprep.mubr.f32.mxu0 0.0
        %4685 = vmatmul.mubr.f32.gmra.mrb[0].mxu0 %v4589
        %v4686 = vpop.f32.mrb[0].mxu0
        %v4687 = vadd.f32 %v4559, %v4686
        %v4688 = vpop.f32.mrb[0].mxu0
        %4689 = vmatprep.mubr.f32.mxu0 0.0
        %4690 = vmatmul.mubr.f32.gmra.mrb[0].mxu0 %v4592
        %v4691 = vpop.f32.mrb[0].mxu0
        %v4692 = vadd.f32 %v4559, %v4691
        %v4693 = vpop.f32.mrb[0].mxu0
        %4694 = vmatprep.mubr.f32.mxu0 0.0
        %4695 = vmatmul.mubr.f32.gmra.mrb[0].mxu0 %v4595
        %v4696 = vpop.f32.mrb[0].mxu0
        %v4697 = vadd.f32 %v4559, %v4696
        %v4698 = vpop.f32.mrb[0].mxu0
        %4699 = vmatprep.mubr.f32.mxu0 0.0
        %4700 = vmatmul.mubr.f32.gmra.mrb[0].mxu0 %v4598
        %v4701 = vpop.f32.mrb[0].mxu0
        %v4702 = vadd.f32 %v4559, %v4701
        %v4703 = vpop.f32.mrb[0].mxu0
        %4704 = vdwg.mxu0
        %4705 = vrot.lane.b32.xlu0 %v4193, 64
        %v4706 = vpop.permute.xlu0 %4705
        %4707 = vrot.lane.b32.xlu0 %v4194, 64
        %v4708 = vpop.permute.xlu0 %4707
        %4709 = vrot.lane.b32.xlu0 %v4195, 64
        %v4710 = vpop.permute.xlu0 %4709
        %4711 = vrot.lane.b32.xlu0 %v4196, 64
        %v4712 = vpop.permute.xlu0 %4711
        %4717 = vmatprep.subr.mxu0 0.0
        %4718 = vmatpush1.msra.mxu0 %v4706
        %4719 = vmatprep.subr.mxu0 0.0
        %4720 = vmatpush1.msra.mxu0 %v4708
        %4721 = vmatprep.subr.mxu0 0.0
        %4722 = vmatpush1.msra.mxu0 %v4710
        %4723 = vmatprep.subr.mxu0 0.0
        %4724 = vmatpush1.msra.mxu0 %v4712
        %4725 = vmatprep.subr.mxu0 0.0
        %4726 = vmatpush1.msra.mxu0 0.0
        %4727 = vmatprep.subr.mxu0 0.0
        %4728 = vmatpush1.msra.mxu0 0.0
        %4729 = vmatprep.subr.mxu0 0.0
        %4730 = vmatpush1.msra.mxu0 0.0
        %4731 = vmatprep.subr.mxu0 0.0
        %4732 = vmatpush1.msra.mxu0 0.0
        %4733 = vmatprep.subr.mxu0 0.0
        %4734 = vmatpush1.msra.mxu0 0.0
        %4735 = vmatprep.subr.mxu0 0.0
        %4736 = vmatpush1.msra.mxu0 0.0
        %4737 = vmatprep.subr.mxu0 0.0
        %4738 = vmatpush1.msra.mxu0 0.0
        %4739 = vmatprep.subr.mxu0 0.0
        %4740 = vmatpush1.msra.mxu0 0.0
        %4741 = vmatprep.subr.mxu0 0.0
        %4742 = vmatpush1.msra.mxu0 0.0
        %4743 = vmatprep.subr.mxu0 0.0
        %4744 = vmatpush1.msra.mxu0 0.0
        %4745 = vmatprep.subr.mxu0 0.0
        %4746 = vmatpush1.msra.mxu0 0.0
        %4747 = vmatprep.subr.mxu0 0.0
        %4748 = vmatpush1.msra.mxu0 0.0
        %4749 = vmatprep.subr.mxu0 0.0
        %4750 = vmatpush1.msra.mxu0 0.0
        %4751 = vmatprep.subr.mxu0 0.0
        %4752 = vmatpush1.msra.mxu0 0.0
        %4753 = vmatprep.subr.mxu0 0.0
        %4754 = vmatpush1.msra.mxu0 0.0
        %4755 = vmatprep.subr.mxu0 0.0
        %4756 = vmatpush1.msra.mxu0 0.0
        %4757 = vmatprep.subr.mxu0 0.0
        %4758 = vmatpush1.msra.mxu0 0.0
        %4759 = vmatprep.subr.mxu0 0.0
        %4760 = vmatpush1.msra.mxu0 0.0
        %4761 = vmatprep.subr.mxu0 0.0
        %4762 = vmatpush1.msra.mxu0 0.0
        %4763 = vmatprep.subr.mxu0 0.0
        %4764 = vmatpush1.msra.mxu0 0.0
        %4765 = vmatprep.subr.mxu0 0.0
        %4766 = vmatpush1.msra.mxu0 0.0
        %4767 = vmatprep.subr.mxu0 0.0
        %4768 = vmatpush1.msra.mxu0 0.0
        %4769 = vmatprep.subr.mxu0 0.0
        %4770 = vmatpush1.msra.mxu0 0.0
        %4771 = vmatprep.subr.mxu0 0.0
        %4772 = vmatpush1.msra.mxu0 0.0
        %4773 = vmatprep.subr.mxu0 0.0
        %4774 = vmatpush1.msra.mxu0 0.0
        %4775 = vmatprep.subr.mxu0 0.0
        %4776 = vmatpush1.msra.mxu0 0.0
        %4777 = vmatprep.subr.mxu0 0.0
        %4778 = vmatpush1.msra.mxu0 0.0
        %4779 = vmatprep.subr.mxu0 0.0
        %4780 = vmatpush1.msra.mxu0 0.0
        %4781 = vmatprep.mubr.f32.mxu0 0.0
        %4782 = vmatmul.mubr.f32.gmra.mrb[0].mxu0 %v1974
        %v4783 = vpop.f32.mrb[0].mxu0
        %v4784 = vadd.f32 0.0, %v4783
        %v4785 = vpop.f32.mrb[0].mxu0
        %4786 = vmatprep.mubr.f32.mxu0 0.0
        %4787 = vmatmul.mubr.f32.gmra.mrb[0].mxu0 %v1977
        %v4788 = vpop.f32.mrb[0].mxu0
        %v4789 = vadd.f32 0.0, %v4788
        %v4790 = vpop.f32.mrb[0].mxu0
        %4791 = vmatprep.mubr.f32.mxu0 0.0
        %4792 = vmatmul.mubr.f32.gmra.mrb[0].mxu0 %v1980
        %v4793 = vpop.f32.mrb[0].mxu0
        %v4794 = vadd.f32 0.0, %v4793
        %v4795 = vpop.f32.mrb[0].mxu0
        %4796 = vmatprep.mubr.f32.mxu0 0.0
        %4797 = vmatmul.mubr.f32.gmra.mrb[0].mxu0 %v1983
        %v4798 = vpop.f32.mrb[0].mxu0
        %v4799 = vadd.f32 0.0, %v4798
        %v4800 = vpop.f32.mrb[0].mxu0
        %4801 = vmatprep.mubr.f32.mxu0 0.0
        %4802 = vmatmul.mubr.f32.gmra.mrb[0].mxu0 %v1986
        %v4803 = vpop.f32.mrb[0].mxu0
        %v4804 = vadd.f32 0.0, %v4803
        %v4805 = vpop.f32.mrb[0].mxu0
        %4806 = vmatprep.mubr.f32.mxu0 0.0
        %4807 = vmatmul.mubr.f32.gmra.mrb[0].mxu0 %v1989
        %v4808 = vpop.f32.mrb[0].mxu0
        %v4809 = vadd.f32 0.0, %v4808
        %v4810 = vpop.f32.mrb[0].mxu0
        %4811 = vmatprep.mubr.f32.mxu0 0.0
        %4812 = vmatmul.mubr.f32.gmra.mrb[0].mxu0 %v1992
        %v4813 = vpop.f32.mrb[0].mxu0
        %v4814 = vadd.f32 0.0, %v4813
        %v4815 = vpop.f32.mrb[0].mxu0
        %4816 = vmatprep.mubr.f32.mxu0 0.0
        %4817 = vmatmul.mubr.f32.gmra.mrb[0].mxu0 %v1995
        %v4818 = vpop.f32.mrb[0].mxu0
        %v4819 = vadd.f32 0.0, %v4818
        %v4820 = vpop.f32.mrb[0].mxu0
        %4821 = vmatprep.mubr.f32.mxu0 0.0
        %4822 = vmatmul.mubr.f32.gmra.mrb[0].mxu0 %v1998
        %v4823 = vpop.f32.mrb[0].mxu0
        %v4824 = vadd.f32 0.0, %v4823
        %v4825 = vpop.f32.mrb[0].mxu0
        %4826 = vmatprep.mubr.f32.mxu0 0.0
        %4827 = vmatmul.mubr.f32.gmra.mrb[0].mxu0 %v2001
        %v4828 = vpop.f32.mrb[0].mxu0
        %v4829 = vadd.f32 0.0, %v4828
        %v4830 = vpop.f32.mrb[0].mxu0
        %4831 = vmatprep.mubr.f32.mxu0 0.0
        %4832 = vmatmul.mubr.f32.gmra.mrb[0].mxu0 %v2004
        %v4833 = vpop.f32.mrb[0].mxu0
        %v4834 = vadd.f32 0.0, %v4833
        %v4835 = vpop.f32.mrb[0].mxu0
        %4836 = vmatprep.mubr.f32.mxu0 0.0
        %4837 = vmatmul.mubr.f32.gmra.mrb[0].mxu0 %v2007
        %v4838 = vpop.f32.mrb[0].mxu0
        %v4839 = vadd.f32 0.0, %v4838
        %v4840 = vpop.f32.mrb[0].mxu0
        %4841 = vmatprep.mubr.f32.mxu0 0.0
        %4842 = vmatmul.mubr.f32.gmra.mrb[0].mxu0 %v2010
        %v4843 = vpop.f32.mrb[0].mxu0
        %v4844 = vadd.f32 0.0, %v4843
        %v4845 = vpop.f32.mrb[0].mxu0
        %4846 = vmatprep.mubr.f32.mxu0 0.0
        %4847 = vmatmul.mubr.f32.gmra.mrb[0].mxu0 %v2013
        %v4848 = vpop.f32.mrb[0].mxu0
        %v4849 = vadd.f32 0.0, %v4848
        %v4850 = vpop.f32.mrb[0].mxu0
        %4851 = vmatprep.mubr.f32.mxu0 0.0
        %4852 = vmatmul.mubr.f32.gmra.mrb[0].mxu0 %v2016
        %v4853 = vpop.f32.mrb[0].mxu0
        %v4854 = vadd.f32 0.0, %v4853
        %v4855 = vpop.f32.mrb[0].mxu0
        %4856 = vmatprep.mubr.f32.mxu0 0.0
        %4857 = vmatmul.mubr.f32.gmra.mrb[0].mxu0 %v2019
        %v4858 = vpop.f32.mrb[0].mxu0
        %v4859 = vadd.f32 0.0, %v4858
        %v4860 = vpop.f32.mrb[0].mxu0
        %4861 = vmatprep.mubr.f32.mxu0 0.0
        %4862 = vmatmul.mubr.f32.gmra.mrb[0].mxu0 %v2022
        %v4863 = vpop.f32.mrb[0].mxu0
        %v4864 = vadd.f32 0.0, %v4863
        %v4865 = vpop.f32.mrb[0].mxu0
        %4866 = vmatprep.mubr.f32.mxu0 0.0
        %4867 = vmatmul.mubr.f32.gmra.mrb[0].mxu0 %v2025
        %v4868 = vpop.f32.mrb[0].mxu0
        %v4869 = vadd.f32 0.0, %v4868
        %v4870 = vpop.f32.mrb[0].mxu0
        %4871 = vmatprep.mubr.f32.mxu0 0.0
        %4872 = vmatmul.mubr.f32.gmra.mrb[0].mxu0 %v2028
        %v4873 = vpop.f32.mrb[0].mxu0
        %v4874 = vadd.f32 0.0, %v4873
        %v4875 = vpop.f32.mrb[0].mxu0
        %4876 = vmatprep.mubr.f32.mxu0 0.0
        %4877 = vmatmul.mubr.f32.gmra.mrb[0].mxu0 %v2031
        %v4878 = vpop.f32.mrb[0].mxu0
        %v4879 = vadd.f32 0.0, %v4878
        %v4880 = vpop.f32.mrb[0].mxu0
        %4881 = vmatprep.mubr.f32.mxu0 0.0
        %4882 = vmatmul.mubr.f32.gmra.mrb[0].mxu0 %v2034
        %v4883 = vpop.f32.mrb[0].mxu0
        %v4884 = vadd.f32 0.0, %v4883
        %v4885 = vpop.f32.mrb[0].mxu0
        %4886 = vmatprep.mubr.f32.mxu0 0.0
        %4887 = vmatmul.mubr.f32.gmra.mrb[0].mxu0 %v2037
        %v4888 = vpop.f32.mrb[0].mxu0
        %v4889 = vadd.f32 0.0, %v4888
        %v4890 = vpop.f32.mrb[0].mxu0
        %4891 = vmatprep.mubr.f32.mxu0 0.0
        %4892 = vmatmul.mubr.f32.gmra.mrb[0].mxu0 %v2040
        %v4893 = vpop.f32.mrb[0].mxu0
        %v4894 = vadd.f32 0.0, %v4893
        %v4895 = vpop.f32.mrb[0].mxu0
        %4896 = vmatprep.mubr.f32.mxu0 0.0
        %4897 = vmatmul.mubr.f32.gmra.mrb[0].mxu0 %v2043
        %v4898 = vpop.f32.mrb[0].mxu0
        %v4899 = vadd.f32 0.0, %v4898
        %v4900 = vpop.f32.mrb[0].mxu0
        %4901 = vmatprep.mubr.f32.mxu0 0.0
        %4902 = vmatmul.mubr.f32.gmra.mrb[0].mxu0 %v2046
        %v4903 = vpop.f32.mrb[0].mxu0
        %v4904 = vadd.f32 0.0, %v4903
        %v4905 = vpop.f32.mrb[0].mxu0
        %4906 = vmatprep.mubr.f32.mxu0 0.0
        %4907 = vmatmul.mubr.f32.gmra.mrb[0].mxu0 %v2049
        %v4908 = vpop.f32.mrb[0].mxu0
        %v4909 = vadd.f32 0.0, %v4908
        %v4910 = vpop.f32.mrb[0].mxu0
        %4911 = vmatprep.mubr.f32.mxu0 0.0
        %4912 = vmatmul.mubr.f32.gmra.mrb[0].mxu0 %v2052
        %v4913 = vpop.f32.mrb[0].mxu0
        %v4914 = vadd.f32 0.0, %v4913
        %v4915 = vpop.f32.mrb[0].mxu0
        %4916 = vmatprep.mubr.f32.mxu0 0.0
        %4917 = vmatmul.mubr.f32.gmra.mrb[0].mxu0 %v2055
        %v4918 = vpop.f32.mrb[0].mxu0
        %v4919 = vadd.f32 0.0, %v4918
        %v4920 = vpop.f32.mrb[0].mxu0
        %4921 = vmatprep.mubr.f32.mxu0 0.0
        %4922 = vmatmul.mubr.f32.gmra.mrb[0].mxu0 %v2058
        %v4923 = vpop.f32.mrb[0].mxu0
        %v4924 = vadd.f32 0.0, %v4923
        %v4925 = vpop.f32.mrb[0].mxu0
        %4926 = vmatprep.mubr.f32.mxu0 0.0
        %4927 = vmatmul.mubr.f32.gmra.mrb[0].mxu0 %v2061
        %v4928 = vpop.f32.mrb[0].mxu0
        %v4929 = vadd.f32 0.0, %v4928
        %v4930 = vpop.f32.mrb[0].mxu0
        %4931 = vmatprep.mubr.f32.mxu0 0.0
        %4932 = vmatmul.mubr.f32.gmra.mrb[0].mxu0 %v2064
        %v4933 = vpop.f32.mrb[0].mxu0
        %v4934 = vadd.f32 0.0, %v4933
        %v4935 = vpop.f32.mrb[0].mxu0
        %4936 = vmatprep.mubr.f32.mxu0 0.0
        %4937 = vmatmul.mubr.f32.gmra.mrb[0].mxu0 %v2067
        %v4938 = vpop.f32.mrb[0].mxu0
        %v4939 = vadd.f32 0.0, %v4938
        %v4940 = vpop.f32.mrb[0].mxu0
        %4941 = vmatprep.mubr.f32.mxu0 0.0
        %4942 = vmatmul.mubr.f32.gmra.mrb[0].mxu0 %v2070
        %v4943 = vpop.f32.mrb[0].mxu0
        %v4944 = vadd.f32 0.0, %v4943
        %v4945 = vpop.f32.mrb[0].mxu0
        %4946 = vmatprep.mubr.f32.mxu0 0.0
        %4947 = vmatmul.mubr.f32.gmra.mrb[0].mxu0 %v2073
        %v4948 = vpop.f32.mrb[0].mxu0
        %v4949 = vadd.f32 0.0, %v4948
        %v4950 = vpop.f32.mrb[0].mxu0
        %4951 = vmatprep.mubr.f32.mxu0 0.0
        %4952 = vmatmul.mubr.f32.gmra.mrb[0].mxu0 %v2076
        %v4953 = vpop.f32.mrb[0].mxu0
        %v4954 = vadd.f32 0.0, %v4953
        %v4955 = vpop.f32.mrb[0].mxu0
        %4956 = vmatprep.mubr.f32.mxu0 0.0
        %4957 = vmatmul.mubr.f32.gmra.mrb[0].mxu0 %v2079
        %v4958 = vpop.f32.mrb[0].mxu0
        %v4959 = vadd.f32 0.0, %v4958
        %v4960 = vpop.f32.mrb[0].mxu0
        %4961 = vmatprep.mubr.f32.mxu0 0.0
        %4962 = vmatmul.mubr.f32.gmra.mrb[0].mxu0 %v2082
        %v4963 = vpop.f32.mrb[0].mxu0
        %v4964 = vadd.f32 0.0, %v4963
        %v4965 = vpop.f32.mrb[0].mxu0
        %4966 = vmatprep.mubr.f32.mxu0 0.0
        %4967 = vmatmul.mubr.f32.gmra.mrb[0].mxu0 %v2085
        %v4968 = vpop.f32.mrb[0].mxu0
        %v4969 = vadd.f32 0.0, %v4968
        %v4970 = vpop.f32.mrb[0].mxu0
        %4971 = vmatprep.mubr.f32.mxu0 0.0
        %4972 = vmatmul.mubr.f32.gmra.mrb[0].mxu0 %v2088
        %v4973 = vpop.f32.mrb[0].mxu0
        %v4974 = vadd.f32 0.0, %v4973
        %v4975 = vpop.f32.mrb[0].mxu0
        %4976 = vmatprep.mubr.f32.mxu0 0.0
        %4977 = vmatmul.mubr.f32.gmra.mrb[0].mxu0 %v2091
        %v4978 = vpop.f32.mrb[0].mxu0
        %v4979 = vadd.f32 0.0, %v4978
        %v4980 = vpop.f32.mrb[0].mxu0
        %4981 = vmatprep.mubr.f32.mxu0 0.0
        %4982 = vmatmul.mubr.f32.gmra.mrb[0].mxu0 %v2094
        %v4983 = vpop.f32.mrb[0].mxu0
        %v4984 = vadd.f32 0.0, %v4983
        %v4985 = vpop.f32.mrb[0].mxu0
        %4986 = vmatprep.mubr.f32.mxu0 0.0
        %4987 = vmatmul.mubr.f32.gmra.mrb[0].mxu0 %v2097
        %v4988 = vpop.f32.mrb[0].mxu0
        %v4989 = vadd.f32 0.0, %v4988
        %v4990 = vpop.f32.mrb[0].mxu0
        %4991 = vmatprep.mubr.f32.mxu0 0.0
        %4992 = vmatmul.mubr.f32.gmra.mrb[0].mxu0 %v2100
        %v4993 = vpop.f32.mrb[0].mxu0
        %v4994 = vadd.f32 0.0, %v4993
        %v4995 = vpop.f32.mrb[0].mxu0
        %4996 = vmatprep.mubr.f32.mxu0 0.0
        %4997 = vmatmul.mubr.f32.gmra.mrb[0].mxu0 %v2103
        %v4998 = vpop.f32.mrb[0].mxu0
        %v4999 = vadd.f32 0.0, %v4998
        %v5000 = vpop.f32.mrb[0].mxu0
        %5001 = vmatprep.mubr.f32.mxu0 0.0
        %5002 = vmatmul.mubr.f32.gmra.mrb[0].mxu0 %v2106
        %v5003 = vpop.f32.mrb[0].mxu0
        %v5004 = vadd.f32 0.0, %v5003
        %v5005 = vpop.f32.mrb[0].mxu0
        %5006 = vmatprep.mubr.f32.mxu0 0.0
        %5007 = vmatmul.mubr.f32.gmra.mrb[0].mxu0 %v2109
        %v5008 = vpop.f32.mrb[0].mxu0
        %v5009 = vadd.f32 0.0, %v5008
        %v5010 = vpop.f32.mrb[0].mxu0
        %5011 = vmatprep.mubr.f32.mxu0 0.0
        %5012 = vmatmul.mubr.f32.gmra.mrb[0].mxu0 %v2112
        %v5013 = vpop.f32.mrb[0].mxu0
        %v5014 = vadd.f32 0.0, %v5013
        %v5015 = vpop.f32.mrb[0].mxu0
        %5016 = vmatprep.mubr.f32.mxu0 0.0
        %5017 = vmatmul.mubr.f32.gmra.mrb[0].mxu0 %v2115
        %v5018 = vpop.f32.mrb[0].mxu0
        %v5019 = vadd.f32 0.0, %v5018
        %v5020 = vpop.f32.mrb[0].mxu0
        %5021 = vmatprep.mubr.f32.mxu0 0.0
        %5022 = vmatmul.mubr.f32.gmra.mrb[0].mxu0 %v2118
        %v5023 = vpop.f32.mrb[0].mxu0
        %v5024 = vadd.f32 0.0, %v5023
        %v5025 = vpop.f32.mrb[0].mxu0
        %5026 = vmatprep.mubr.f32.mxu0 0.0
        %5027 = vmatmul.mubr.f32.gmra.mrb[0].mxu0 %v2121
        %v5028 = vpop.f32.mrb[0].mxu0
        %v5029 = vadd.f32 0.0, %v5028
        %v5030 = vpop.f32.mrb[0].mxu0
        %5031 = vmatprep.mubr.f32.mxu0 0.0
        %5032 = vmatmul.mubr.f32.gmra.mrb[0].mxu0 %v2124
        %v5033 = vpop.f32.mrb[0].mxu0
        %v5034 = vadd.f32 0.0, %v5033
        %v5035 = vpop.f32.mrb[0].mxu0
        %5036 = vmatprep.mubr.f32.mxu0 0.0
        %5037 = vmatmul.mubr.f32.gmra.mrb[0].mxu0 %v2127
        %v5038 = vpop.f32.mrb[0].mxu0
        %v5039 = vadd.f32 0.0, %v5038
        %v5040 = vpop.f32.mrb[0].mxu0
        %5041 = vmatprep.mubr.f32.mxu0 0.0
        %5042 = vmatmul.mubr.f32.gmra.mrb[0].mxu0 %v2130
        %v5043 = vpop.f32.mrb[0].mxu0
        %v5044 = vadd.f32 0.0, %v5043
        %v5045 = vpop.f32.mrb[0].mxu0
        %5046 = vmatprep.mubr.f32.mxu0 0.0
        %5047 = vmatmul.mubr.f32.gmra.mrb[0].mxu0 %v2133
        %v5048 = vpop.f32.mrb[0].mxu0
        %v5049 = vadd.f32 0.0, %v5048
        %v5050 = vpop.f32.mrb[0].mxu0
        %5051 = vmatprep.mubr.f32.mxu0 0.0
        %5052 = vmatmul.mubr.f32.gmra.mrb[0].mxu0 %v2136
        %v5053 = vpop.f32.mrb[0].mxu0
        %v5054 = vadd.f32 0.0, %v5053
        %v5055 = vpop.f32.mrb[0].mxu0
        %5056 = vmatprep.mubr.f32.mxu0 0.0
        %5057 = vmatmul.mubr.f32.gmra.mrb[0].mxu0 %v2139
        %v5058 = vpop.f32.mrb[0].mxu0
        %v5059 = vadd.f32 0.0, %v5058
        %v5060 = vpop.f32.mrb[0].mxu0
        %5061 = vmatprep.mubr.f32.mxu0 0.0
        %5062 = vmatmul.mubr.f32.gmra.mrb[0].mxu0 %v2142
        %v5063 = vpop.f32.mrb[0].mxu0
        %v5064 = vadd.f32 0.0, %v5063
        %v5065 = vpop.f32.mrb[0].mxu0
        %5066 = vmatprep.mubr.f32.mxu0 0.0
        %5067 = vmatmul.mubr.f32.gmra.mrb[0].mxu0 %v2145
        %v5068 = vpop.f32.mrb[0].mxu0
        %v5069 = vadd.f32 0.0, %v5068
        %v5070 = vpop.f32.mrb[0].mxu0
        %5071 = vmatprep.mubr.f32.mxu0 0.0
        %5072 = vmatmul.mubr.f32.gmra.mrb[0].mxu0 %v2148
        %v5073 = vpop.f32.mrb[0].mxu0
        %v5074 = vadd.f32 0.0, %v5073
        %v5075 = vpop.f32.mrb[0].mxu0
        %5076 = vmatprep.mubr.f32.mxu0 0.0
        %5077 = vmatmul.mubr.f32.gmra.mrb[0].mxu0 %v2151
        %v5078 = vpop.f32.mrb[0].mxu0
        %v5079 = vadd.f32 0.0, %v5078
        %v5080 = vpop.f32.mrb[0].mxu0
        %5081 = vmatprep.mubr.f32.mxu0 0.0
        %5082 = vmatmul.mubr.f32.gmra.mrb[0].mxu0 %v2154
        %v5083 = vpop.f32.mrb[0].mxu0
        %v5084 = vadd.f32 0.0, %v5083
        %v5085 = vpop.f32.mrb[0].mxu0
        %5086 = vmatprep.mubr.f32.mxu0 0.0
        %5087 = vmatmul.mubr.f32.gmra.mrb[0].mxu0 %v2157
        %v5088 = vpop.f32.mrb[0].mxu0
        %v5089 = vadd.f32 0.0, %v5088
        %v5090 = vpop.f32.mrb[0].mxu0
        %5091 = vmatprep.mubr.f32.mxu0 0.0
        %5092 = vmatmul.mubr.f32.gmra.mrb[0].mxu0 %v2160
        %v5093 = vpop.f32.mrb[0].mxu0
        %v5094 = vadd.f32 0.0, %v5093
        %v5095 = vpop.f32.mrb[0].mxu0
        %5096 = vmatprep.mubr.f32.mxu0 0.0
        %5097 = vmatmul.mubr.f32.gmra.mrb[0].mxu0 %v2163
        %v5098 = vpop.f32.mrb[0].mxu0
        %v5099 = vadd.f32 0.0, %v5098
        %v5100 = vpop.f32.mrb[0].mxu0
        %5101 = vdwg.mxu0
        %v5102 = vlaneseq
        %v5103 = vshrl.u32 %v5102, 7
        %v5104 = vsub.s32 2, %v5103
        %v5105 = vrot.slane %v4198, %v5104
        %v5106 = vadd.f32 %v4784, %v5105
        %v5107 = vadd.f32 %v4789, %v5105
        %v5108 = vadd.f32 %v4794, %v5105
        %v5109 = vadd.f32 %v4799, %v5105
        %v5110 = vadd.f32 %v4804, %v5105
        %v5111 = vadd.f32 %v4809, %v5105
        %v5112 = vadd.f32 %v4814, %v5105
        %v5113 = vadd.f32 %v4819, %v5105
        %v5114 = vadd.f32 %v4824, %v5105
        %v5115 = vadd.f32 %v4829, %v5105
        %v5116 = vadd.f32 %v4834, %v5105
        %v5117 = vadd.f32 %v4839, %v5105
        %v5118 = vadd.f32 %v4844, %v5105
        %v5119 = vadd.f32 %v4849, %v5105
        %v5120 = vadd.f32 %v4854, %v5105
        %v5121 = vadd.f32 %v4859, %v5105
        %v5122 = vadd.f32 %v4864, %v5105
        %v5123 = vadd.f32 %v4869, %v5105
        %v5124 = vadd.f32 %v4874, %v5105
        %v5125 = vadd.f32 %v4879, %v5105
        %v5126 = vadd.f32 %v4884, %v5105
        %v5127 = vadd.f32 %v4889, %v5105
        %v5128 = vadd.f32 %v4894, %v5105
        %v5129 = vadd.f32 %v4899, %v5105
        %v5130 = vadd.f32 %v4904, %v5105
        %v5131 = vadd.f32 %v4909, %v5105
        %v5132 = vadd.f32 %v4914, %v5105
        %v5133 = vadd.f32 %v4919, %v5105
        %v5134 = vadd.f32 %v4924, %v5105
        %v5135 = vadd.f32 %v4929, %v5105
        %v5136 = vadd.f32 %v4934, %v5105
        %v5137 = vadd.f32 %v4939, %v5105
        %v5138 = vadd.f32 %v4944, %v5105
        %v5139 = vadd.f32 %v4949, %v5105
        %v5140 = vadd.f32 %v4954, %v5105
        %v5141 = vadd.f32 %v4959, %v5105
        %v5142 = vadd.f32 %v4964, %v5105
        %v5143 = vadd.f32 %v4969, %v5105
        %v5144 = vadd.f32 %v4974, %v5105
        %v5145 = vadd.f32 %v4979, %v5105
        %v5146 = vadd.f32 %v4984, %v5105
        %v5147 = vadd.f32 %v4989, %v5105
        %v5148 = vadd.f32 %v4994, %v5105
        %v5149 = vadd.f32 %v4999, %v5105
        %v5150 = vadd.f32 %v5004, %v5105
        %v5151 = vadd.f32 %v5009, %v5105
        %v5152 = vadd.f32 %v5014, %v5105
        %v5153 = vadd.f32 %v5019, %v5105
        %v5154 = vadd.f32 %v5024, %v5105
        %v5155 = vadd.f32 %v5029, %v5105
        %v5156 = vadd.f32 %v5034, %v5105
        %v5157 = vadd.f32 %v5039, %v5105
        %v5158 = vadd.f32 %v5044, %v5105
        %v5159 = vadd.f32 %v5049, %v5105
        %v5160 = vadd.f32 %v5054, %v5105
        %v5161 = vadd.f32 %v5059, %v5105
        %v5162 = vadd.f32 %v5064, %v5105
        %v5163 = vadd.f32 %v5069, %v5105
        %v5164 = vadd.f32 %v5074, %v5105
        %v5165 = vadd.f32 %v5079, %v5105
        %v5166 = vadd.f32 %v5084, %v5105
        %v5167 = vadd.f32 %v5089, %v5105
        %v5168 = vadd.f32 %v5094, %v5105
        %v5169 = vadd.f32 %v5099, %v5105
        %v5170 = vmul.f32 %v4667, %v5106
        %v5171 = vmul.f32 %v4672, %v5107
        %v5172 = vmul.f32 %v4677, %v5108
        %v5173 = vmul.f32 %v4682, %v5109
        %v5174 = vmul.f32 %v4687, %v5110
        %v5175 = vmul.f32 %v4692, %v5111
        %v5176 = vmul.f32 %v4697, %v5112
        %v5177 = vmul.f32 %v4702, %v5113
        %v5178 = vmul.f32 %v4667, %v5114
        %v5179 = vmul.f32 %v4672, %v5115
        %v5180 = vmul.f32 %v4677, %v5116
        %v5181 = vmul.f32 %v4682, %v5117
        %v5182 = vmul.f32 %v4687, %v5118
        %v5183 = vmul.f32 %v4692, %v5119
        %v5184 = vmul.f32 %v4697, %v5120
        %v5185 = vmul.f32 %v4702, %v5121
        %v5186 = vmul.f32 %v4667, %v5122
        %v5187 = vmul.f32 %v4672, %v5123
        %v5188 = vmul.f32 %v4677, %v5124
        %v5189 = vmul.f32 %v4682, %v5125
        %v5190 = vmul.f32 %v4687, %v5126
        %v5191 = vmul.f32 %v4692, %v5127
        %v5192 = vmul.f32 %v4697, %v5128
        %v5193 = vmul.f32 %v4702, %v5129
        %v5194 = vmul.f32 %v4667, %v5130
        %v5195 = vmul.f32 %v4672, %v5131
        %v5196 = vmul.f32 %v4677, %v5132
        %v5197 = vmul.f32 %v4682, %v5133
        %v5198 = vmul.f32 %v4687, %v5134
        %v5199 = vmul.f32 %v4692, %v5135
        %v5200 = vmul.f32 %v4697, %v5136
        %v5201 = vmul.f32 %v4702, %v5137
        %v5202 = vmul.f32 %v4667, %v5138
        %v5203 = vmul.f32 %v4672, %v5139
        %v5204 = vmul.f32 %v4677, %v5140
        %v5205 = vmul.f32 %v4682, %v5141
        %v5206 = vmul.f32 %v4687, %v5142
        %v5207 = vmul.f32 %v4692, %v5143
        %v5208 = vmul.f32 %v4697, %v5144
        %v5209 = vmul.f32 %v4702, %v5145
        %v5210 = vmul.f32 %v4667, %v5146
        %v5211 = vmul.f32 %v4672, %v5147
        %v5212 = vmul.f32 %v4677, %v5148
        %v5213 = vmul.f32 %v4682, %v5149
        %v5214 = vmul.f32 %v4687, %v5150
        %v5215 = vmul.f32 %v4692, %v5151
        %v5216 = vmul.f32 %v4697, %v5152
        %v5217 = vmul.f32 %v4702, %v5153
        %v5218 = vmul.f32 %v4667, %v5154
        %v5219 = vmul.f32 %v4672, %v5155
        %v5220 = vmul.f32 %v4677, %v5156
        %v5221 = vmul.f32 %v4682, %v5157
        %v5222 = vmul.f32 %v4687, %v5158
        %v5223 = vmul.f32 %v4692, %v5159
        %v5224 = vmul.f32 %v4697, %v5160
        %v5225 = vmul.f32 %v4702, %v5161
        %v5226 = vmul.f32 %v4667, %v5162
        %v5227 = vmul.f32 %v4672, %v5163
        %v5228 = vmul.f32 %v4677, %v5164
        %v5229 = vmul.f32 %v4682, %v5165
        %v5230 = vmul.f32 %v4687, %v5166
        %v5231 = vmul.f32 %v4692, %v5167
        %v5232 = vmul.f32 %v4697, %v5168
        %v5233 = vmul.f32 %v4702, %v5169
        %v5234 = vsel %vm612, %v5170, 0.0
        %5235 = vadd.xlane.f32.xlu0 %v5234
        %v5236 = vpop.xlane.xlu0 %5235
        %v5237 = vsel %vm612, %v5171, 0.0
        %5238 = vadd.xlane.f32.xlu0 %v5237
        %v5239 = vpop.xlane.xlu0 %5238
        %v5240 = vsel %vm612, %v5172, 0.0
        %5241 = vadd.xlane.f32.xlu0 %v5240
        %v5242 = vpop.xlane.xlu0 %5241
        %v5243 = vsel %vm612, %v5173, 0.0
        %5244 = vadd.xlane.f32.xlu0 %v5243
        %v5245 = vpop.xlane.xlu0 %5244
        %v5246 = vsel %vm612, %v5174, 0.0
        %5247 = vadd.xlane.f32.xlu0 %v5246
        %v5248 = vpop.xlane.xlu0 %5247
        %v5249 = vsel %vm612, %v5175, 0.0
        %5250 = vadd.xlane.f32.xlu0 %v5249
        %v5251 = vpop.xlane.xlu0 %5250
        %v5252 = vsel %vm612, %v5176, 0.0
        %5253 = vadd.xlane.f32.xlu0 %v5252
        %v5254 = vpop.xlane.xlu0 %5253
        %v5255 = vsel %vm612, %v5177, 0.0
        %5256 = vadd.xlane.f32.xlu0 %v5255
        %v5257 = vpop.xlane.xlu0 %5256
        %v5258 = vsel %vm612, %v5178, 0.0
        %5259 = vadd.xlane.f32.xlu0 %v5258
        %v5260 = vpop.xlane.xlu0 %5259
        %v5261 = vsel %vm612, %v5179, 0.0
        %5262 = vadd.xlane.f32.xlu0 %v5261
        %v5263 = vpop.xlane.xlu0 %5262
        %v5264 = vsel %vm612, %v5180, 0.0
        %5265 = vadd.xlane.f32.xlu0 %v5264
        %v5266 = vpop.xlane.xlu0 %5265
        %v5267 = vsel %vm612, %v5181, 0.0
        %5268 = vadd.xlane.f32.xlu0 %v5267
        %v5269 = vpop.xlane.xlu0 %5268
        %v5270 = vsel %vm612, %v5182, 0.0
        %5271 = vadd.xlane.f32.xlu0 %v5270
        %v5272 = vpop.xlane.xlu0 %5271
        %v5273 = vsel %vm612, %v5183, 0.0
        %5274 = vadd.xlane.f32.xlu0 %v5273
        %v5275 = vpop.xlane.xlu0 %5274
        %v5276 = vsel %vm612, %v5184, 0.0
        %5277 = vadd.xlane.f32.xlu0 %v5276
        %v5278 = vpop.xlane.xlu0 %5277
        %v5279 = vsel %vm612, %v5185, 0.0
        %5280 = vadd.xlane.f32.xlu0 %v5279
        %v5281 = vpop.xlane.xlu0 %5280
        %v5282 = vsel %vm612, %v5186, 0.0
        %5283 = vadd.xlane.f32.xlu0 %v5282
        %v5284 = vpop.xlane.xlu0 %5283
        %v5285 = vsel %vm612, %v5187, 0.0
        %5286 = vadd.xlane.f32.xlu0 %v5285
        %v5287 = vpop.xlane.xlu0 %5286
        %v5288 = vsel %vm612, %v5188, 0.0
        %5289 = vadd.xlane.f32.xlu0 %v5288
        %v5290 = vpop.xlane.xlu0 %5289
        %v5291 = vsel %vm612, %v5189, 0.0
        %5292 = vadd.xlane.f32.xlu0 %v5291
        %v5293 = vpop.xlane.xlu0 %5292
        %v5294 = vsel %vm612, %v5190, 0.0
        %5295 = vadd.xlane.f32.xlu0 %v5294
        %v5296 = vpop.xlane.xlu0 %5295
        %v5297 = vsel %vm612, %v5191, 0.0
        %5298 = vadd.xlane.f32.xlu0 %v5297
        %v5299 = vpop.xlane.xlu0 %5298
        %v5300 = vsel %vm612, %v5192, 0.0
        %5301 = vadd.xlane.f32.xlu0 %v5300
        %v5302 = vpop.xlane.xlu0 %5301
        %v5303 = vsel %vm612, %v5193, 0.0
        %5304 = vadd.xlane.f32.xlu0 %v5303
        %v5305 = vpop.xlane.xlu0 %5304
        %v5306 = vsel %vm612, %v5194, 0.0
        %5307 = vadd.xlane.f32.xlu0 %v5306
        %v5308 = vpop.xlane.xlu0 %5307
        %v5309 = vsel %vm612, %v5195, 0.0
        %5310 = vadd.xlane.f32.xlu0 %v5309
        %v5311 = vpop.xlane.xlu0 %5310
        %v5312 = vsel %vm612, %v5196, 0.0
        %5313 = vadd.xlane.f32.xlu0 %v5312
        %v5314 = vpop.xlane.xlu0 %5313
        %v5315 = vsel %vm612, %v5197, 0.0
        %5316 = vadd.xlane.f32.xlu0 %v5315
        %v5317 = vpop.xlane.xlu0 %5316
        %v5318 = vsel %vm612, %v5198, 0.0
        %5319 = vadd.xlane.f32.xlu0 %v5318
        %v5320 = vpop.xlane.xlu0 %5319
        %v5321 = vsel %vm612, %v5199, 0.0
        %5322 = vadd.xlane.f32.xlu0 %v5321
        %v5323 = vpop.xlane.xlu0 %5322
        %v5324 = vsel %vm612, %v5200, 0.0
        %5325 = vadd.xlane.f32.xlu0 %v5324
        %v5326 = vpop.xlane.xlu0 %5325
        %v5327 = vsel %vm612, %v5201, 0.0
        %5328 = vadd.xlane.f32.xlu0 %v5327
        %v5329 = vpop.xlane.xlu0 %5328
        %v5330 = vsel %vm612, %v5202, 0.0
        %5331 = vadd.xlane.f32.xlu0 %v5330
        %v5332 = vpop.xlane.xlu0 %5331
        %v5333 = vsel %vm612, %v5203, 0.0
        %5334 = vadd.xlane.f32.xlu0 %v5333
        %v5335 = vpop.xlane.xlu0 %5334
        %v5336 = vsel %vm612, %v5204, 0.0
        %5337 = vadd.xlane.f32.xlu0 %v5336
        %v5338 = vpop.xlane.xlu0 %5337
        %v5339 = vsel %vm612, %v5205, 0.0
        %5340 = vadd.xlane.f32.xlu0 %v5339
        %v5341 = vpop.xlane.xlu0 %5340
        %v5342 = vsel %vm612, %v5206, 0.0
        %5343 = vadd.xlane.f32.xlu0 %v5342
        %v5344 = vpop.xlane.xlu0 %5343
        %v5345 = vsel %vm612, %v5207, 0.0
        %5346 = vadd.xlane.f32.xlu0 %v5345
        %v5347 = vpop.xlane.xlu0 %5346
        %v5348 = vsel %vm612, %v5208, 0.0
        %5349 = vadd.xlane.f32.xlu0 %v5348
        %v5350 = vpop.xlane.xlu0 %5349
        %v5351 = vsel %vm612, %v5209, 0.0
        %5352 = vadd.xlane.f32.xlu0 %v5351
        %v5353 = vpop.xlane.xlu0 %5352
        %v5354 = vsel %vm612, %v5210, 0.0
        %5355 = vadd.xlane.f32.xlu0 %v5354
        %v5356 = vpop.xlane.xlu0 %5355
        %v5357 = vsel %vm612, %v5211, 0.0
        %5358 = vadd.xlane.f32.xlu0 %v5357
        %v5359 = vpop.xlane.xlu0 %5358
        %v5360 = vsel %vm612, %v5212, 0.0
        %5361 = vadd.xlane.f32.xlu0 %v5360
        %v5362 = vpop.xlane.xlu0 %5361
        %v5363 = vsel %vm612, %v5213, 0.0
        %5364 = vadd.xlane.f32.xlu0 %v5363
        %v5365 = vpop.xlane.xlu0 %5364
        %v5366 = vsel %vm612, %v5214, 0.0
        %5367 = vadd.xlane.f32.xlu0 %v5366
        %v5368 = vpop.xlane.xlu0 %5367
        %v5369 = vsel %vm612, %v5215, 0.0
        %5370 = vadd.xlane.f32.xlu0 %v5369
        %v5371 = vpop.xlane.xlu0 %5370
        %v5372 = vsel %vm612, %v5216, 0.0
        %5373 = vadd.xlane.f32.xlu0 %v5372
        %v5374 = vpop.xlane.xlu0 %5373
        %v5375 = vsel %vm612, %v5217, 0.0
        %5376 = vadd.xlane.f32.xlu0 %v5375
        %v5377 = vpop.xlane.xlu0 %5376
        %v5378 = vsel %vm612, %v5218, 0.0
        %5379 = vadd.xlane.f32.xlu0 %v5378
        %v5380 = vpop.xlane.xlu0 %5379
        %v5381 = vsel %vm612, %v5219, 0.0
        %5382 = vadd.xlane.f32.xlu0 %v5381
        %v5383 = vpop.xlane.xlu0 %5382
        %v5384 = vsel %vm612, %v5220, 0.0
        %5385 = vadd.xlane.f32.xlu0 %v5384
        %v5386 = vpop.xlane.xlu0 %5385
        %v5387 = vsel %vm612, %v5221, 0.0
        %5388 = vadd.xlane.f32.xlu0 %v5387
        %v5389 = vpop.xlane.xlu0 %5388
        %v5390 = vsel %vm612, %v5222, 0.0
        %5391 = vadd.xlane.f32.xlu0 %v5390
        %v5392 = vpop.xlane.xlu0 %5391
        %v5393 = vsel %vm612, %v5223, 0.0
        %5394 = vadd.xlane.f32.xlu0 %v5393
        %v5395 = vpop.xlane.xlu0 %5394
        %v5396 = vsel %vm612, %v5224, 0.0
        %5397 = vadd.xlane.f32.xlu0 %v5396
        %v5398 = vpop.xlane.xlu0 %5397
        %v5399 = vsel %vm612, %v5225, 0.0
        %5400 = vadd.xlane.f32.xlu0 %v5399
        %v5401 = vpop.xlane.xlu0 %5400
        %v5402 = vsel %vm612, %v5226, 0.0
        %5403 = vadd.xlane.f32.xlu0 %v5402
        %v5404 = vpop.xlane.xlu0 %5403
        %v5405 = vsel %vm612, %v5227, 0.0
        %5406 = vadd.xlane.f32.xlu0 %v5405
        %v5407 = vpop.xlane.xlu0 %5406
        %v5408 = vsel %vm612, %v5228, 0.0
        %5409 = vadd.xlane.f32.xlu0 %v5408
        %v5410 = vpop.xlane.xlu0 %5409
        %v5411 = vsel %vm612, %v5229, 0.0
        %5412 = vadd.xlane.f32.xlu0 %v5411
        %v5413 = vpop.xlane.xlu0 %5412
        %v5414 = vsel %vm612, %v5230, 0.0
        %5415 = vadd.xlane.f32.xlu0 %v5414
        %v5416 = vpop.xlane.xlu0 %5415
        %v5417 = vsel %vm612, %v5231, 0.0
        %5418 = vadd.xlane.f32.xlu0 %v5417
        %v5419 = vpop.xlane.xlu0 %5418
        %v5420 = vsel %vm612, %v5232, 0.0
        %5421 = vadd.xlane.f32.xlu0 %v5420
        %v5422 = vpop.xlane.xlu0 %5421
        %v5423 = vsel %vm612, %v5233, 0.0
        %5424 = vadd.xlane.f32.xlu0 %v5423
        %v5425 = vpop.xlane.xlu0 %5424
        %vm5426 = vcmask 7168
        %v5427 = vsel %vm5426, %v5236, %v5260
        %v5428 = vsel %vm5426, %v5239, %v5263
        %v5429 = vsel %vm5426, %v5242, %v5266
        %v5430 = vsel %vm5426, %v5245, %v5269
        %v5431 = vsel %vm5426, %v5248, %v5272
        %v5432 = vsel %vm5426, %v5251, %v5275
        %v5433 = vsel %vm5426, %v5254, %v5278
        %v5434 = vsel %vm5426, %v5257, %v5281
        %vm5435 = vcmask 15360
        %v5436 = vsel %vm5435, %v5427, %v5284
        %v5437 = vsel %vm5435, %v5428, %v5287
        %v5438 = vsel %vm5435, %v5429, %v5290
        %v5439 = vsel %vm5435, %v5430, %v5293
        %v5440 = vsel %vm5435, %v5431, %v5296
        %v5441 = vsel %vm5435, %v5432, %v5299
        %v5442 = vsel %vm5435, %v5433, %v5302
        %v5443 = vsel %vm5435, %v5434, %v5305
        %vm5444 = vcmask 23552
        %v5445 = vsel %vm5444, %v5436, %v5308
        %v5446 = vsel %vm5444, %v5437, %v5311
        %v5447 = vsel %vm5444, %v5438, %v5314
        %v5448 = vsel %vm5444, %v5439, %v5317
        %v5449 = vsel %vm5444, %v5440, %v5320
        %v5450 = vsel %vm5444, %v5441, %v5323
        %v5451 = vsel %vm5444, %v5442, %v5326
        %v5452 = vsel %vm5444, %v5443, %v5329
        %vm5453 = vcmask 31744
        %v5454 = vsel %vm5453, %v5445, %v5332
        %v5455 = vsel %vm5453, %v5446, %v5335
        %v5456 = vsel %vm5453, %v5447, %v5338
        %v5457 = vsel %vm5453, %v5448, %v5341
        %v5458 = vsel %vm5453, %v5449, %v5344
        %v5459 = vsel %vm5453, %v5450, %v5347
        %v5460 = vsel %vm5453, %v5451, %v5350
        %v5461 = vsel %vm5453, %v5452, %v5353
        %vm5462 = vcmask 39936
        %v5463 = vsel %vm5462, %v5454, %v5356
        %v5464 = vsel %vm5462, %v5455, %v5359
        %v5465 = vsel %vm5462, %v5456, %v5362
        %v5466 = vsel %vm5462, %v5457, %v5365
        %v5467 = vsel %vm5462, %v5458, %v5368
        %v5468 = vsel %vm5462, %v5459, %v5371
        %v5469 = vsel %vm5462, %v5460, %v5374
        %v5470 = vsel %vm5462, %v5461, %v5377
        %vm5471 = vcmask 48128
        %v5472 = vsel %vm5471, %v5463, %v5380
        %v5473 = vsel %vm5471, %v5464, %v5383
        %v5474 = vsel %vm5471, %v5465, %v5386
        %v5475 = vsel %vm5471, %v5466, %v5389
        %v5476 = vsel %vm5471, %v5467, %v5392
        %v5477 = vsel %vm5471, %v5468, %v5395
        %v5478 = vsel %vm5471, %v5469, %v5398
        %v5479 = vsel %vm5471, %v5470, %v5401
        %vm5480 = vcmask 56320
        %v5481 = vsel %vm5480, %v5472, %v5404
        %v5482 = vsel %vm5480, %v5473, %v5407
        %v5483 = vsel %vm5480, %v5474, %v5410
        %v5484 = vsel %vm5480, %v5475, %v5413
        %v5485 = vsel %vm5480, %v5476, %v5416
        %v5486 = vsel %vm5480, %v5477, %v5419
        %v5487 = vsel %vm5480, %v5478, %v5422
        %v5488 = vsel %vm5480, %v5479, %v5425
        %vm5489 = vcmask 64512
        %5490 = vst.msk [vmem:[%s534] sm:$0xff] %vm5489, %v5481
        %5491 = vst.msk [vmem:[%s534 + $0x8] sm:$0xff] %vm5489, %v5482
        %5492 = vst.msk [vmem:[%s534 + $0x10] sm:$0xff] %vm5489, %v5483
        %5493 = vst.msk [vmem:[%s534 + $0x18] sm:$0xff] %vm5489, %v5484
        %5494 = vst.msk [vmem:[%s534 + $0x20] sm:$0xff] %vm5489, %v5485
        %5495 = vst.msk [vmem:[%s534 + $0x28] sm:$0xff] %vm5489, %v5486
        %5496 = vst.msk [vmem:[%s534 + $0x30] sm:$0xff] %vm5489, %v5487
        %5497 = vst.msk [vmem:[%s534 + $0x38] sm:$0xff] %vm5489, %v5488
        %s5498 = smul.u32 8, %s16
        %p5499 = scmp.lt.s32.totalorder %s5498, 15
        %s5500 = scalar_select %p5499, %s5498, 15
        %s5501 = smul.addr %s5500, 8
        %s5502 = scalar_lea.vmem %s5, %s5501
        // Predicated region
        $region79: #{tpu_custom_call.1} parent=73 // pred_check
          %p5503 = pneg %p149
        $region80: #{tpu_custom_call.1} parent=73 // pred_check_branch
          %5505 = sbr.rel (%p5503) target = $region82
        $region81: #{tpu_custom_call.1} parent=73 // pred_region
          %s5506 = smul.u32 8, %s16
        $region82: #{tpu_custom_call.1} parent=73 // pred_fallthru
          _
      $region74: #{tpu_custom_call.1} parent=5 // pred_fallthru
        _
      %p5507 = scmp.le.s32.totalorder 2, %s11
      // Predicated region
      $region83: #{tpu_custom_call.1} parent=5 // pred_check
        %p5508 = pneg %p5507
      $region84: #{tpu_custom_call.1} parent=5 // pred_check_branch
        %5510 = sbr.rel (%p5508) target = $region86
      $region85: #{tpu_custom_call.1} parent=5 // pred_region
        %s5511 = ssub.s32 %s11, 2
        // Predicated region
        $region87: #{tpu_custom_call.1} parent=85 // pred_check
          %p5512 = pneg %p155
        $region88: #{tpu_custom_call.1} parent=85 // pred_check_branch
          %5514 = sbr.rel (%p5512) target = $region90
        $region89: #{tpu_custom_call.1} parent=85 // pred_region
          %s5515 = smul.u32 8, %s17
          %p5516 = scmp.lt.s32.totalorder %s5515, 15
          %s5517 = scalar_select %p5516, %s5515, 15
          %s5518 = smul.addr %s5517, 8
          %s5519 = scalar_lea.vmem %s5, %s5518
        $region90: #{tpu_custom_call.1} parent=85 // pred_fallthru
          _
      $region86: #{tpu_custom_call.1} parent=5 // pred_fallthru
        _
    $region6: #{tpu_custom_call.1} parent=1 // loop_footer
      %s15 = sadd.s32 1, %s11
    $region7: #{tpu_custom_call.1} parent=1 // loop_footer_branch
      %10 = sbr.rel target = $region3
    $region8: #{tpu_custom_call.1} parent=1 // loop_exit
      _

</llo_original>
